<compile_context>
chip_gen: v7x
topology: tpu7x:2x2x1
jax: 0.10.0
libtpu: 0.0.40
codegen_flags: <defaults>
</compile_context>

<pallas_src>
import functools

import jax
import jax.numpy as jnp
from jax import lax
from jax.experimental import pallas as pl
from jax.experimental.pallas import tpu as pltpu


_BIG = 1e30  # additive mask value for invalid edges; relu(-_BIG + b2) == 0.


def _round_up(x, m):
    return (x + m - 1) // m * m


# ----------------------------------------------------------------------------
# Pallas kernel: PointNetConv message MLP + masked max aggregation
# ----------------------------------------------------------------------------
def pointnet_conv_kernel(feat_ref, mneg_ref, w1_ref, w2_ref, e_ref, b2_ref,
                         o_ref):
    """One block of tm centroids.

    feat_ref: (KP, tm, P*FIN_A) bf16  P packed edges per row, K-major slabs
    mneg_ref: (KP, tm, P)       bf16  0.0 valid edge / -BIG padded edge
    w1_ref:   (P*FIN_A, P*H)    bf16  block-diag layer-1 weight (b1 folded)
    w2_ref:   (P*H, P*FOUT)     bf16  block-diag layer-2 weight
    e_ref:    (P, P*FOUT)       bf16  0/1 slot-expansion matrix for the mask
    b2_ref:   (1, FOUT)         f32   layer-2 bias (deferred past the max)
    o_ref:    (tm, FOUT)        f32
    """
    kp = feat_ref.shape[0]
    tm = o_ref.shape[0]
    fout = o_ref.shape[-1]
    pfout = w2_ref.shape[-1]
    p = pfout // fout

    # Running max over the KP slabs of P packed edges.  kp is small and
    # static, so a plain unrolled loop keeps every slab access a free
    # leading-axis slice and every temporary at (tm, 128).
    acc = jnp.full((tm, pfout), -_BIG, dtype=jnp.float32)
    for rr in range(kp):
        f = feat_ref[rr]                                        # (tm, P*FIN_A)
        h = jnp.dot(f, w1_ref[...], preferred_element_type=jnp.float32)
        h = jnp.maximum(h, 0.0).astype(jnp.bfloat16)            # (tm, P*H)
        s = jnp.dot(h, w2_ref[...], preferred_element_type=jnp.float32)
        # Additive -BIG mask for invalid edges, expanded (tm, P)->(tm, P*FOUT)
        # by a tiny matmul against the constant 0/1 expansion matrix.
        s = s + jnp.dot(mneg_ref[rr], e_ref[...],
                        preferred_element_type=jnp.float32)
        acc = jnp.maximum(acc, s)                               # (tm, P*FOUT)

    # Reduce over the P packed edge slots (static lane slices), add the
    # deferred b2 and apply the final ReLU.  ReLU commutes with max, and
    # relu(-BIG + b2) = 0 gives PyG's empty-neighborhood fill.
    m = acc[:, 0:fout]
    for q in range(1, p):
        m = jnp.maximum(m, acc[:, q * fout:(q + 1) * fout])
    o_ref[...] = jnp.maximum(m + b2_ref[...], 0.0)


def pointnet_conv(feat, valid, w1, b1, w2, b2, *, tm=256, p_pack=4):
    """feat: (M, K, FIN) f32, valid: (M, K) bool -> (M, FOUT) f32."""
    m_total, k, fin = feat.shape
    h_dim = w1.shape[1]
    fout = w2.shape[1]
    fin_a = fin + 1
    pk = p_pack

    # Pad K to a multiple of the packing factor (padded edges are invalid).
    k_pad = _round_up(k, pk)
    if k_pad != k:
        feat = jnp.pad(feat, ((0, 0), (0, k_pad - k), (0, 0)))
        valid = jnp.pad(valid, ((0, 0), (0, k_pad - k)))
    kp = k_pad // pk

    # Pad M up to a multiple of the row tile (instead of asserting).
    tm = max(8, min(tm, _round_up(m_total, 8)))
    m_pad = _round_up(m_total, tm)
    if m_pad != m_total:
        feat = jnp.pad(feat, ((0, m_pad - m_total), (0, 0), (0, 0)))
        valid = jnp.pad(valid, ((0, m_pad - m_total), (0, 0)))

    # bf16 feat + constant-1 column (folds b1 into w1), P edges packed per
    # row, stored K-major so each kernel slab is a free leading-axis slice.
    # Under jit this whole chain fuses with the neighbor gather.
    feat_a = jnp.concatenate(
        [feat.astype(jnp.bfloat16),
         jnp.ones((m_pad, k_pad, 1), jnp.bfloat16)], axis=-1)
    feat_p = feat_a.reshape(m_pad, kp, pk * fin_a).transpose(1, 0, 2)
    mneg = jnp.where(valid, 0.0, -_BIG).astype(jnp.bfloat16)
    mneg_p = mneg.reshape(m_pad, kp, pk).transpose(1, 0, 2)

    # Block-diagonal weights (bf16, b1 folded as the last row of each block).
    eye_p = jnp.eye(pk, dtype=jnp.float32)
    w1_aug = jnp.concatenate([w1, b1], axis=0)                    # (FIN_A, H)
    w1_blk = jnp.kron(eye_p, w1_aug).astype(jnp.bfloat16)         # (P*FIN_A, P*H)
    w2_blk = jnp.kron(eye_p, w2).astype(jnp.bfloat16)             # (P*H, P*FOUT)
    e_mat = jnp.kron(eye_p, jnp.ones((1, fout), jnp.float32)
                     ).astype(jnp.bfloat16)                       # (P, P*FOUT)
    b2_f = b2.astype(jnp.float32).reshape(1, fout)

    grid_spec = pltpu.PrefetchScalarGridSpec(
        num_scalar_prefetch=0,
        grid=(m_pad // tm,),
        in_specs=[
            pl.BlockSpec((kp, tm, pk * fin_a), lambda i: (0, i, 0)),
            pl.BlockSpec((kp, tm, pk), lambda i: (0, i, 0)),
            pl.BlockSpec((pk * fin_a, pk * h_dim), lambda i: (0, 0)),
            pl.BlockSpec((pk * h_dim, pk * fout), lambda i: (0, 0)),
            pl.BlockSpec((pk, pk * fout), lambda i: (0, 0)),
            pl.BlockSpec((1, fout), lambda i: (0, 0)),
        ],
        out_specs=pl.BlockSpec((tm, fout), lambda i: (i, 0)),
    )
    out = pl.pallas_call(
        pointnet_conv_kernel,
        out_shape=jax.ShapeDtypeStruct((m_pad, fout), jnp.float32),
        grid_spec=grid_spec,
        compiler_params=pltpu.CompilerParams(
            dimension_semantics=("parallel",)),
    )(feat_p, mneg_p, w1_blk, w2_blk, e_mat, b2_f)
    return out[:m_total]


# ----------------------------------------------------------------------------
# Glue: farthest-point sampling (per point cloud)
# ----------------------------------------------------------------------------
def fps_single(pos_b, m):
    """pos_b: (N, 3) -> (m,) int32 indices (deterministic, seeded at point 0)."""
    n = pos_b.shape[0]

    def body(i, state):
        idxs, dists = state
        last = idxs[i - 1]
        d = jnp.sum((pos_b - pos_b[last]) ** 2, axis=-1)
        dists = jnp.minimum(dists, d)
        nxt = jnp.argmax(dists).astype(jnp.int32)
        idxs = idxs.at[i].set(nxt)
        return idxs, dists

    idxs = jnp.zeros((m,), jnp.int32)
    dists = jnp.full((n,), jnp.inf, jnp.float32)
    idxs, _ = lax.fori_loop(1, m, body, (idxs, dists))
    return idxs


# ----------------------------------------------------------------------------
# Glue: radius neighborhood grouping (like torch_geometric.nn.radius)
# ----------------------------------------------------------------------------
def radius_group(pos, batch, idx, r, k_max):
    """Returns (nbr_idx (M, K) int32, valid (M, K) bool).

    Note: keeps the lowest-index points within r (matches torch_geometric's
    "arbitrary up to max_num_neighbors" only approximately)."""
    n = pos.shape[0]
    cen_pos = pos[idx]                                           # (M, 3)
    cen_b = batch[idx]                                           # (M,)
    d2 = jnp.sum((cen_pos[:, None, :] - pos[None, :, :]) ** 2, axis=-1)
    within = (d2 <= r * r) & (cen_b[:, None] == batch[None, :])  # (M, N)

    col = jnp.arange(n, dtype=jnp.int32)
    key = jnp.where(within, col[None, :], n + col[None, :])
    order = jnp.argsort(key, axis=1).astype(jnp.int32)           # valid cols first

    k_eff = min(k_max, n)
    nbr = order[:, :k_eff]
    valid = jnp.take_along_axis(within, nbr, axis=1)
    if k_max > n:
        nbr = jnp.pad(nbr, ((0, 0), (0, k_max - n)))
        valid = jnp.pad(valid, ((0, 0), (0, k_max - n)))
    return nbr, valid


# ----------------------------------------------------------------------------
# SAModule forward
# ----------------------------------------------------------------------------
def sa_module_forward(params, x, pos, batch, *, ratio, r, k_max, pts_per_cloud):
    n_total = pos.shape[0]
    b = n_total // pts_per_cloud
    m_per = int(round(ratio * pts_per_cloud))

    # 1. sampling (FPS per cloud) -> global centroid indices
    # TODO(synk): original uses sampling_algs.bias_anyvsfps_sampler with
    # max_curve_sampler (curvature-biased sampling); plain FPS used instead.
    pos_bc = pos.reshape(b, pts_per_cloud, 3)
    idx_local = jax.vmap(functools.partial(fps_single, m=m_per))(pos_bc)
    idx = (idx_local +
           (jnp.arange(b, dtype=jnp.int32) * pts_per_cloud)[:, None]).reshape(-1)

    # 2. radius grouping
    nbr_idx, valid = radius_group(pos, batch, idx, r, k_max)     # (M, K)

    # 3. gather per-edge inputs: [x_j, pos_j - pos_i]
    # TODO(synk): fuse this gather into the kernel (scalar-prefetched nbr_idx
    # + HBM [x|pos] table + in-VMEM row gather) so feat never hits HBM.
    x_j = x[nbr_idx]                                             # (M, K, C)
    rel = pos[nbr_idx] - pos[idx][:, None, :]                    # (M, K, 3)
    feat = jnp.concatenate([x_j, rel], axis=-1).astype(jnp.float32)

    # 4. PointNetConv hot path in Pallas
    x_out = pointnet_conv(feat, valid, params["w1"], params["b1"],
                          params["w2"], params["b2"])

    return x_out, pos[idx], batch[idx], (feat, valid)


# ----------------------------------------------------------------------------
# References for the sanity check
# ----------------------------------------------------------------------------
def reference_conv_f32(feat, valid, p):
    # Original semantics in f32: per-edge MLP -> ReLU -> Linear -> ReLU, then
    # max over valid neighbors (0 if a centroid has no valid neighbor).
    h = jnp.maximum(jnp.einsum('mkf,fh->mkh', feat, p["w1"]) + p["b1"][0], 0.0)
    h = jnp.maximum(jnp.einsum('mkh,ho->mko', h, p["w2"]) + p["b2"][0], 0.0)
    h = h * valid[:, :, None].astype(h.dtype)
    return jnp.max(h, axis=1)


def reference_conv_bf16(feat, valid, p):
    # Same bf16 / f32-accumulate precision path as the Pallas kernel
    # (b1 folded via a constant-1 column, -BIG mask, b2 after the max).
    m, k, fin = feat.shape
    feat_a = jnp.concatenate(
        [feat.astype(jnp.bfloat16), jnp.ones((m, k, 1), jnp.bfloat16)], axis=-1)
    w1_aug = jnp.concatenate([p["w1"], p["b1"]], axis=0).astype(jnp.bfloat16)
    h = jnp.maximum(jnp.einsum('mkf,fh->mkh', feat_a, w1_aug,
                               preferred_element_type=jnp.float32), 0.0)
    s = jnp.einsum('mkh,ho->mko', h.astype(jnp.bfloat16),
                   p["w2"].astype(jnp.bfloat16),
                   preferred_element_type=jnp.float32)
    s = jnp.where(valid[:, :, None], s, -_BIG)
    out = jnp.max(s, axis=1) + p["b2"].astype(jnp.float32)
    return jnp.maximum(out, 0.0)


# ----------------------------------------------------------------------------
if __name__ == "__main__":
    # Small shapes consistent with the module's forward:
    B, N, C = 2, 16, 4                 # 2 clouds, 16 points each, 4 features
    RATIO, R, K = 0.5, 0.75, 64        # SAModule(ratio, r, nn, bias, k)
    HID, FOUT = 32, 32                 # local_nn = MLP([C+3, 32, 32])
    FIN = C + 3

    key = jax.random.PRNGKey(0)
    k1, k2, k3, k4 = jax.random.split(key, 4)

    pos = jax.random.uniform(k1, (B * N, 3), jnp.float32)
    x = jax.random.normal(k2, (B * N, C), jnp.float32)
    batch = jnp.repeat(jnp.arange(B, dtype=jnp.int32), N)

    # Deterministic parameter init (synthetic; no checkpoint load)
    params = {
        "w1": jax.random.normal(k3, (FIN, HID), jnp.float32) * 0.2,
        "b1": jnp.full((1, HID), 0.01, jnp.float32),
        "w2": jax.random.normal(k4, (HID, FOUT), jnp.float32) * 0.2,
        "b2": jnp.full((1, FOUT), 0.01, jnp.float32),
    }

    fwd = jax.jit(functools.partial(
        sa_module_forward, ratio=RATIO, r=R, k_max=K, pts_per_cloud=N))
    x_out, pos_out, batch_out, (feat, valid) = fwd(params, x, pos, batch)
    jax.block_until_ready((x_out, pos_out, batch_out, feat, valid))

    M = B * int(RATIO * N)
    assert x_out.shape == (M, FOUT)
    assert pos_out.shape == (M, 3)
    assert batch_out.shape == (M,)

    # Sanity checks: exact-precision-path reference (tight) and the original
    # f32 formulation (loose, validates the masking / ReLU-after-max rewrite).
    ref_bf16 = reference_conv_bf16(feat, valid, params)
    ref_f32 = reference_conv_f32(feat, valid, params)
    assert jnp.allclose(x_out, ref_bf16, rtol=2e-3, atol=2e-3)
    assert jnp.allclose(x_out, ref_f32, rtol=5e-2, atol=5e-2)

    print("KERNEL_OK")
</pallas_src>

<mosaic_0001>
module attributes {stable_mosaic.version = 11 : i64} {
  func.func @pointnet_conv_kernel(%arg0: i32, %arg1: memref<16x16x32xbf16, #tpu.memory_space<vmem>>, %arg2: memref<16x16x4xbf16, #tpu.memory_space<vmem>>, %arg3: memref<32x128xbf16, #tpu.memory_space<vmem>>, %arg4: memref<128x128xbf16, #tpu.memory_space<vmem>>, %arg5: memref<4x128xbf16, #tpu.memory_space<vmem>>, %arg6: memref<1x32xf32, #tpu.memory_space<vmem>>, %arg7: memref<16x32xf32, #tpu.memory_space<vmem>>) attributes {dimension_semantics = [#tpu.dimension_semantics<parallel>], iteration_bounds = array<i64: 1>, scalar_prefetch = 0 : i64, scratch_operands = 0 : i64, tpu.core_type = #tpu.core_type<tc>, window_params = [{transform_indices = @transform_0, window_bounds = array<i64: 16, 16, 32>}, {transform_indices = @transform_1, window_bounds = array<i64: 16, 16, 4>}, {pipeline_mode = #tpu.pipeline_mode<synchronous>, transform_indices = @transform_2, window_bounds = array<i64: 32, 128>}, {pipeline_mode = #tpu.pipeline_mode<synchronous>, transform_indices = @transform_3, window_bounds = array<i64: 128, 128>}, {pipeline_mode = #tpu.pipeline_mode<synchronous>, transform_indices = @transform_4, window_bounds = array<i64: 4, 128>}, {pipeline_mode = #tpu.pipeline_mode<synchronous>, transform_indices = @transform_5, window_bounds = array<i64: 1, 32>}, {transform_indices = @transform_6, window_bounds = array<i64: 16, 32>}]} {
    %cst = arith.constant -1.000000e+30 : f32
    %0 = vector.broadcast %cst : f32 to vector<16x128xf32>
    %c0 = arith.constant 0 : index
    %c0_0 = arith.constant 0 : index
    %c0_1 = arith.constant 0 : index
    %1 = vector.load %arg1[%c0, %c0_0, %c0_1] : memref<16x16x32xbf16, #tpu.memory_space<vmem>>, vector<1x16x32xbf16>
    %2 = vector.shape_cast %1 : vector<1x16x32xbf16> to vector<16x32xbf16>
    %c0_2 = arith.constant 0 : index
    %c0_3 = arith.constant 0 : index
    %3 = vector.load %arg3[%c0_2, %c0_3] : memref<32x128xbf16, #tpu.memory_space<vmem>>, vector<32x128xbf16>
    %cst_4 = arith.constant dense<0.000000e+00> : vector<16x128xf32>
    %4 = tpu.matmul %2, %3, %cst_4 {dimension_numbers = #tpu.dot_dimension_numbers<[1], [0], [0], [1], [0, 0, 1, 1], [], []>} : vector<16x32xbf16>, vector<32x128xbf16>, vector<16x128xf32> -> vector<16x128xf32>
    %cst_5 = arith.constant 0.000000e+00 : f32
    %5 = vector.broadcast %cst_5 : f32 to vector<16x128xf32>
    %6 = arith.maximumf %4, %5 : vector<16x128xf32>
    %7 = arith.truncf %6 : vector<16x128xf32> to vector<16x128xbf16>
    %c0_6 = arith.constant 0 : index
    %c0_7 = arith.constant 0 : index
    %8 = vector.load %arg4[%c0_6, %c0_7] : memref<128x128xbf16, #tpu.memory_space<vmem>>, vector<128x128xbf16>
    %cst_8 = arith.constant dense<0.000000e+00> : vector<16x128xf32>
    %9 = tpu.matmul %7, %8, %cst_8 {dimension_numbers = #tpu.dot_dimension_numbers<[1], [0], [0], [1], [0, 0, 1, 1], [], []>} : vector<16x128xbf16>, vector<128x128xbf16>, vector<16x128xf32> -> vector<16x128xf32>
    %c0_9 = arith.constant 0 : index
    %c0_10 = arith.constant 0 : index
    %c0_11 = arith.constant 0 : index
    %10 = vector.load %arg2[%c0_9, %c0_10, %c0_11] : memref<16x16x4xbf16, #tpu.memory_space<vmem>>, vector<1x16x4xbf16>
    %11 = vector.shape_cast %10 : vector<1x16x4xbf16> to vector<16x4xbf16>
    %c0_12 = arith.constant 0 : index
    %c0_13 = arith.constant 0 : index
    %12 = vector.load %arg5[%c0_12, %c0_13] : memref<4x128xbf16, #tpu.memory_space<vmem>>, vector<4x128xbf16>
    %cst_14 = arith.constant dense<0.000000e+00> : vector<16x128xf32>
    %13 = tpu.matmul %11, %12, %cst_14 {dimension_numbers = #tpu.dot_dimension_numbers<[1], [0], [0], [1], [0, 0, 1, 1], [], []>} : vector<16x4xbf16>, vector<4x128xbf16>, vector<16x128xf32> -> vector<16x128xf32>
    %14 = arith.addf %9, %13 : vector<16x128xf32>
    %15 = arith.maximumf %0, %14 : vector<16x128xf32>
    %c1 = arith.constant 1 : index
    %c0_15 = arith.constant 0 : index
    %c0_16 = arith.constant 0 : index
    %16 = vector.load %arg1[%c1, %c0_15, %c0_16] : memref<16x16x32xbf16, #tpu.memory_space<vmem>>, vector<1x16x32xbf16>
    %17 = vector.shape_cast %16 : vector<1x16x32xbf16> to vector<16x32xbf16>
    %c0_17 = arith.constant 0 : index
    %c0_18 = arith.constant 0 : index
    %18 = vector.load %arg3[%c0_17, %c0_18] : memref<32x128xbf16, #tpu.memory_space<vmem>>, vector<32x128xbf16>
    %cst_19 = arith.constant dense<0.000000e+00> : vector<16x128xf32>
    %19 = tpu.matmul %17, %18, %cst_19 {dimension_numbers = #tpu.dot_dimension_numbers<[1], [0], [0], [1], [0, 0, 1, 1], [], []>} : vector<16x32xbf16>, vector<32x128xbf16>, vector<16x128xf32> -> vector<16x128xf32>
    %cst_20 = arith.constant 0.000000e+00 : f32
    %20 = vector.broadcast %cst_20 : f32 to vector<16x128xf32>
    %21 = arith.maximumf %19, %20 : vector<16x128xf32>
    %22 = arith.truncf %21 : vector<16x128xf32> to vector<16x128xbf16>
    %c0_21 = arith.constant 0 : index
    %c0_22 = arith.constant 0 : index
    %23 = vector.load %arg4[%c0_21, %c0_22] : memref<128x128xbf16, #tpu.memory_space<vmem>>, vector<128x128xbf16>
    %cst_23 = arith.constant dense<0.000000e+00> : vector<16x128xf32>
    %24 = tpu.matmul %22, %23, %cst_23 {dimension_numbers = #tpu.dot_dimension_numbers<[1], [0], [0], [1], [0, 0, 1, 1], [], []>} : vector<16x128xbf16>, vector<128x128xbf16>, vector<16x128xf32> -> vector<16x128xf32>
    %c1_24 = arith.constant 1 : index
    %c0_25 = arith.constant 0 : index
    %c0_26 = arith.constant 0 : index
    %25 = vector.load %arg2[%c1_24, %c0_25, %c0_26] : memref<16x16x4xbf16, #tpu.memory_space<vmem>>, vector<1x16x4xbf16>
    %26 = vector.shape_cast %25 : vector<1x16x4xbf16> to vector<16x4xbf16>
    %c0_27 = arith.constant 0 : index
    %c0_28 = arith.constant 0 : index
    %27 = vector.load %arg5[%c0_27, %c0_28] : memref<4x128xbf16, #tpu.memory_space<vmem>>, vector<4x128xbf16>
    %cst_29 = arith.constant dense<0.000000e+00> : vector<16x128xf32>
    %28 = tpu.matmul %26, %27, %cst_29 {dimension_numbers = #tpu.dot_dimension_numbers<[1], [0], [0], [1], [0, 0, 1, 1], [], []>} : vector<16x4xbf16>, vector<4x128xbf16>, vector<16x128xf32> -> vector<16x128xf32>
    %29 = arith.addf %24, %28 : vector<16x128xf32>
    %30 = arith.maximumf %15, %29 : vector<16x128xf32>
    %c2 = arith.constant 2 : index
    %c0_30 = arith.constant 0 : index
    %c0_31 = arith.constant 0 : index
    %31 = vector.load %arg1[%c2, %c0_30, %c0_31] : memref<16x16x32xbf16, #tpu.memory_space<vmem>>, vector<1x16x32xbf16>
    %32 = vector.shape_cast %31 : vector<1x16x32xbf16> to vector<16x32xbf16>
    %c0_32 = arith.constant 0 : index
    %c0_33 = arith.constant 0 : index
    %33 = vector.load %arg3[%c0_32, %c0_33] : memref<32x128xbf16, #tpu.memory_space<vmem>>, vector<32x128xbf16>
    %cst_34 = arith.constant dense<0.000000e+00> : vector<16x128xf32>
    %34 = tpu.matmul %32, %33, %cst_34 {dimension_numbers = #tpu.dot_dimension_numbers<[1], [0], [0], [1], [0, 0, 1, 1], [], []>} : vector<16x32xbf16>, vector<32x128xbf16>, vector<16x128xf32> -> vector<16x128xf32>
    %cst_35 = arith.constant 0.000000e+00 : f32
    %35 = vector.broadcast %cst_35 : f32 to vector<16x128xf32>
    %36 = arith.maximumf %34, %35 : vector<16x128xf32>
    %37 = arith.truncf %36 : vector<16x128xf32> to vector<16x128xbf16>
    %c0_36 = arith.constant 0 : index
    %c0_37 = arith.constant 0 : index
    %38 = vector.load %arg4[%c0_36, %c0_37] : memref<128x128xbf16, #tpu.memory_space<vmem>>, vector<128x128xbf16>
    %cst_38 = arith.constant dense<0.000000e+00> : vector<16x128xf32>
    %39 = tpu.matmul %37, %38, %cst_38 {dimension_numbers = #tpu.dot_dimension_numbers<[1], [0], [0], [1], [0, 0, 1, 1], [], []>} : vector<16x128xbf16>, vector<128x128xbf16>, vector<16x128xf32> -> vector<16x128xf32>
    %c2_39 = arith.constant 2 : index
    %c0_40 = arith.constant 0 : index
    %c0_41 = arith.constant 0 : index
    %40 = vector.load %arg2[%c2_39, %c0_40, %c0_41] : memref<16x16x4xbf16, #tpu.memory_space<vmem>>, vector<1x16x4xbf16>
    %41 = vector.shape_cast %40 : vector<1x16x4xbf16> to vector<16x4xbf16>
    %c0_42 = arith.constant 0 : index
    %c0_43 = arith.constant 0 : index
    %42 = vector.load %arg5[%c0_42, %c0_43] : memref<4x128xbf16, #tpu.memory_space<vmem>>, vector<4x128xbf16>
    %cst_44 = arith.constant dense<0.000000e+00> : vector<16x128xf32>
    %43 = tpu.matmul %41, %42, %cst_44 {dimension_numbers = #tpu.dot_dimension_numbers<[1], [0], [0], [1], [0, 0, 1, 1], [], []>} : vector<16x4xbf16>, vector<4x128xbf16>, vector<16x128xf32> -> vector<16x128xf32>
    %44 = arith.addf %39, %43 : vector<16x128xf32>
    %45 = arith.maximumf %30, %44 : vector<16x128xf32>
    %c3 = arith.constant 3 : index
    %c0_45 = arith.constant 0 : index
    %c0_46 = arith.constant 0 : index
    %46 = vector.load %arg1[%c3, %c0_45, %c0_46] : memref<16x16x32xbf16, #tpu.memory_space<vmem>>, vector<1x16x32xbf16>
    %47 = vector.shape_cast %46 : vector<1x16x32xbf16> to vector<16x32xbf16>
    %c0_47 = arith.constant 0 : index
    %c0_48 = arith.constant 0 : index
    %48 = vector.load %arg3[%c0_47, %c0_48] : memref<32x128xbf16, #tpu.memory_space<vmem>>, vector<32x128xbf16>
    %cst_49 = arith.constant dense<0.000000e+00> : vector<16x128xf32>
    %49 = tpu.matmul %47, %48, %cst_49 {dimension_numbers = #tpu.dot_dimension_numbers<[1], [0], [0], [1], [0, 0, 1, 1], [], []>} : vector<16x32xbf16>, vector<32x128xbf16>, vector<16x128xf32> -> vector<16x128xf32>
    %cst_50 = arith.constant 0.000000e+00 : f32
    %50 = vector.broadcast %cst_50 : f32 to vector<16x128xf32>
    %51 = arith.maximumf %49, %50 : vector<16x128xf32>
    %52 = arith.truncf %51 : vector<16x128xf32> to vector<16x128xbf16>
    %c0_51 = arith.constant 0 : index
    %c0_52 = arith.constant 0 : index
    %53 = vector.load %arg4[%c0_51, %c0_52] : memref<128x128xbf16, #tpu.memory_space<vmem>>, vector<128x128xbf16>
    %cst_53 = arith.constant dense<0.000000e+00> : vector<16x128xf32>
    %54 = tpu.matmul %52, %53, %cst_53 {dimension_numbers = #tpu.dot_dimension_numbers<[1], [0], [0], [1], [0, 0, 1, 1], [], []>} : vector<16x128xbf16>, vector<128x128xbf16>, vector<16x128xf32> -> vector<16x128xf32>
    %c3_54 = arith.constant 3 : index
    %c0_55 = arith.constant 0 : index
    %c0_56 = arith.constant 0 : index
    %55 = vector.load %arg2[%c3_54, %c0_55, %c0_56] : memref<16x16x4xbf16, #tpu.memory_space<vmem>>, vector<1x16x4xbf16>
    %56 = vector.shape_cast %55 : vector<1x16x4xbf16> to vector<16x4xbf16>
    %c0_57 = arith.constant 0 : index
    %c0_58 = arith.constant 0 : index
    %57 = vector.load %arg5[%c0_57, %c0_58] : memref<4x128xbf16, #tpu.memory_space<vmem>>, vector<4x128xbf16>
    %cst_59 = arith.constant dense<0.000000e+00> : vector<16x128xf32>
    %58 = tpu.matmul %56, %57, %cst_59 {dimension_numbers = #tpu.dot_dimension_numbers<[1], [0], [0], [1], [0, 0, 1, 1], [], []>} : vector<16x4xbf16>, vector<4x128xbf16>, vector<16x128xf32> -> vector<16x128xf32>
    %59 = arith.addf %54, %58 : vector<16x128xf32>
    %60 = arith.maximumf %45, %59 : vector<16x128xf32>
    %c4 = arith.constant 4 : index
    %c0_60 = arith.constant 0 : index
    %c0_61 = arith.constant 0 : index
    %61 = vector.load %arg1[%c4, %c0_60, %c0_61] : memref<16x16x32xbf16, #tpu.memory_space<vmem>>, vector<1x16x32xbf16>
    %62 = vector.shape_cast %61 : vector<1x16x32xbf16> to vector<16x32xbf16>
    %c0_62 = arith.constant 0 : index
    %c0_63 = arith.constant 0 : index
    %63 = vector.load %arg3[%c0_62, %c0_63] : memref<32x128xbf16, #tpu.memory_space<vmem>>, vector<32x128xbf16>
    %cst_64 = arith.constant dense<0.000000e+00> : vector<16x128xf32>
    %64 = tpu.matmul %62, %63, %cst_64 {dimension_numbers = #tpu.dot_dimension_numbers<[1], [0], [0], [1], [0, 0, 1, 1], [], []>} : vector<16x32xbf16>, vector<32x128xbf16>, vector<16x128xf32> -> vector<16x128xf32>
    %cst_65 = arith.constant 0.000000e+00 : f32
    %65 = vector.broadcast %cst_65 : f32 to vector<16x128xf32>
    %66 = arith.maximumf %64, %65 : vector<16x128xf32>
    %67 = arith.truncf %66 : vector<16x128xf32> to vector<16x128xbf16>
    %c0_66 = arith.constant 0 : index
    %c0_67 = arith.constant 0 : index
    %68 = vector.load %arg4[%c0_66, %c0_67] : memref<128x128xbf16, #tpu.memory_space<vmem>>, vector<128x128xbf16>
    %cst_68 = arith.constant dense<0.000000e+00> : vector<16x128xf32>
    %69 = tpu.matmul %67, %68, %cst_68 {dimension_numbers = #tpu.dot_dimension_numbers<[1], [0], [0], [1], [0, 0, 1, 1], [], []>} : vector<16x128xbf16>, vector<128x128xbf16>, vector<16x128xf32> -> vector<16x128xf32>
    %c4_69 = arith.constant 4 : index
    %c0_70 = arith.constant 0 : index
    %c0_71 = arith.constant 0 : index
    %70 = vector.load %arg2[%c4_69, %c0_70, %c0_71] : memref<16x16x4xbf16, #tpu.memory_space<vmem>>, vector<1x16x4xbf16>
    %71 = vector.shape_cast %70 : vector<1x16x4xbf16> to vector<16x4xbf16>
    %c0_72 = arith.constant 0 : index
    %c0_73 = arith.constant 0 : index
    %72 = vector.load %arg5[%c0_72, %c0_73] : memref<4x128xbf16, #tpu.memory_space<vmem>>, vector<4x128xbf16>
    %cst_74 = arith.constant dense<0.000000e+00> : vector<16x128xf32>
    %73 = tpu.matmul %71, %72, %cst_74 {dimension_numbers = #tpu.dot_dimension_numbers<[1], [0], [0], [1], [0, 0, 1, 1], [], []>} : vector<16x4xbf16>, vector<4x128xbf16>, vector<16x128xf32> -> vector<16x128xf32>
    %74 = arith.addf %69, %73 : vector<16x128xf32>
    %75 = arith.maximumf %60, %74 : vector<16x128xf32>
    %c5 = arith.constant 5 : index
    %c0_75 = arith.constant 0 : index
    %c0_76 = arith.constant 0 : index
    %76 = vector.load %arg1[%c5, %c0_75, %c0_76] : memref<16x16x32xbf16, #tpu.memory_space<vmem>>, vector<1x16x32xbf16>
    %77 = vector.shape_cast %76 : vector<1x16x32xbf16> to vector<16x32xbf16>
    %c0_77 = arith.constant 0 : index
    %c0_78 = arith.constant 0 : index
    %78 = vector.load %arg3[%c0_77, %c0_78] : memref<32x128xbf16, #tpu.memory_space<vmem>>, vector<32x128xbf16>
    %cst_79 = arith.constant dense<0.000000e+00> : vector<16x128xf32>
    %79 = tpu.matmul %77, %78, %cst_79 {dimension_numbers = #tpu.dot_dimension_numbers<[1], [0], [0], [1], [0, 0, 1, 1], [], []>} : vector<16x32xbf16>, vector<32x128xbf16>, vector<16x128xf32> -> vector<16x128xf32>
    %cst_80 = arith.constant 0.000000e+00 : f32
    %80 = vector.broadcast %cst_80 : f32 to vector<16x128xf32>
    %81 = arith.maximumf %79, %80 : vector<16x128xf32>
    %82 = arith.truncf %81 : vector<16x128xf32> to vector<16x128xbf16>
    %c0_81 = arith.constant 0 : index
    %c0_82 = arith.constant 0 : index
    %83 = vector.load %arg4[%c0_81, %c0_82] : memref<128x128xbf16, #tpu.memory_space<vmem>>, vector<128x128xbf16>
    %cst_83 = arith.constant dense<0.000000e+00> : vector<16x128xf32>
    %84 = tpu.matmul %82, %83, %cst_83 {dimension_numbers = #tpu.dot_dimension_numbers<[1], [0], [0], [1], [0, 0, 1, 1], [], []>} : vector<16x128xbf16>, vector<128x128xbf16>, vector<16x128xf32> -> vector<16x128xf32>
    %c5_84 = arith.constant 5 : index
    %c0_85 = arith.constant 0 : index
    %c0_86 = arith.constant 0 : index
    %85 = vector.load %arg2[%c5_84, %c0_85, %c0_86] : memref<16x16x4xbf16, #tpu.memory_space<vmem>>, vector<1x16x4xbf16>
    %86 = vector.shape_cast %85 : vector<1x16x4xbf16> to vector<16x4xbf16>
    %c0_87 = arith.constant 0 : index
    %c0_88 = arith.constant 0 : index
    %87 = vector.load %arg5[%c0_87, %c0_88] : memref<4x128xbf16, #tpu.memory_space<vmem>>, vector<4x128xbf16>
    %cst_89 = arith.constant dense<0.000000e+00> : vector<16x128xf32>
    %88 = tpu.matmul %86, %87, %cst_89 {dimension_numbers = #tpu.dot_dimension_numbers<[1], [0], [0], [1], [0, 0, 1, 1], [], []>} : vector<16x4xbf16>, vector<4x128xbf16>, vector<16x128xf32> -> vector<16x128xf32>
    %89 = arith.addf %84, %88 : vector<16x128xf32>
    %90 = arith.maximumf %75, %89 : vector<16x128xf32>
    %c6 = arith.constant 6 : index
    %c0_90 = arith.constant 0 : index
    %c0_91 = arith.constant 0 : index
    %91 = vector.load %arg1[%c6, %c0_90, %c0_91] : memref<16x16x32xbf16, #tpu.memory_space<vmem>>, vector<1x16x32xbf16>
    %92 = vector.shape_cast %91 : vector<1x16x32xbf16> to vector<16x32xbf16>
    %c0_92 = arith.constant 0 : index
    %c0_93 = arith.constant 0 : index
    %93 = vector.load %arg3[%c0_92, %c0_93] : memref<32x128xbf16, #tpu.memory_space<vmem>>, vector<32x128xbf16>
    %cst_94 = arith.constant dense<0.000000e+00> : vector<16x128xf32>
    %94 = tpu.matmul %92, %93, %cst_94 {dimension_numbers = #tpu.dot_dimension_numbers<[1], [0], [0], [1], [0, 0, 1, 1], [], []>} : vector<16x32xbf16>, vector<32x128xbf16>, vector<16x128xf32> -> vector<16x128xf32>
    %cst_95 = arith.constant 0.000000e+00 : f32
    %95 = vector.broadcast %cst_95 : f32 to vector<16x128xf32>
    %96 = arith.maximumf %94, %95 : vector<16x128xf32>
    %97 = arith.truncf %96 : vector<16x128xf32> to vector<16x128xbf16>
    %c0_96 = arith.constant 0 : index
    %c0_97 = arith.constant 0 : index
    %98 = vector.load %arg4[%c0_96, %c0_97] : memref<128x128xbf16, #tpu.memory_space<vmem>>, vector<128x128xbf16>
    %cst_98 = arith.constant dense<0.000000e+00> : vector<16x128xf32>
    %99 = tpu.matmul %97, %98, %cst_98 {dimension_numbers = #tpu.dot_dimension_numbers<[1], [0], [0], [1], [0, 0, 1, 1], [], []>} : vector<16x128xbf16>, vector<128x128xbf16>, vector<16x128xf32> -> vector<16x128xf32>
    %c6_99 = arith.constant 6 : index
    %c0_100 = arith.constant 0 : index
    %c0_101 = arith.constant 0 : index
    %100 = vector.load %arg2[%c6_99, %c0_100, %c0_101] : memref<16x16x4xbf16, #tpu.memory_space<vmem>>, vector<1x16x4xbf16>
    %101 = vector.shape_cast %100 : vector<1x16x4xbf16> to vector<16x4xbf16>
    %c0_102 = arith.constant 0 : index
    %c0_103 = arith.constant 0 : index
    %102 = vector.load %arg5[%c0_102, %c0_103] : memref<4x128xbf16, #tpu.memory_space<vmem>>, vector<4x128xbf16>
    %cst_104 = arith.constant dense<0.000000e+00> : vector<16x128xf32>
    %103 = tpu.matmul %101, %102, %cst_104 {dimension_numbers = #tpu.dot_dimension_numbers<[1], [0], [0], [1], [0, 0, 1, 1], [], []>} : vector<16x4xbf16>, vector<4x128xbf16>, vector<16x128xf32> -> vector<16x128xf32>
    %104 = arith.addf %99, %103 : vector<16x128xf32>
    %105 = arith.maximumf %90, %104 : vector<16x128xf32>
    %c7 = arith.constant 7 : index
    %c0_105 = arith.constant 0 : index
    %c0_106 = arith.constant 0 : index
    %106 = vector.load %arg1[%c7, %c0_105, %c0_106] : memref<16x16x32xbf16, #tpu.memory_space<vmem>>, vector<1x16x32xbf16>
    %107 = vector.shape_cast %106 : vector<1x16x32xbf16> to vector<16x32xbf16>
    %c0_107 = arith.constant 0 : index
    %c0_108 = arith.constant 0 : index
    %108 = vector.load %arg3[%c0_107, %c0_108] : memref<32x128xbf16, #tpu.memory_space<vmem>>, vector<32x128xbf16>
    %cst_109 = arith.constant dense<0.000000e+00> : vector<16x128xf32>
    %109 = tpu.matmul %107, %108, %cst_109 {dimension_numbers = #tpu.dot_dimension_numbers<[1], [0], [0], [1], [0, 0, 1, 1], [], []>} : vector<16x32xbf16>, vector<32x128xbf16>, vector<16x128xf32> -> vector<16x128xf32>
    %cst_110 = arith.constant 0.000000e+00 : f32
    %110 = vector.broadcast %cst_110 : f32 to vector<16x128xf32>
    %111 = arith.maximumf %109, %110 : vector<16x128xf32>
    %112 = arith.truncf %111 : vector<16x128xf32> to vector<16x128xbf16>
    %c0_111 = arith.constant 0 : index
    %c0_112 = arith.constant 0 : index
    %113 = vector.load %arg4[%c0_111, %c0_112] : memref<128x128xbf16, #tpu.memory_space<vmem>>, vector<128x128xbf16>
    %cst_113 = arith.constant dense<0.000000e+00> : vector<16x128xf32>
    %114 = tpu.matmul %112, %113, %cst_113 {dimension_numbers = #tpu.dot_dimension_numbers<[1], [0], [0], [1], [0, 0, 1, 1], [], []>} : vector<16x128xbf16>, vector<128x128xbf16>, vector<16x128xf32> -> vector<16x128xf32>
    %c7_114 = arith.constant 7 : index
    %c0_115 = arith.constant 0 : index
    %c0_116 = arith.constant 0 : index
    %115 = vector.load %arg2[%c7_114, %c0_115, %c0_116] : memref<16x16x4xbf16, #tpu.memory_space<vmem>>, vector<1x16x4xbf16>
    %116 = vector.shape_cast %115 : vector<1x16x4xbf16> to vector<16x4xbf16>
    %c0_117 = arith.constant 0 : index
    %c0_118 = arith.constant 0 : index
    %117 = vector.load %arg5[%c0_117, %c0_118] : memref<4x128xbf16, #tpu.memory_space<vmem>>, vector<4x128xbf16>
    %cst_119 = arith.constant dense<0.000000e+00> : vector<16x128xf32>
    %118 = tpu.matmul %116, %117, %cst_119 {dimension_numbers = #tpu.dot_dimension_numbers<[1], [0], [0], [1], [0, 0, 1, 1], [], []>} : vector<16x4xbf16>, vector<4x128xbf16>, vector<16x128xf32> -> vector<16x128xf32>
    %119 = arith.addf %114, %118 : vector<16x128xf32>
    %120 = arith.maximumf %105, %119 : vector<16x128xf32>
    %c8 = arith.constant 8 : index
    %c0_120 = arith.constant 0 : index
    %c0_121 = arith.constant 0 : index
    %121 = vector.load %arg1[%c8, %c0_120, %c0_121] : memref<16x16x32xbf16, #tpu.memory_space<vmem>>, vector<1x16x32xbf16>
    %122 = vector.shape_cast %121 : vector<1x16x32xbf16> to vector<16x32xbf16>
    %c0_122 = arith.constant 0 : index
    %c0_123 = arith.constant 0 : index
    %123 = vector.load %arg3[%c0_122, %c0_123] : memref<32x128xbf16, #tpu.memory_space<vmem>>, vector<32x128xbf16>
    %cst_124 = arith.constant dense<0.000000e+00> : vector<16x128xf32>
    %124 = tpu.matmul %122, %123, %cst_124 {dimension_numbers = #tpu.dot_dimension_numbers<[1], [0], [0], [1], [0, 0, 1, 1], [], []>} : vector<16x32xbf16>, vector<32x128xbf16>, vector<16x128xf32> -> vector<16x128xf32>
    %cst_125 = arith.constant 0.000000e+00 : f32
    %125 = vector.broadcast %cst_125 : f32 to vector<16x128xf32>
    %126 = arith.maximumf %124, %125 : vector<16x128xf32>
    %127 = arith.truncf %126 : vector<16x128xf32> to vector<16x128xbf16>
    %c0_126 = arith.constant 0 : index
    %c0_127 = arith.constant 0 : index
    %128 = vector.load %arg4[%c0_126, %c0_127] : memref<128x128xbf16, #tpu.memory_space<vmem>>, vector<128x128xbf16>
    %cst_128 = arith.constant dense<0.000000e+00> : vector<16x128xf32>
    %129 = tpu.matmul %127, %128, %cst_128 {dimension_numbers = #tpu.dot_dimension_numbers<[1], [0], [0], [1], [0, 0, 1, 1], [], []>} : vector<16x128xbf16>, vector<128x128xbf16>, vector<16x128xf32> -> vector<16x128xf32>
    %c8_129 = arith.constant 8 : index
    %c0_130 = arith.constant 0 : index
    %c0_131 = arith.constant 0 : index
    %130 = vector.load %arg2[%c8_129, %c0_130, %c0_131] : memref<16x16x4xbf16, #tpu.memory_space<vmem>>, vector<1x16x4xbf16>
    %131 = vector.shape_cast %130 : vector<1x16x4xbf16> to vector<16x4xbf16>
    %c0_132 = arith.constant 0 : index
    %c0_133 = arith.constant 0 : index
    %132 = vector.load %arg5[%c0_132, %c0_133] : memref<4x128xbf16, #tpu.memory_space<vmem>>, vector<4x128xbf16>
    %cst_134 = arith.constant dense<0.000000e+00> : vector<16x128xf32>
    %133 = tpu.matmul %131, %132, %cst_134 {dimension_numbers = #tpu.dot_dimension_numbers<[1], [0], [0], [1], [0, 0, 1, 1], [], []>} : vector<16x4xbf16>, vector<4x128xbf16>, vector<16x128xf32> -> vector<16x128xf32>
    %134 = arith.addf %129, %133 : vector<16x128xf32>
    %135 = arith.maximumf %120, %134 : vector<16x128xf32>
    %c9 = arith.constant 9 : index
    %c0_135 = arith.constant 0 : index
    %c0_136 = arith.constant 0 : index
    %136 = vector.load %arg1[%c9, %c0_135, %c0_136] : memref<16x16x32xbf16, #tpu.memory_space<vmem>>, vector<1x16x32xbf16>
    %137 = vector.shape_cast %136 : vector<1x16x32xbf16> to vector<16x32xbf16>
    %c0_137 = arith.constant 0 : index
    %c0_138 = arith.constant 0 : index
    %138 = vector.load %arg3[%c0_137, %c0_138] : memref<32x128xbf16, #tpu.memory_space<vmem>>, vector<32x128xbf16>
    %cst_139 = arith.constant dense<0.000000e+00> : vector<16x128xf32>
    %139 = tpu.matmul %137, %138, %cst_139 {dimension_numbers = #tpu.dot_dimension_numbers<[1], [0], [0], [1], [0, 0, 1, 1], [], []>} : vector<16x32xbf16>, vector<32x128xbf16>, vector<16x128xf32> -> vector<16x128xf32>
    %cst_140 = arith.constant 0.000000e+00 : f32
    %140 = vector.broadcast %cst_140 : f32 to vector<16x128xf32>
    %141 = arith.maximumf %139, %140 : vector<16x128xf32>
    %142 = arith.truncf %141 : vector<16x128xf32> to vector<16x128xbf16>
    %c0_141 = arith.constant 0 : index
    %c0_142 = arith.constant 0 : index
    %143 = vector.load %arg4[%c0_141, %c0_142] : memref<128x128xbf16, #tpu.memory_space<vmem>>, vector<128x128xbf16>
    %cst_143 = arith.constant dense<0.000000e+00> : vector<16x128xf32>
    %144 = tpu.matmul %142, %143, %cst_143 {dimension_numbers = #tpu.dot_dimension_numbers<[1], [0], [0], [1], [0, 0, 1, 1], [], []>} : vector<16x128xbf16>, vector<128x128xbf16>, vector<16x128xf32> -> vector<16x128xf32>
    %c9_144 = arith.constant 9 : index
    %c0_145 = arith.constant 0 : index
    %c0_146 = arith.constant 0 : index
    %145 = vector.load %arg2[%c9_144, %c0_145, %c0_146] : memref<16x16x4xbf16, #tpu.memory_space<vmem>>, vector<1x16x4xbf16>
    %146 = vector.shape_cast %145 : vector<1x16x4xbf16> to vector<16x4xbf16>
    %c0_147 = arith.constant 0 : index
    %c0_148 = arith.constant 0 : index
    %147 = vector.load %arg5[%c0_147, %c0_148] : memref<4x128xbf16, #tpu.memory_space<vmem>>, vector<4x128xbf16>
    %cst_149 = arith.constant dense<0.000000e+00> : vector<16x128xf32>
    %148 = tpu.matmul %146, %147, %cst_149 {dimension_numbers = #tpu.dot_dimension_numbers<[1], [0], [0], [1], [0, 0, 1, 1], [], []>} : vector<16x4xbf16>, vector<4x128xbf16>, vector<16x128xf32> -> vector<16x128xf32>
    %149 = arith.addf %144, %148 : vector<16x128xf32>
    %150 = arith.maximumf %135, %149 : vector<16x128xf32>
    %c10 = arith.constant 10 : index
    %c0_150 = arith.constant 0 : index
    %c0_151 = arith.constant 0 : index
    %151 = vector.load %arg1[%c10, %c0_150, %c0_151] : memref<16x16x32xbf16, #tpu.memory_space<vmem>>, vector<1x16x32xbf16>
    %152 = vector.shape_cast %151 : vector<1x16x32xbf16> to vector<16x32xbf16>
    %c0_152 = arith.constant 0 : index
    %c0_153 = arith.constant 0 : index
    %153 = vector.load %arg3[%c0_152, %c0_153] : memref<32x128xbf16, #tpu.memory_space<vmem>>, vector<32x128xbf16>
    %cst_154 = arith.constant dense<0.000000e+00> : vector<16x128xf32>
    %154 = tpu.matmul %152, %153, %cst_154 {dimension_numbers = #tpu.dot_dimension_numbers<[1], [0], [0], [1], [0, 0, 1, 1], [], []>} : vector<16x32xbf16>, vector<32x128xbf16>, vector<16x128xf32> -> vector<16x128xf32>
    %cst_155 = arith.constant 0.000000e+00 : f32
    %155 = vector.broadcast %cst_155 : f32 to vector<16x128xf32>
    %156 = arith.maximumf %154, %155 : vector<16x128xf32>
    %157 = arith.truncf %156 : vector<16x128xf32> to vector<16x128xbf16>
    %c0_156 = arith.constant 0 : index
    %c0_157 = arith.constant 0 : index
    %158 = vector.load %arg4[%c0_156, %c0_157] : memref<128x128xbf16, #tpu.memory_space<vmem>>, vector<128x128xbf16>
    %cst_158 = arith.constant dense<0.000000e+00> : vector<16x128xf32>
    %159 = tpu.matmul %157, %158, %cst_158 {dimension_numbers = #tpu.dot_dimension_numbers<[1], [0], [0], [1], [0, 0, 1, 1], [], []>} : vector<16x128xbf16>, vector<128x128xbf16>, vector<16x128xf32> -> vector<16x128xf32>
    %c10_159 = arith.constant 10 : index
    %c0_160 = arith.constant 0 : index
    %c0_161 = arith.constant 0 : index
    %160 = vector.load %arg2[%c10_159, %c0_160, %c0_161] : memref<16x16x4xbf16, #tpu.memory_space<vmem>>, vector<1x16x4xbf16>
    %161 = vector.shape_cast %160 : vector<1x16x4xbf16> to vector<16x4xbf16>
    %c0_162 = arith.constant 0 : index
    %c0_163 = arith.constant 0 : index
    %162 = vector.load %arg5[%c0_162, %c0_163] : memref<4x128xbf16, #tpu.memory_space<vmem>>, vector<4x128xbf16>
    %cst_164 = arith.constant dense<0.000000e+00> : vector<16x128xf32>
    %163 = tpu.matmul %161, %162, %cst_164 {dimension_numbers = #tpu.dot_dimension_numbers<[1], [0], [0], [1], [0, 0, 1, 1], [], []>} : vector<16x4xbf16>, vector<4x128xbf16>, vector<16x128xf32> -> vector<16x128xf32>
    %164 = arith.addf %159, %163 : vector<16x128xf32>
    %165 = arith.maximumf %150, %164 : vector<16x128xf32>
    %c11 = arith.constant 11 : index
    %c0_165 = arith.constant 0 : index
    %c0_166 = arith.constant 0 : index
    %166 = vector.load %arg1[%c11, %c0_165, %c0_166] : memref<16x16x32xbf16, #tpu.memory_space<vmem>>, vector<1x16x32xbf16>
    %167 = vector.shape_cast %166 : vector<1x16x32xbf16> to vector<16x32xbf16>
    %c0_167 = arith.constant 0 : index
    %c0_168 = arith.constant 0 : index
    %168 = vector.load %arg3[%c0_167, %c0_168] : memref<32x128xbf16, #tpu.memory_space<vmem>>, vector<32x128xbf16>
    %cst_169 = arith.constant dense<0.000000e+00> : vector<16x128xf32>
    %169 = tpu.matmul %167, %168, %cst_169 {dimension_numbers = #tpu.dot_dimension_numbers<[1], [0], [0], [1], [0, 0, 1, 1], [], []>} : vector<16x32xbf16>, vector<32x128xbf16>, vector<16x128xf32> -> vector<16x128xf32>
    %cst_170 = arith.constant 0.000000e+00 : f32
    %170 = vector.broadcast %cst_170 : f32 to vector<16x128xf32>
    %171 = arith.maximumf %169, %170 : vector<16x128xf32>
    %172 = arith.truncf %171 : vector<16x128xf32> to vector<16x128xbf16>
    %c0_171 = arith.constant 0 : index
    %c0_172 = arith.constant 0 : index
    %173 = vector.load %arg4[%c0_171, %c0_172] : memref<128x128xbf16, #tpu.memory_space<vmem>>, vector<128x128xbf16>
    %cst_173 = arith.constant dense<0.000000e+00> : vector<16x128xf32>
    %174 = tpu.matmul %172, %173, %cst_173 {dimension_numbers = #tpu.dot_dimension_numbers<[1], [0], [0], [1], [0, 0, 1, 1], [], []>} : vector<16x128xbf16>, vector<128x128xbf16>, vector<16x128xf32> -> vector<16x128xf32>
    %c11_174 = arith.constant 11 : index
    %c0_175 = arith.constant 0 : index
    %c0_176 = arith.constant 0 : index
    %175 = vector.load %arg2[%c11_174, %c0_175, %c0_176] : memref<16x16x4xbf16, #tpu.memory_space<vmem>>, vector<1x16x4xbf16>
    %176 = vector.shape_cast %175 : vector<1x16x4xbf16> to vector<16x4xbf16>
    %c0_177 = arith.constant 0 : index
    %c0_178 = arith.constant 0 : index
    %177 = vector.load %arg5[%c0_177, %c0_178] : memref<4x128xbf16, #tpu.memory_space<vmem>>, vector<4x128xbf16>
    %cst_179 = arith.constant dense<0.000000e+00> : vector<16x128xf32>
    %178 = tpu.matmul %176, %177, %cst_179 {dimension_numbers = #tpu.dot_dimension_numbers<[1], [0], [0], [1], [0, 0, 1, 1], [], []>} : vector<16x4xbf16>, vector<4x128xbf16>, vector<16x128xf32> -> vector<16x128xf32>
    %179 = arith.addf %174, %178 : vector<16x128xf32>
    %180 = arith.maximumf %165, %179 : vector<16x128xf32>
    %c12 = arith.constant 12 : index
    %c0_180 = arith.constant 0 : index
    %c0_181 = arith.constant 0 : index
    %181 = vector.load %arg1[%c12, %c0_180, %c0_181] : memref<16x16x32xbf16, #tpu.memory_space<vmem>>, vector<1x16x32xbf16>
    %182 = vector.shape_cast %181 : vector<1x16x32xbf16> to vector<16x32xbf16>
    %c0_182 = arith.constant 0 : index
    %c0_183 = arith.constant 0 : index
    %183 = vector.load %arg3[%c0_182, %c0_183] : memref<32x128xbf16, #tpu.memory_space<vmem>>, vector<32x128xbf16>
    %cst_184 = arith.constant dense<0.000000e+00> : vector<16x128xf32>
    %184 = tpu.matmul %182, %183, %cst_184 {dimension_numbers = #tpu.dot_dimension_numbers<[1], [0], [0], [1], [0, 0, 1, 1], [], []>} : vector<16x32xbf16>, vector<32x128xbf16>, vector<16x128xf32> -> vector<16x128xf32>
    %cst_185 = arith.constant 0.000000e+00 : f32
    %185 = vector.broadcast %cst_185 : f32 to vector<16x128xf32>
    %186 = arith.maximumf %184, %185 : vector<16x128xf32>
    %187 = arith.truncf %186 : vector<16x128xf32> to vector<16x128xbf16>
    %c0_186 = arith.constant 0 : index
    %c0_187 = arith.constant 0 : index
    %188 = vector.load %arg4[%c0_186, %c0_187] : memref<128x128xbf16, #tpu.memory_space<vmem>>, vector<128x128xbf16>
    %cst_188 = arith.constant dense<0.000000e+00> : vector<16x128xf32>
    %189 = tpu.matmul %187, %188, %cst_188 {dimension_numbers = #tpu.dot_dimension_numbers<[1], [0], [0], [1], [0, 0, 1, 1], [], []>} : vector<16x128xbf16>, vector<128x128xbf16>, vector<16x128xf32> -> vector<16x128xf32>
    %c12_189 = arith.constant 12 : index
    %c0_190 = arith.constant 0 : index
    %c0_191 = arith.constant 0 : index
    %190 = vector.load %arg2[%c12_189, %c0_190, %c0_191] : memref<16x16x4xbf16, #tpu.memory_space<vmem>>, vector<1x16x4xbf16>
    %191 = vector.shape_cast %190 : vector<1x16x4xbf16> to vector<16x4xbf16>
    %c0_192 = arith.constant 0 : index
    %c0_193 = arith.constant 0 : index
    %192 = vector.load %arg5[%c0_192, %c0_193] : memref<4x128xbf16, #tpu.memory_space<vmem>>, vector<4x128xbf16>
    %cst_194 = arith.constant dense<0.000000e+00> : vector<16x128xf32>
    %193 = tpu.matmul %191, %192, %cst_194 {dimension_numbers = #tpu.dot_dimension_numbers<[1], [0], [0], [1], [0, 0, 1, 1], [], []>} : vector<16x4xbf16>, vector<4x128xbf16>, vector<16x128xf32> -> vector<16x128xf32>
    %194 = arith.addf %189, %193 : vector<16x128xf32>
    %195 = arith.maximumf %180, %194 : vector<16x128xf32>
    %c13 = arith.constant 13 : index
    %c0_195 = arith.constant 0 : index
    %c0_196 = arith.constant 0 : index
    %196 = vector.load %arg1[%c13, %c0_195, %c0_196] : memref<16x16x32xbf16, #tpu.memory_space<vmem>>, vector<1x16x32xbf16>
    %197 = vector.shape_cast %196 : vector<1x16x32xbf16> to vector<16x32xbf16>
    %c0_197 = arith.constant 0 : index
    %c0_198 = arith.constant 0 : index
    %198 = vector.load %arg3[%c0_197, %c0_198] : memref<32x128xbf16, #tpu.memory_space<vmem>>, vector<32x128xbf16>
    %cst_199 = arith.constant dense<0.000000e+00> : vector<16x128xf32>
    %199 = tpu.matmul %197, %198, %cst_199 {dimension_numbers = #tpu.dot_dimension_numbers<[1], [0], [0], [1], [0, 0, 1, 1], [], []>} : vector<16x32xbf16>, vector<32x128xbf16>, vector<16x128xf32> -> vector<16x128xf32>
    %cst_200 = arith.constant 0.000000e+00 : f32
    %200 = vector.broadcast %cst_200 : f32 to vector<16x128xf32>
    %201 = arith.maximumf %199, %200 : vector<16x128xf32>
    %202 = arith.truncf %201 : vector<16x128xf32> to vector<16x128xbf16>
    %c0_201 = arith.constant 0 : index
    %c0_202 = arith.constant 0 : index
    %203 = vector.load %arg4[%c0_201, %c0_202] : memref<128x128xbf16, #tpu.memory_space<vmem>>, vector<128x128xbf16>
    %cst_203 = arith.constant dense<0.000000e+00> : vector<16x128xf32>
    %204 = tpu.matmul %202, %203, %cst_203 {dimension_numbers = #tpu.dot_dimension_numbers<[1], [0], [0], [1], [0, 0, 1, 1], [], []>} : vector<16x128xbf16>, vector<128x128xbf16>, vector<16x128xf32> -> vector<16x128xf32>
    %c13_204 = arith.constant 13 : index
    %c0_205 = arith.constant 0 : index
    %c0_206 = arith.constant 0 : index
    %205 = vector.load %arg2[%c13_204, %c0_205, %c0_206] : memref<16x16x4xbf16, #tpu.memory_space<vmem>>, vector<1x16x4xbf16>
    %206 = vector.shape_cast %205 : vector<1x16x4xbf16> to vector<16x4xbf16>
    %c0_207 = arith.constant 0 : index
    %c0_208 = arith.constant 0 : index
    %207 = vector.load %arg5[%c0_207, %c0_208] : memref<4x128xbf16, #tpu.memory_space<vmem>>, vector<4x128xbf16>
    %cst_209 = arith.constant dense<0.000000e+00> : vector<16x128xf32>
    %208 = tpu.matmul %206, %207, %cst_209 {dimension_numbers = #tpu.dot_dimension_numbers<[1], [0], [0], [1], [0, 0, 1, 1], [], []>} : vector<16x4xbf16>, vector<4x128xbf16>, vector<16x128xf32> -> vector<16x128xf32>
    %209 = arith.addf %204, %208 : vector<16x128xf32>
    %210 = arith.maximumf %195, %209 : vector<16x128xf32>
    %c14 = arith.constant 14 : index
    %c0_210 = arith.constant 0 : index
    %c0_211 = arith.constant 0 : index
    %211 = vector.load %arg1[%c14, %c0_210, %c0_211] : memref<16x16x32xbf16, #tpu.memory_space<vmem>>, vector<1x16x32xbf16>
    %212 = vector.shape_cast %211 : vector<1x16x32xbf16> to vector<16x32xbf16>
    %c0_212 = arith.constant 0 : index
    %c0_213 = arith.constant 0 : index
    %213 = vector.load %arg3[%c0_212, %c0_213] : memref<32x128xbf16, #tpu.memory_space<vmem>>, vector<32x128xbf16>
    %cst_214 = arith.constant dense<0.000000e+00> : vector<16x128xf32>
    %214 = tpu.matmul %212, %213, %cst_214 {dimension_numbers = #tpu.dot_dimension_numbers<[1], [0], [0], [1], [0, 0, 1, 1], [], []>} : vector<16x32xbf16>, vector<32x128xbf16>, vector<16x128xf32> -> vector<16x128xf32>
    %cst_215 = arith.constant 0.000000e+00 : f32
    %215 = vector.broadcast %cst_215 : f32 to vector<16x128xf32>
    %216 = arith.maximumf %214, %215 : vector<16x128xf32>
    %217 = arith.truncf %216 : vector<16x128xf32> to vector<16x128xbf16>
    %c0_216 = arith.constant 0 : index
    %c0_217 = arith.constant 0 : index
    %218 = vector.load %arg4[%c0_216, %c0_217] : memref<128x128xbf16, #tpu.memory_space<vmem>>, vector<128x128xbf16>
    %cst_218 = arith.constant dense<0.000000e+00> : vector<16x128xf32>
    %219 = tpu.matmul %217, %218, %cst_218 {dimension_numbers = #tpu.dot_dimension_numbers<[1], [0], [0], [1], [0, 0, 1, 1], [], []>} : vector<16x128xbf16>, vector<128x128xbf16>, vector<16x128xf32> -> vector<16x128xf32>
    %c14_219 = arith.constant 14 : index
    %c0_220 = arith.constant 0 : index
    %c0_221 = arith.constant 0 : index
    %220 = vector.load %arg2[%c14_219, %c0_220, %c0_221] : memref<16x16x4xbf16, #tpu.memory_space<vmem>>, vector<1x16x4xbf16>
    %221 = vector.shape_cast %220 : vector<1x16x4xbf16> to vector<16x4xbf16>
    %c0_222 = arith.constant 0 : index
    %c0_223 = arith.constant 0 : index
    %222 = vector.load %arg5[%c0_222, %c0_223] : memref<4x128xbf16, #tpu.memory_space<vmem>>, vector<4x128xbf16>
    %cst_224 = arith.constant dense<0.000000e+00> : vector<16x128xf32>
    %223 = tpu.matmul %221, %222, %cst_224 {dimension_numbers = #tpu.dot_dimension_numbers<[1], [0], [0], [1], [0, 0, 1, 1], [], []>} : vector<16x4xbf16>, vector<4x128xbf16>, vector<16x128xf32> -> vector<16x128xf32>
    %224 = arith.addf %219, %223 : vector<16x128xf32>
    %225 = arith.maximumf %210, %224 : vector<16x128xf32>
    %c15 = arith.constant 15 : index
    %c0_225 = arith.constant 0 : index
    %c0_226 = arith.constant 0 : index
    %226 = vector.load %arg1[%c15, %c0_225, %c0_226] : memref<16x16x32xbf16, #tpu.memory_space<vmem>>, vector<1x16x32xbf16>
    %227 = vector.shape_cast %226 : vector<1x16x32xbf16> to vector<16x32xbf16>
    %c0_227 = arith.constant 0 : index
    %c0_228 = arith.constant 0 : index
    %228 = vector.load %arg3[%c0_227, %c0_228] : memref<32x128xbf16, #tpu.memory_space<vmem>>, vector<32x128xbf16>
    %cst_229 = arith.constant dense<0.000000e+00> : vector<16x128xf32>
    %229 = tpu.matmul %227, %228, %cst_229 {dimension_numbers = #tpu.dot_dimension_numbers<[1], [0], [0], [1], [0, 0, 1, 1], [], []>} : vector<16x32xbf16>, vector<32x128xbf16>, vector<16x128xf32> -> vector<16x128xf32>
    %cst_230 = arith.constant 0.000000e+00 : f32
    %230 = vector.broadcast %cst_230 : f32 to vector<16x128xf32>
    %231 = arith.maximumf %229, %230 : vector<16x128xf32>
    %232 = arith.truncf %231 : vector<16x128xf32> to vector<16x128xbf16>
    %c0_231 = arith.constant 0 : index
    %c0_232 = arith.constant 0 : index
    %233 = vector.load %arg4[%c0_231, %c0_232] : memref<128x128xbf16, #tpu.memory_space<vmem>>, vector<128x128xbf16>
    %cst_233 = arith.constant dense<0.000000e+00> : vector<16x128xf32>
    %234 = tpu.matmul %232, %233, %cst_233 {dimension_numbers = #tpu.dot_dimension_numbers<[1], [0], [0], [1], [0, 0, 1, 1], [], []>} : vector<16x128xbf16>, vector<128x128xbf16>, vector<16x128xf32> -> vector<16x128xf32>
    %c15_234 = arith.constant 15 : index
    %c0_235 = arith.constant 0 : index
    %c0_236 = arith.constant 0 : index
    %235 = vector.load %arg2[%c15_234, %c0_235, %c0_236] : memref<16x16x4xbf16, #tpu.memory_space<vmem>>, vector<1x16x4xbf16>
    %236 = vector.shape_cast %235 : vector<1x16x4xbf16> to vector<16x4xbf16>
    %c0_237 = arith.constant 0 : index
    %c0_238 = arith.constant 0 : index
    %237 = vector.load %arg5[%c0_237, %c0_238] : memref<4x128xbf16, #tpu.memory_space<vmem>>, vector<4x128xbf16>
    %cst_239 = arith.constant dense<0.000000e+00> : vector<16x128xf32>
    %238 = tpu.matmul %236, %237, %cst_239 {dimension_numbers = #tpu.dot_dimension_numbers<[1], [0], [0], [1], [0, 0, 1, 1], [], []>} : vector<16x4xbf16>, vector<4x128xbf16>, vector<16x128xf32> -> vector<16x128xf32>
    %239 = arith.addf %234, %238 : vector<16x128xf32>
    %240 = arith.maximumf %225, %239 : vector<16x128xf32>
    %241 = vector.extract_strided_slice %240 {offsets = [0, 0], sizes = [16, 32], strides = [1, 1]} : vector<16x128xf32> to vector<16x32xf32>
    %242 = vector.extract_strided_slice %240 {offsets = [0, 32], sizes = [16, 32], strides = [1, 1]} : vector<16x128xf32> to vector<16x32xf32>
    %243 = arith.maximumf %241, %242 : vector<16x32xf32>
    %244 = vector.extract_strided_slice %240 {offsets = [0, 64], sizes = [16, 32], strides = [1, 1]} : vector<16x128xf32> to vector<16x32xf32>
    %245 = arith.maximumf %243, %244 : vector<16x32xf32>
    %246 = vector.extract_strided_slice %240 {offsets = [0, 96], sizes = [16, 32], strides = [1, 1]} : vector<16x128xf32> to vector<16x32xf32>
    %247 = arith.maximumf %245, %246 : vector<16x32xf32>
    %c0_240 = arith.constant 0 : index
    %c0_241 = arith.constant 0 : index
    %248 = vector.load %arg6[%c0_240, %c0_241] : memref<1x32xf32, #tpu.memory_space<vmem>>, vector<1x32xf32>
    %249 = vector.broadcast %248 : vector<1x32xf32> to vector<16x32xf32>
    %250 = arith.addf %247, %249 : vector<16x32xf32>
    %cst_242 = arith.constant 0.000000e+00 : f32
    %251 = vector.broadcast %cst_242 : f32 to vector<16x32xf32>
    %252 = arith.maximumf %250, %251 : vector<16x32xf32>
    %c0_243 = arith.constant 0 : index
    %c0_244 = arith.constant 0 : index
    %253 = vector.load %arg7[%c0_243, %c0_244] : memref<16x32xf32, #tpu.memory_space<vmem>>, vector<16x32xf32>
    tpu.vector_store %arg7[%c0_243, %c0_244], %252 {strides = array<i32>} : memref<16x32xf32, #tpu.memory_space<vmem>>, vector<16x32xf32>,
    return
  }
  func.func @transform_0(%arg0: i32) -> (i32, i32, i32) {
    %c0_i32 = arith.constant 0 : i32
    %c0_i32_0 = arith.constant 0 : i32
    %c0_i32_1 = arith.constant 0 : i32
    return %c0_i32, %arg0, %c0_i32_0 : i32, i32, i32
  }
  func.func @transform_1(%arg0: i32) -> (i32, i32, i32) {
    %c0_i32 = arith.constant 0 : i32
    %c0_i32_0 = arith.constant 0 : i32
    %c0_i32_1 = arith.constant 0 : i32
    return %c0_i32, %arg0, %c0_i32_0 : i32, i32, i32
  }
  func.func @transform_2(%arg0: i32) -> (i32, i32) {
    %c0_i32 = arith.constant 0 : i32
    %c0_i32_0 = arith.constant 0 : i32
    %c0_i32_1 = arith.constant 0 : i32
    return %c0_i32, %c0_i32_0 : i32, i32
  }
  func.func @transform_3(%arg0: i32) -> (i32, i32) {
    %c0_i32 = arith.constant 0 : i32
    %c0_i32_0 = arith.constant 0 : i32
    %c0_i32_1 = arith.constant 0 : i32
    return %c0_i32, %c0_i32_0 : i32, i32
  }
  func.func @transform_4(%arg0: i32) -> (i32, i32) {
    %c0_i32 = arith.constant 0 : i32
    %c0_i32_0 = arith.constant 0 : i32
    %c0_i32_1 = arith.constant 0 : i32
    return %c0_i32, %c0_i32_0 : i32, i32
  }
  func.func @transform_5(%arg0: i32) -> (i32, i32) {
    %c0_i32 = arith.constant 0 : i32
    %c0_i32_0 = arith.constant 0 : i32
    %c0_i32_1 = arith.constant 0 : i32
    return %c0_i32, %c0_i32_0 : i32, i32
  }
  func.func @transform_6(%arg0: i32) -> (i32, i32) {
    %c0_i32 = arith.constant 0 : i32
    %c0_i32_0 = arith.constant 0 : i32
    return %arg0, %c0_i32 : i32, i32
  }
}

</mosaic_0001>

<llo_original>
// kernel: custom-call.4
$region0: #{custom-call.4}
  %s0 = inlined_call_operand.vmem [shape: f32[2,16], index: 0, kind: output, shape index: {}]

// kernel: sa_module_forward.1
$region0: #{sa_module_forward.1}
  #allocation0 [shape = 'u32[]', space=smem, size = 0x4, offset = 0x4, fixed_abs, tag = 'smem constant byte address 0x4 - core index']
  #allocation1 [shape = 'u32[144,128]{1,0:T(1,128)}', space=vmem, size = 0x12000, scoped, tag = 'internal scratch']
  %s0 = inlined_call_operand.vmem [shape: bf16[16,16,32], index: 0, kind: input, shape index: {}]
  %s1 = inlined_call_operand.vmem [shape: bf16[16,16,4], index: 1, kind: input, shape index: {}]
  %s2 = inlined_call_operand.vmem [shape: bf16[32,128], index: 2, kind: input, shape index: {}]
  %s3 = inlined_call_operand.vmem [shape: bf16[128,128], index: 3, kind: input, shape index: {}]
  %s4 = inlined_call_operand.vmem [shape: bf16[4,128], index: 4, kind: input, shape index: {}]
  %s5 = inlined_call_operand.vmem [shape: f32[1,32], index: 5, kind: input, shape index: {}]
  %s6 = inlined_call_operand.hbm [shape: f32[16,32], index: 6, kind: output, shape index: {}]
  %s7 = sld [smem:[#allocation0]]
  $region34: #{sa_module_forward.1} parent=0
    _
  %s9 = ssub.s32 1, %s7
  %s10 = scalar_select 0, %s9, %s7
  $region1: #{sa_module_forward.1} parent=0
    #allocation2 [shape = 'u8[8192]{0}', space=vmem, size = 0x2000, scoped, tag = 'output window, operand 0, single buffered']
    #allocation3 [shape = 's32[1]{0}', space=sflag, size = 0x4, scoped, tag = 'scoped memory for sa_module_forward.1']
    %11 = vsyncpa [#allocation3], 0
    // Predicated region
    $region2: #{sa_module_forward.1} parent=1 // pred_check
      _
    $region3: #{sa_module_forward.1} parent=1 // pred_check_branch
      %13 = sbr.rel (0) target = $region5
    $region4: #{sa_module_forward.1} parent=1 // pred_region
      _
    $region5: #{sa_module_forward.1} parent=1 // pred_fallthru
      _
    // Predicated region
    $region6: #{sa_module_forward.1} parent=1 // pred_check
      _
    $region7: #{sa_module_forward.1} parent=1 // pred_check_branch
      %15 = sbr.rel (0) target = $region9
    $region8: #{sa_module_forward.1} parent=1 // pred_region
      _
    $region9: #{sa_module_forward.1} parent=1 // pred_fallthru
      _
    // Predicated region
    $region10: #{sa_module_forward.1} parent=1 // pred_check
      _
    $region11: #{sa_module_forward.1} parent=1 // pred_check_branch
      %17 = sbr.rel (0) target = $region13
    $region12: #{sa_module_forward.1} parent=1 // pred_region
      _
    $region13: #{sa_module_forward.1} parent=1 // pred_fallthru
      _
    // Predicated region
    $region14: #{sa_module_forward.1} parent=1 // pred_check
      _
    $region15: #{sa_module_forward.1} parent=1 // pred_check_branch
      %19 = sbr.rel (0) target = $region17
    $region16: #{sa_module_forward.1} parent=1 // pred_region
      _
    $region17: #{sa_module_forward.1} parent=1 // pred_fallthru
      _
    // Predicated region
    $region18: #{sa_module_forward.1} parent=1 // pred_check
      _
    $region19: #{sa_module_forward.1} parent=1 // pred_check_branch
      %21 = sbr.rel (0) target = $region21
    $region20: #{sa_module_forward.1} parent=1 // pred_region
      _
    $region21: #{sa_module_forward.1} parent=1 // pred_fallthru
      _
    // Predicated region
    $region22: #{sa_module_forward.1} parent=1 // pred_check
      _
    $region23: #{sa_module_forward.1} parent=1 // pred_check_branch
      %23 = sbr.rel (0) target = $region25
    $region24: #{sa_module_forward.1} parent=1 // pred_region
      _
    $region25: #{sa_module_forward.1} parent=1 // pred_fallthru
      _
    %v25 = vld [vmem:[%s0] sm:$0xf]
    %v26 = vld [vmem:[%s0 + $0x4] sm:$0xf]
    %v27 = vld [vmem:[%s2] sm:$0xf]
    %v28 = vld [vmem:[%s2 + $0x4] sm:$0xf]
    %v29 = vld [vmem:[%s2 + $0x8] sm:$0xf]
    %v30 = vld [vmem:[%s2 + $0xc] sm:$0xf]
    %v33 = vunpack.c.l.b16 %v25
    %v34 = vunpack.c.l.b16 %v26
    %v35 = vpack.c.b16 %v34, %v33
    %v40 = vunpack.c.l.b16 %v27
    %v41 = vunpack.c.l.b16 %v28
    %v42 = vunpack.c.l.b16 %v29
    %v43 = vunpack.c.l.b16 %v30
    %v44 = vpack.c.b16 %v41, %v40
    %v45 = vpack.c.b16 %v43, %v42
    %vm48 = vcmask 261120
    %v50 = vsel %vm48, %v35, 0
    %52 = vmatprep.subr.bf16.mxu0 0
    %53 = vmatpush1.bf16.msra.mxu0 %v44
    %54 = vmatprep.subr.bf16.mxu0 0
    %55 = vmatpush1.bf16.msra.mxu0 %v45
    %56 = vmatprep.subr.bf16.mxu0 0
    %57 = vmatpush1.bf16.msra.mxu0 0
    %58 = vmatprep.subr.bf16.mxu0 0
    %59 = vmatpush1.bf16.msra.mxu0 0
    %60 = vmatprep.subr.bf16.mxu0 0
    %61 = vmatpush1.bf16.msra.mxu0 0
    %62 = vmatprep.subr.bf16.mxu0 0
    %63 = vmatpush1.bf16.msra.mxu0 0
    %64 = vmatprep.subr.bf16.mxu0 0
    %65 = vmatpush1.bf16.msra.mxu0 0
    %66 = vmatprep.subr.bf16.mxu0 0
    %67 = vmatpush1.bf16.msra.mxu0 0
    %68 = vmatprep.subr.bf16.mxu0 0
    %69 = vmatpush1.bf16.msra.mxu0 0
    %70 = vmatprep.subr.bf16.mxu0 0
    %71 = vmatpush1.bf16.msra.mxu0 0
    %72 = vmatprep.subr.bf16.mxu0 0
    %73 = vmatpush1.bf16.msra.mxu0 0
    %74 = vmatprep.subr.bf16.mxu0 0
    %75 = vmatpush1.bf16.msra.mxu0 0
    %76 = vmatprep.subr.bf16.mxu0 0
    %77 = vmatpush1.bf16.msra.mxu0 0
    %78 = vmatprep.subr.bf16.mxu0 0
    %79 = vmatpush1.bf16.msra.mxu0 0
    %80 = vmatprep.subr.bf16.mxu0 0
    %81 = vmatpush1.bf16.msra.mxu0 0
    %82 = vmatprep.subr.bf16.mxu0 0
    %83 = vmatpush1.bf16.msra.mxu0 0
    %84 = vmatprep.mubr.bf16.mxu0 0
    %85 = vmatmul.mubr.bf16.gmra.mrb[0].mxu0 %v50
    %v86 = vpop.f32.mrb[0].mxu0
    %v87 = vadd.f32 0.0, %v86
    %v88 = vpop.f32.mrb[0].mxu0
    %v89 = vpop.f32.mrb[0].mxu0
    %v90 = vadd.f32 0.0, %v89
    %v91 = vpop.f32.mrb[0].mxu0
    %92 = vdwg.mxu0
    %v93 = vmax.f32 %v87, 0.0
    %v94 = vmax.f32 %v90, 0.0
    %v95 = vpack.c.bf16 %v94, %v93
    %v96 = vld [vmem:[%s3] sm:$0xf]
    %v97 = vld [vmem:[%s3 + $0x4] sm:$0xf]
    %v98 = vld [vmem:[%s3 + $0x8] sm:$0xf]
    %v99 = vld [vmem:[%s3 + $0xc] sm:$0xf]
    %v100 = vld [vmem:[%s3 + $0x10] sm:$0xf]
    %v101 = vld [vmem:[%s3 + $0x14] sm:$0xf]
    %v102 = vld [vmem:[%s3 + $0x18] sm:$0xf]
    %v103 = vld [vmem:[%s3 + $0x1c] sm:$0xf]
    %v104 = vld [vmem:[%s3 + $0x20] sm:$0xf]
    %v105 = vld [vmem:[%s3 + $0x24] sm:$0xf]
    %v106 = vld [vmem:[%s3 + $0x28] sm:$0xf]
    %v107 = vld [vmem:[%s3 + $0x2c] sm:$0xf]
    %v108 = vld [vmem:[%s3 + $0x30] sm:$0xf]
    %v109 = vld [vmem:[%s3 + $0x34] sm:$0xf]
    %v110 = vld [vmem:[%s3 + $0x38] sm:$0xf]
    %v111 = vld [vmem:[%s3 + $0x3c] sm:$0xf]
    %v112 = vld [vmem:[%s1] sm:$0xf]
    %v113 = vld [vmem:[%s1 + $0x4] sm:$0xf]
    %v114 = vld [vmem:[%s4] sm:$0x3]
    %v117 = vunpack.c.l.b16 %v112
    %v118 = vunpack.c.l.b16 %v113
    %v119 = vpack.c.b16 %v118, %v117
    %vm120 = vcmask 31744
    %v122 = vsel %vm120, %v119, 0
    %vm124 = vcmask 1041408
    %v126 = vsel %vm124, %v114, 0
    %128 = vmatprep.subr.bf16.mxu0 0
    %129 = vmatpush1.bf16.msra.mxu0 %v126
    %130 = vmatprep.subr.bf16.mxu0 0
    %131 = vmatpush1.bf16.msra.mxu0 0
    %132 = vmatprep.subr.bf16.mxu0 0
    %133 = vmatpush1.bf16.msra.mxu0 0
    %134 = vmatprep.subr.bf16.mxu0 0
    %135 = vmatpush1.bf16.msra.mxu0 0
    %136 = vmatprep.subr.bf16.mxu0 0
    %137 = vmatpush1.bf16.msra.mxu0 0
    %138 = vmatprep.subr.bf16.mxu0 0
    %139 = vmatpush1.bf16.msra.mxu0 0
    %140 = vmatprep.subr.bf16.mxu0 0
    %141 = vmatpush1.bf16.msra.mxu0 0
    %142 = vmatprep.subr.bf16.mxu0 0
    %143 = vmatpush1.bf16.msra.mxu0 0
    %144 = vmatprep.subr.bf16.mxu0 0
    %145 = vmatpush1.bf16.msra.mxu0 0
    %146 = vmatprep.subr.bf16.mxu0 0
    %147 = vmatpush1.bf16.msra.mxu0 0
    %148 = vmatprep.subr.bf16.mxu0 0
    %149 = vmatpush1.bf16.msra.mxu0 0
    %150 = vmatprep.subr.bf16.mxu0 0
    %151 = vmatpush1.bf16.msra.mxu0 0
    %152 = vmatprep.subr.bf16.mxu0 0
    %153 = vmatpush1.bf16.msra.mxu0 0
    %154 = vmatprep.subr.bf16.mxu0 0
    %155 = vmatpush1.bf16.msra.mxu0 0
    %156 = vmatprep.subr.bf16.mxu0 0
    %157 = vmatpush1.bf16.msra.mxu0 0
    %158 = vmatprep.subr.bf16.mxu0 0
    %159 = vmatpush1.bf16.msra.mxu0 0
    %160 = vmatprep.mubr.bf16.mxu0 0
    %161 = vmatmul.mubr.bf16.gmra.mrb[0].mxu0 %v122
    %v162 = vpop.f32.mrb[0].mxu0
    %v163 = vadd.f32 0.0, %v162
    %v164 = vpop.f32.mrb[0].mxu0
    %v165 = vpop.f32.mrb[0].mxu0
    %v166 = vadd.f32 0.0, %v165
    %v167 = vpop.f32.mrb[0].mxu0
    %168 = vdwg.mxu0
    %v185 = vunpack.c.l.b16 %v96
    %v186 = vunpack.c.l.b16 %v97
    %v187 = vunpack.c.l.b16 %v98
    %v188 = vunpack.c.l.b16 %v99
    %v189 = vunpack.c.l.b16 %v100
    %v190 = vunpack.c.l.b16 %v101
    %v191 = vunpack.c.l.b16 %v102
    %v192 = vunpack.c.l.b16 %v103
    %v193 = vunpack.c.l.b16 %v104
    %v194 = vunpack.c.l.b16 %v105
    %v195 = vunpack.c.l.b16 %v106
    %v196 = vunpack.c.l.b16 %v107
    %v197 = vunpack.c.l.b16 %v108
    %v198 = vunpack.c.l.b16 %v109
    %v199 = vunpack.c.l.b16 %v110
    %v200 = vunpack.c.l.b16 %v111
    %v201 = vpack.c.b16 %v186, %v185
    %v202 = vpack.c.b16 %v188, %v187
    %v203 = vpack.c.b16 %v190, %v189
    %v204 = vpack.c.b16 %v192, %v191
    %v205 = vpack.c.b16 %v194, %v193
    %v206 = vpack.c.b16 %v196, %v195
    %v207 = vpack.c.b16 %v198, %v197
    %v208 = vpack.c.b16 %v200, %v199
    %217 = vmatprep.subr.bf16.mxu0 0
    %218 = vmatpush1.bf16.msra.mxu0 %v201
    %219 = vmatprep.subr.bf16.mxu0 0
    %220 = vmatpush1.bf16.msra.mxu0 %v202
    %221 = vmatprep.subr.bf16.mxu0 0
    %222 = vmatpush1.bf16.msra.mxu0 %v203
    %223 = vmatprep.subr.bf16.mxu0 0
    %224 = vmatpush1.bf16.msra.mxu0 %v204
    %225 = vmatprep.subr.bf16.mxu0 0
    %226 = vmatpush1.bf16.msra.mxu0 %v205
    %227 = vmatprep.subr.bf16.mxu0 0
    %228 = vmatpush1.bf16.msra.mxu0 %v206
    %229 = vmatprep.subr.bf16.mxu0 0
    %230 = vmatpush1.bf16.msra.mxu0 %v207
    %231 = vmatprep.subr.bf16.mxu0 0
    %232 = vmatpush1.bf16.msra.mxu0 %v208
    %233 = vmatprep.subr.bf16.mxu0 0
    %234 = vmatpush1.bf16.msra.mxu0 0
    %235 = vmatprep.subr.bf16.mxu0 0
    %236 = vmatpush1.bf16.msra.mxu0 0
    %237 = vmatprep.subr.bf16.mxu0 0
    %238 = vmatpush1.bf16.msra.mxu0 0
    %239 = vmatprep.subr.bf16.mxu0 0
    %240 = vmatpush1.bf16.msra.mxu0 0
    %241 = vmatprep.subr.bf16.mxu0 0
    %242 = vmatpush1.bf16.msra.mxu0 0
    %243 = vmatprep.subr.bf16.mxu0 0
    %244 = vmatpush1.bf16.msra.mxu0 0
    %245 = vmatprep.subr.bf16.mxu0 0
    %246 = vmatpush1.bf16.msra.mxu0 0
    %247 = vmatprep.subr.bf16.mxu0 0
    %248 = vmatpush1.bf16.msra.mxu0 0
    %249 = vmatprep.mubr.bf16.mxu0 0
    %250 = vmatmul.mubr.bf16.gmra.mrb[0].mxu0 %v95
    %v251 = vpop.f32.mrb[0].mxu0
    %v252 = vadd.f32 %v163, %v251
    %v253 = vpop.f32.mrb[0].mxu0
    %v254 = vpop.f32.mrb[0].mxu0
    %v255 = vadd.f32 %v166, %v254
    %v256 = vpop.f32.mrb[0].mxu0
    %257 = vdwg.mxu0
    %v258 = vmax.f32 %v252, -1e+30
    %v259 = vmax.f32 %v255, -1e+30
    %s260 = scalar_lea.vmem %s0, 8
    %v261 = vld [vmem:[%s260] sm:$0xf]
    %v262 = vld [vmem:[%s260 + $0x4] sm:$0xf]
    %v265 = vunpack.c.l.b16 %v261
    %v266 = vunpack.c.l.b16 %v262
    %v267 = vpack.c.b16 %v266, %v265
    %v269 = vsel %vm48, %v267, 0
    %271 = vmatprep.subr.bf16.mxu0 0
    %272 = vmatpush1.bf16.msra.mxu0 %v44
    %273 = vmatprep.subr.bf16.mxu0 0
    %274 = vmatpush1.bf16.msra.mxu0 %v45
    %275 = vmatprep.subr.bf16.mxu0 0
    %276 = vmatpush1.bf16.msra.mxu0 0
    %277 = vmatprep.subr.bf16.mxu0 0
    %278 = vmatpush1.bf16.msra.mxu0 0
    %279 = vmatprep.subr.bf16.mxu0 0
    %280 = vmatpush1.bf16.msra.mxu0 0
    %281 = vmatprep.subr.bf16.mxu0 0
    %282 = vmatpush1.bf16.msra.mxu0 0
    %283 = vmatprep.subr.bf16.mxu0 0
    %284 = vmatpush1.bf16.msra.mxu0 0
    %285 = vmatprep.subr.bf16.mxu0 0
    %286 = vmatpush1.bf16.msra.mxu0 0
    %287 = vmatprep.subr.bf16.mxu0 0
    %288 = vmatpush1.bf16.msra.mxu0 0
    %289 = vmatprep.subr.bf16.mxu0 0
    %290 = vmatpush1.bf16.msra.mxu0 0
    %291 = vmatprep.subr.bf16.mxu0 0
    %292 = vmatpush1.bf16.msra.mxu0 0
    %293 = vmatprep.subr.bf16.mxu0 0
    %294 = vmatpush1.bf16.msra.mxu0 0
    %295 = vmatprep.subr.bf16.mxu0 0
    %296 = vmatpush1.bf16.msra.mxu0 0
    %297 = vmatprep.subr.bf16.mxu0 0
    %298 = vmatpush1.bf16.msra.mxu0 0
    %299 = vmatprep.subr.bf16.mxu0 0
    %300 = vmatpush1.bf16.msra.mxu0 0
    %301 = vmatprep.subr.bf16.mxu0 0
    %302 = vmatpush1.bf16.msra.mxu0 0
    %303 = vmatprep.mubr.bf16.mxu0 0
    %304 = vmatmul.mubr.bf16.gmra.mrb[0].mxu0 %v269
    %v305 = vpop.f32.mrb[0].mxu0
    %v306 = vadd.f32 0.0, %v305
    %v307 = vpop.f32.mrb[0].mxu0
    %v308 = vpop.f32.mrb[0].mxu0
    %v309 = vadd.f32 0.0, %v308
    %v310 = vpop.f32.mrb[0].mxu0
    %311 = vdwg.mxu0
    %v312 = vmax.f32 %v306, 0.0
    %v313 = vmax.f32 %v309, 0.0
    %v314 = vpack.c.bf16 %v313, %v312
    %s315 = scalar_lea.vmem %s1, 8
    %v316 = vld [vmem:[%s315] sm:$0xf]
    %v317 = vld [vmem:[%s315 + $0x4] sm:$0xf]
    %v320 = vunpack.c.l.b16 %v316
    %v321 = vunpack.c.l.b16 %v317
    %v322 = vpack.c.b16 %v321, %v320
    %v324 = vsel %vm120, %v322, 0
    %326 = vmatprep.subr.bf16.mxu0 0
    %327 = vmatpush1.bf16.msra.mxu0 %v126
    %328 = vmatprep.subr.bf16.mxu0 0
    %329 = vmatpush1.bf16.msra.mxu0 0
    %330 = vmatprep.subr.bf16.mxu0 0
    %331 = vmatpush1.bf16.msra.mxu0 0
    %332 = vmatprep.subr.bf16.mxu0 0
    %333 = vmatpush1.bf16.msra.mxu0 0
    %334 = vmatprep.subr.bf16.mxu0 0
    %335 = vmatpush1.bf16.msra.mxu0 0
    %336 = vmatprep.subr.bf16.mxu0 0
    %337 = vmatpush1.bf16.msra.mxu0 0
    %338 = vmatprep.subr.bf16.mxu0 0
    %339 = vmatpush1.bf16.msra.mxu0 0
    %340 = vmatprep.subr.bf16.mxu0 0
    %341 = vmatpush1.bf16.msra.mxu0 0
    %342 = vmatprep.subr.bf16.mxu0 0
    %343 = vmatpush1.bf16.msra.mxu0 0
    %344 = vmatprep.subr.bf16.mxu0 0
    %345 = vmatpush1.bf16.msra.mxu0 0
    %346 = vmatprep.subr.bf16.mxu0 0
    %347 = vmatpush1.bf16.msra.mxu0 0
    %348 = vmatprep.subr.bf16.mxu0 0
    %349 = vmatpush1.bf16.msra.mxu0 0
    %350 = vmatprep.subr.bf16.mxu0 0
    %351 = vmatpush1.bf16.msra.mxu0 0
    %352 = vmatprep.subr.bf16.mxu0 0
    %353 = vmatpush1.bf16.msra.mxu0 0
    %354 = vmatprep.subr.bf16.mxu0 0
    %355 = vmatpush1.bf16.msra.mxu0 0
    %356 = vmatprep.subr.bf16.mxu0 0
    %357 = vmatpush1.bf16.msra.mxu0 0
    %358 = vmatprep.mubr.bf16.mxu0 0
    %359 = vmatmul.mubr.bf16.gmra.mrb[0].mxu0 %v324
    %v360 = vpop.f32.mrb[0].mxu0
    %v361 = vadd.f32 0.0, %v360
    %v362 = vpop.f32.mrb[0].mxu0
    %v363 = vpop.f32.mrb[0].mxu0
    %v364 = vadd.f32 0.0, %v363
    %v365 = vpop.f32.mrb[0].mxu0
    %366 = vdwg.mxu0
    %367 = vmatprep.subr.bf16.mxu0 0
    %368 = vmatpush1.bf16.msra.mxu0 %v201
    %369 = vmatprep.subr.bf16.mxu0 0
    %370 = vmatpush1.bf16.msra.mxu0 %v202
    %371 = vmatprep.subr.bf16.mxu0 0
    %372 = vmatpush1.bf16.msra.mxu0 %v203
    %373 = vmatprep.subr.bf16.mxu0 0
    %374 = vmatpush1.bf16.msra.mxu0 %v204
    %375 = vmatprep.subr.bf16.mxu0 0
    %376 = vmatpush1.bf16.msra.mxu0 %v205
    %377 = vmatprep.subr.bf16.mxu0 0
    %378 = vmatpush1.bf16.msra.mxu0 %v206
    %379 = vmatprep.subr.bf16.mxu0 0
    %380 = vmatpush1.bf16.msra.mxu0 %v207
    %381 = vmatprep.subr.bf16.mxu0 0
    %382 = vmatpush1.bf16.msra.mxu0 %v208
    %383 = vmatprep.subr.bf16.mxu0 0
    %384 = vmatpush1.bf16.msra.mxu0 0
    %385 = vmatprep.subr.bf16.mxu0 0
    %386 = vmatpush1.bf16.msra.mxu0 0
    %387 = vmatprep.subr.bf16.mxu0 0
    %388 = vmatpush1.bf16.msra.mxu0 0
    %389 = vmatprep.subr.bf16.mxu0 0
    %390 = vmatpush1.bf16.msra.mxu0 0
    %391 = vmatprep.subr.bf16.mxu0 0
    %392 = vmatpush1.bf16.msra.mxu0 0
    %393 = vmatprep.subr.bf16.mxu0 0
    %394 = vmatpush1.bf16.msra.mxu0 0
    %395 = vmatprep.subr.bf16.mxu0 0
    %396 = vmatpush1.bf16.msra.mxu0 0
    %397 = vmatprep.subr.bf16.mxu0 0
    %398 = vmatpush1.bf16.msra.mxu0 0
    %399 = vmatprep.mubr.bf16.mxu0 0
    %400 = vmatmul.mubr.bf16.gmra.mrb[0].mxu0 %v314
    %v401 = vpop.f32.mrb[0].mxu0
    %v402 = vadd.f32 %v361, %v401
    %v403 = vpop.f32.mrb[0].mxu0
    %v404 = vpop.f32.mrb[0].mxu0
    %v405 = vadd.f32 %v364, %v404
    %v406 = vpop.f32.mrb[0].mxu0
    %407 = vdwg.mxu0
    %v408 = vmax.f32 %v258, %v402
    %v409 = vmax.f32 %v259, %v405
    %s410 = scalar_lea.vmem %s0, 16
    %v411 = vld [vmem:[%s410] sm:$0xf]
    %v412 = vld [vmem:[%s410 + $0x4] sm:$0xf]
    %v415 = vunpack.c.l.b16 %v411
    %v416 = vunpack.c.l.b16 %v412
    %v417 = vpack.c.b16 %v416, %v415
    %v419 = vsel %vm48, %v417, 0
    %421 = vmatprep.subr.bf16.mxu0 0
    %422 = vmatpush1.bf16.msra.mxu0 %v44
    %423 = vmatprep.subr.bf16.mxu0 0
    %424 = vmatpush1.bf16.msra.mxu0 %v45
    %425 = vmatprep.subr.bf16.mxu0 0
    %426 = vmatpush1.bf16.msra.mxu0 0
    %427 = vmatprep.subr.bf16.mxu0 0
    %428 = vmatpush1.bf16.msra.mxu0 0
    %429 = vmatprep.subr.bf16.mxu0 0
    %430 = vmatpush1.bf16.msra.mxu0 0
    %431 = vmatprep.subr.bf16.mxu0 0
    %432 = vmatpush1.bf16.msra.mxu0 0
    %433 = vmatprep.subr.bf16.mxu0 0
    %434 = vmatpush1.bf16.msra.mxu0 0
    %435 = vmatprep.subr.bf16.mxu0 0
    %436 = vmatpush1.bf16.msra.mxu0 0
    %437 = vmatprep.subr.bf16.mxu0 0
    %438 = vmatpush1.bf16.msra.mxu0 0
    %439 = vmatprep.subr.bf16.mxu0 0
    %440 = vmatpush1.bf16.msra.mxu0 0
    %441 = vmatprep.subr.bf16.mxu0 0
    %442 = vmatpush1.bf16.msra.mxu0 0
    %443 = vmatprep.subr.bf16.mxu0 0
    %444 = vmatpush1.bf16.msra.mxu0 0
    %445 = vmatprep.subr.bf16.mxu0 0
    %446 = vmatpush1.bf16.msra.mxu0 0
    %447 = vmatprep.subr.bf16.mxu0 0
    %448 = vmatpush1.bf16.msra.mxu0 0
    %449 = vmatprep.subr.bf16.mxu0 0
    %450 = vmatpush1.bf16.msra.mxu0 0
    %451 = vmatprep.subr.bf16.mxu0 0
    %452 = vmatpush1.bf16.msra.mxu0 0
    %453 = vmatprep.mubr.bf16.mxu0 0
    %454 = vmatmul.mubr.bf16.gmra.mrb[0].mxu0 %v419
    %v455 = vpop.f32.mrb[0].mxu0
    %v456 = vadd.f32 0.0, %v455
    %v457 = vpop.f32.mrb[0].mxu0
    %v458 = vpop.f32.mrb[0].mxu0
    %v459 = vadd.f32 0.0, %v458
    %v460 = vpop.f32.mrb[0].mxu0
    %461 = vdwg.mxu0
    %v462 = vmax.f32 %v456, 0.0
    %v463 = vmax.f32 %v459, 0.0
    %v464 = vpack.c.bf16 %v463, %v462
    %s465 = scalar_lea.vmem %s1, 16
    %v466 = vld [vmem:[%s465] sm:$0xf]
    %v467 = vld [vmem:[%s465 + $0x4] sm:$0xf]
    %v470 = vunpack.c.l.b16 %v466
    %v471 = vunpack.c.l.b16 %v467
    %v472 = vpack.c.b16 %v471, %v470
    %v474 = vsel %vm120, %v472, 0
    %476 = vmatprep.subr.bf16.mxu0 0
    %477 = vmatpush1.bf16.msra.mxu0 %v126
    %478 = vmatprep.subr.bf16.mxu0 0
    %479 = vmatpush1.bf16.msra.mxu0 0
    %480 = vmatprep.subr.bf16.mxu0 0
    %481 = vmatpush1.bf16.msra.mxu0 0
    %482 = vmatprep.subr.bf16.mxu0 0
    %483 = vmatpush1.bf16.msra.mxu0 0
    %484 = vmatprep.subr.bf16.mxu0 0
    %485 = vmatpush1.bf16.msra.mxu0 0
    %486 = vmatprep.subr.bf16.mxu0 0
    %487 = vmatpush1.bf16.msra.mxu0 0
    %488 = vmatprep.subr.bf16.mxu0 0
    %489 = vmatpush1.bf16.msra.mxu0 0
    %490 = vmatprep.subr.bf16.mxu0 0
    %491 = vmatpush1.bf16.msra.mxu0 0
    %492 = vmatprep.subr.bf16.mxu0 0
    %493 = vmatpush1.bf16.msra.mxu0 0
    %494 = vmatprep.subr.bf16.mxu0 0
    %495 = vmatpush1.bf16.msra.mxu0 0
    %496 = vmatprep.subr.bf16.mxu0 0
    %497 = vmatpush1.bf16.msra.mxu0 0
    %498 = vmatprep.subr.bf16.mxu0 0
    %499 = vmatpush1.bf16.msra.mxu0 0
    %500 = vmatprep.subr.bf16.mxu0 0
    %501 = vmatpush1.bf16.msra.mxu0 0
    %502 = vmatprep.subr.bf16.mxu0 0
    %503 = vmatpush1.bf16.msra.mxu0 0
    %504 = vmatprep.subr.bf16.mxu0 0
    %505 = vmatpush1.bf16.msra.mxu0 0
    %506 = vmatprep.subr.bf16.mxu0 0
    %507 = vmatpush1.bf16.msra.mxu0 0
    %508 = vmatprep.mubr.bf16.mxu0 0
    %509 = vmatmul.mubr.bf16.gmra.mrb[0].mxu0 %v474
    %v510 = vpop.f32.mrb[0].mxu0
    %v511 = vadd.f32 0.0, %v510
    %v512 = vpop.f32.mrb[0].mxu0
    %v513 = vpop.f32.mrb[0].mxu0
    %v514 = vadd.f32 0.0, %v513
    %v515 = vpop.f32.mrb[0].mxu0
    %516 = vdwg.mxu0
    %517 = vmatprep.subr.bf16.mxu0 0
    %518 = vmatpush1.bf16.msra.mxu0 %v201
    %519 = vmatprep.subr.bf16.mxu0 0
    %520 = vmatpush1.bf16.msra.mxu0 %v202
    %521 = vmatprep.subr.bf16.mxu0 0
    %522 = vmatpush1.bf16.msra.mxu0 %v203
    %523 = vmatprep.subr.bf16.mxu0 0
    %524 = vmatpush1.bf16.msra.mxu0 %v204
    %525 = vmatprep.subr.bf16.mxu0 0
    %526 = vmatpush1.bf16.msra.mxu0 %v205
    %527 = vmatprep.subr.bf16.mxu0 0
    %528 = vmatpush1.bf16.msra.mxu0 %v206
    %529 = vmatprep.subr.bf16.mxu0 0
    %530 = vmatpush1.bf16.msra.mxu0 %v207
    %531 = vmatprep.subr.bf16.mxu0 0
    %532 = vmatpush1.bf16.msra.mxu0 %v208
    %533 = vmatprep.subr.bf16.mxu0 0
    %534 = vmatpush1.bf16.msra.mxu0 0
    %535 = vmatprep.subr.bf16.mxu0 0
    %536 = vmatpush1.bf16.msra.mxu0 0
    %537 = vmatprep.subr.bf16.mxu0 0
    %538 = vmatpush1.bf16.msra.mxu0 0
    %539 = vmatprep.subr.bf16.mxu0 0
    %540 = vmatpush1.bf16.msra.mxu0 0
    %541 = vmatprep.subr.bf16.mxu0 0
    %542 = vmatpush1.bf16.msra.mxu0 0
    %543 = vmatprep.subr.bf16.mxu0 0
    %544 = vmatpush1.bf16.msra.mxu0 0
    %545 = vmatprep.subr.bf16.mxu0 0
    %546 = vmatpush1.bf16.msra.mxu0 0
    %547 = vmatprep.subr.bf16.mxu0 0
    %548 = vmatpush1.bf16.msra.mxu0 0
    %549 = vmatprep.mubr.bf16.mxu0 0
    %550 = vmatmul.mubr.bf16.gmra.mrb[0].mxu0 %v464
    %v551 = vpop.f32.mrb[0].mxu0
    %v552 = vadd.f32 %v511, %v551
    %v553 = vpop.f32.mrb[0].mxu0
    %v554 = vpop.f32.mrb[0].mxu0
    %v555 = vadd.f32 %v514, %v554
    %v556 = vpop.f32.mrb[0].mxu0
    %557 = vdwg.mxu0
    %v558 = vmax.f32 %v408, %v552
    %v559 = vmax.f32 %v409, %v555
    %s560 = scalar_lea.vmem %s0, 24
    %v561 = vld [vmem:[%s560] sm:$0xf]
    %v562 = vld [vmem:[%s560 + $0x4] sm:$0xf]
    %v565 = vunpack.c.l.b16 %v561
    %v566 = vunpack.c.l.b16 %v562
    %v567 = vpack.c.b16 %v566, %v565
    %v569 = vsel %vm48, %v567, 0
    %571 = vmatprep.subr.bf16.mxu0 0
    %572 = vmatpush1.bf16.msra.mxu0 %v44
    %573 = vmatprep.subr.bf16.mxu0 0
    %574 = vmatpush1.bf16.msra.mxu0 %v45
    %575 = vmatprep.subr.bf16.mxu0 0
    %576 = vmatpush1.bf16.msra.mxu0 0
    %577 = vmatprep.subr.bf16.mxu0 0
    %578 = vmatpush1.bf16.msra.mxu0 0
    %579 = vmatprep.subr.bf16.mxu0 0
    %580 = vmatpush1.bf16.msra.mxu0 0
    %581 = vmatprep.subr.bf16.mxu0 0
    %582 = vmatpush1.bf16.msra.mxu0 0
    %583 = vmatprep.subr.bf16.mxu0 0
    %584 = vmatpush1.bf16.msra.mxu0 0
    %585 = vmatprep.subr.bf16.mxu0 0
    %586 = vmatpush1.bf16.msra.mxu0 0
    %587 = vmatprep.subr.bf16.mxu0 0
    %588 = vmatpush1.bf16.msra.mxu0 0
    %589 = vmatprep.subr.bf16.mxu0 0
    %590 = vmatpush1.bf16.msra.mxu0 0
    %591 = vmatprep.subr.bf16.mxu0 0
    %592 = vmatpush1.bf16.msra.mxu0 0
    %593 = vmatprep.subr.bf16.mxu0 0
    %594 = vmatpush1.bf16.msra.mxu0 0
    %595 = vmatprep.subr.bf16.mxu0 0
    %596 = vmatpush1.bf16.msra.mxu0 0
    %597 = vmatprep.subr.bf16.mxu0 0
    %598 = vmatpush1.bf16.msra.mxu0 0
    %599 = vmatprep.subr.bf16.mxu0 0
    %600 = vmatpush1.bf16.msra.mxu0 0
    %601 = vmatprep.subr.bf16.mxu0 0
    %602 = vmatpush1.bf16.msra.mxu0 0
    %603 = vmatprep.mubr.bf16.mxu0 0
    %604 = vmatmul.mubr.bf16.gmra.mrb[0].mxu0 %v569
    %v605 = vpop.f32.mrb[0].mxu0
    %v606 = vadd.f32 0.0, %v605
    %v607 = vpop.f32.mrb[0].mxu0
    %v608 = vpop.f32.mrb[0].mxu0
    %v609 = vadd.f32 0.0, %v608
    %v610 = vpop.f32.mrb[0].mxu0
    %611 = vdwg.mxu0
    %v612 = vmax.f32 %v606, 0.0
    %v613 = vmax.f32 %v609, 0.0
    %v614 = vpack.c.bf16 %v613, %v612
    %s615 = scalar_lea.vmem %s1, 24
    %v616 = vld [vmem:[%s615] sm:$0xf]
    %v617 = vld [vmem:[%s615 + $0x4] sm:$0xf]
    %v620 = vunpack.c.l.b16 %v616
    %v621 = vunpack.c.l.b16 %v617
    %v622 = vpack.c.b16 %v621, %v620
    %v624 = vsel %vm120, %v622, 0
    %626 = vmatprep.subr.bf16.mxu0 0
    %627 = vmatpush1.bf16.msra.mxu0 %v126
    %628 = vmatprep.subr.bf16.mxu0 0
    %629 = vmatpush1.bf16.msra.mxu0 0
    %630 = vmatprep.subr.bf16.mxu0 0
    %631 = vmatpush1.bf16.msra.mxu0 0
    %632 = vmatprep.subr.bf16.mxu0 0
    %633 = vmatpush1.bf16.msra.mxu0 0
    %634 = vmatprep.subr.bf16.mxu0 0
    %635 = vmatpush1.bf16.msra.mxu0 0
    %636 = vmatprep.subr.bf16.mxu0 0
    %637 = vmatpush1.bf16.msra.mxu0 0
    %638 = vmatprep.subr.bf16.mxu0 0
    %639 = vmatpush1.bf16.msra.mxu0 0
    %640 = vmatprep.subr.bf16.mxu0 0
    %641 = vmatpush1.bf16.msra.mxu0 0
    %642 = vmatprep.subr.bf16.mxu0 0
    %643 = vmatpush1.bf16.msra.mxu0 0
    %644 = vmatprep.subr.bf16.mxu0 0
    %645 = vmatpush1.bf16.msra.mxu0 0
    %646 = vmatprep.subr.bf16.mxu0 0
    %647 = vmatpush1.bf16.msra.mxu0 0
    %648 = vmatprep.subr.bf16.mxu0 0
    %649 = vmatpush1.bf16.msra.mxu0 0
    %650 = vmatprep.subr.bf16.mxu0 0
    %651 = vmatpush1.bf16.msra.mxu0 0
    %652 = vmatprep.subr.bf16.mxu0 0
    %653 = vmatpush1.bf16.msra.mxu0 0
    %654 = vmatprep.subr.bf16.mxu0 0
    %655 = vmatpush1.bf16.msra.mxu0 0
    %656 = vmatprep.subr.bf16.mxu0 0
    %657 = vmatpush1.bf16.msra.mxu0 0
    %658 = vmatprep.mubr.bf16.mxu0 0
    %659 = vmatmul.mubr.bf16.gmra.mrb[0].mxu0 %v624
    %v660 = vpop.f32.mrb[0].mxu0
    %v661 = vadd.f32 0.0, %v660
    %v662 = vpop.f32.mrb[0].mxu0
    %v663 = vpop.f32.mrb[0].mxu0
    %v664 = vadd.f32 0.0, %v663
    %v665 = vpop.f32.mrb[0].mxu0
    %666 = vdwg.mxu0
    %667 = vmatprep.subr.bf16.mxu0 0
    %668 = vmatpush1.bf16.msra.mxu0 %v201
    %669 = vmatprep.subr.bf16.mxu0 0
    %670 = vmatpush1.bf16.msra.mxu0 %v202
    %671 = vmatprep.subr.bf16.mxu0 0
    %672 = vmatpush1.bf16.msra.mxu0 %v203
    %673 = vmatprep.subr.bf16.mxu0 0
    %674 = vmatpush1.bf16.msra.mxu0 %v204
    %675 = vmatprep.subr.bf16.mxu0 0
    %676 = vmatpush1.bf16.msra.mxu0 %v205
    %677 = vmatprep.subr.bf16.mxu0 0
    %678 = vmatpush1.bf16.msra.mxu0 %v206
    %679 = vmatprep.subr.bf16.mxu0 0
    %680 = vmatpush1.bf16.msra.mxu0 %v207
    %681 = vmatprep.subr.bf16.mxu0 0
    %682 = vmatpush1.bf16.msra.mxu0 %v208
    %683 = vmatprep.subr.bf16.mxu0 0
    %684 = vmatpush1.bf16.msra.mxu0 0
    %685 = vmatprep.subr.bf16.mxu0 0
    %686 = vmatpush1.bf16.msra.mxu0 0
    %687 = vmatprep.subr.bf16.mxu0 0
    %688 = vmatpush1.bf16.msra.mxu0 0
    %689 = vmatprep.subr.bf16.mxu0 0
    %690 = vmatpush1.bf16.msra.mxu0 0
    %691 = vmatprep.subr.bf16.mxu0 0
    %692 = vmatpush1.bf16.msra.mxu0 0
    %693 = vmatprep.subr.bf16.mxu0 0
    %694 = vmatpush1.bf16.msra.mxu0 0
    %695 = vmatprep.subr.bf16.mxu0 0
    %696 = vmatpush1.bf16.msra.mxu0 0
    %697 = vmatprep.subr.bf16.mxu0 0
    %698 = vmatpush1.bf16.msra.mxu0 0
    %699 = vmatprep.mubr.bf16.mxu0 0
    %700 = vmatmul.mubr.bf16.gmra.mrb[0].mxu0 %v614
    %v701 = vpop.f32.mrb[0].mxu0
    %v702 = vadd.f32 %v661, %v701
    %v703 = vpop.f32.mrb[0].mxu0
    %v704 = vpop.f32.mrb[0].mxu0
    %v705 = vadd.f32 %v664, %v704
    %v706 = vpop.f32.mrb[0].mxu0
    %707 = vdwg.mxu0
    %v708 = vmax.f32 %v558, %v702
    %v709 = vmax.f32 %v559, %v705
    %s710 = scalar_lea.vmem %s0, 32
    %v711 = vld [vmem:[%s710] sm:$0xf]
    %v712 = vld [vmem:[%s710 + $0x4] sm:$0xf]
    %v715 = vunpack.c.l.b16 %v711
    %v716 = vunpack.c.l.b16 %v712
    %v717 = vpack.c.b16 %v716, %v715
    %v719 = vsel %vm48, %v717, 0
    %721 = vmatprep.subr.bf16.mxu0 0
    %722 = vmatpush1.bf16.msra.mxu0 %v44
    %723 = vmatprep.subr.bf16.mxu0 0
    %724 = vmatpush1.bf16.msra.mxu0 %v45
    %725 = vmatprep.subr.bf16.mxu0 0
    %726 = vmatpush1.bf16.msra.mxu0 0
    %727 = vmatprep.subr.bf16.mxu0 0
    %728 = vmatpush1.bf16.msra.mxu0 0
    %729 = vmatprep.subr.bf16.mxu0 0
    %730 = vmatpush1.bf16.msra.mxu0 0
    %731 = vmatprep.subr.bf16.mxu0 0
    %732 = vmatpush1.bf16.msra.mxu0 0
    %733 = vmatprep.subr.bf16.mxu0 0
    %734 = vmatpush1.bf16.msra.mxu0 0
    %735 = vmatprep.subr.bf16.mxu0 0
    %736 = vmatpush1.bf16.msra.mxu0 0
    %737 = vmatprep.subr.bf16.mxu0 0
    %738 = vmatpush1.bf16.msra.mxu0 0
    %739 = vmatprep.subr.bf16.mxu0 0
    %740 = vmatpush1.bf16.msra.mxu0 0
    %741 = vmatprep.subr.bf16.mxu0 0
    %742 = vmatpush1.bf16.msra.mxu0 0
    %743 = vmatprep.subr.bf16.mxu0 0
    %744 = vmatpush1.bf16.msra.mxu0 0
    %745 = vmatprep.subr.bf16.mxu0 0
    %746 = vmatpush1.bf16.msra.mxu0 0
    %747 = vmatprep.subr.bf16.mxu0 0
    %748 = vmatpush1.bf16.msra.mxu0 0
    %749 = vmatprep.subr.bf16.mxu0 0
    %750 = vmatpush1.bf16.msra.mxu0 0
    %751 = vmatprep.subr.bf16.mxu0 0
    %752 = vmatpush1.bf16.msra.mxu0 0
    %753 = vmatprep.mubr.bf16.mxu0 0
    %754 = vmatmul.mubr.bf16.gmra.mrb[0].mxu0 %v719
    %v755 = vpop.f32.mrb[0].mxu0
    %v756 = vadd.f32 0.0, %v755
    %v757 = vpop.f32.mrb[0].mxu0
    %v758 = vpop.f32.mrb[0].mxu0
    %v759 = vadd.f32 0.0, %v758
    %v760 = vpop.f32.mrb[0].mxu0
    %761 = vdwg.mxu0
    %v762 = vmax.f32 %v756, 0.0
    %v763 = vmax.f32 %v759, 0.0
    %v764 = vpack.c.bf16 %v763, %v762
    %s765 = scalar_lea.vmem %s1, 32
    %v766 = vld [vmem:[%s765] sm:$0xf]
    %v767 = vld [vmem:[%s765 + $0x4] sm:$0xf]
    %v770 = vunpack.c.l.b16 %v766
    %v771 = vunpack.c.l.b16 %v767
    %v772 = vpack.c.b16 %v771, %v770
    %v774 = vsel %vm120, %v772, 0
    %776 = vmatprep.subr.bf16.mxu0 0
    %777 = vmatpush1.bf16.msra.mxu0 %v126
    %778 = vmatprep.subr.bf16.mxu0 0
    %779 = vmatpush1.bf16.msra.mxu0 0
    %780 = vmatprep.subr.bf16.mxu0 0
    %781 = vmatpush1.bf16.msra.mxu0 0
    %782 = vmatprep.subr.bf16.mxu0 0
    %783 = vmatpush1.bf16.msra.mxu0 0
    %784 = vmatprep.subr.bf16.mxu0 0
    %785 = vmatpush1.bf16.msra.mxu0 0
    %786 = vmatprep.subr.bf16.mxu0 0
    %787 = vmatpush1.bf16.msra.mxu0 0
    %788 = vmatprep.subr.bf16.mxu0 0
    %789 = vmatpush1.bf16.msra.mxu0 0
    %790 = vmatprep.subr.bf16.mxu0 0
    %791 = vmatpush1.bf16.msra.mxu0 0
    %792 = vmatprep.subr.bf16.mxu0 0
    %793 = vmatpush1.bf16.msra.mxu0 0
    %794 = vmatprep.subr.bf16.mxu0 0
    %795 = vmatpush1.bf16.msra.mxu0 0
    %796 = vmatprep.subr.bf16.mxu0 0
    %797 = vmatpush1.bf16.msra.mxu0 0
    %798 = vmatprep.subr.bf16.mxu0 0
    %799 = vmatpush1.bf16.msra.mxu0 0
    %800 = vmatprep.subr.bf16.mxu0 0
    %801 = vmatpush1.bf16.msra.mxu0 0
    %802 = vmatprep.subr.bf16.mxu0 0
    %803 = vmatpush1.bf16.msra.mxu0 0
    %804 = vmatprep.subr.bf16.mxu0 0
    %805 = vmatpush1.bf16.msra.mxu0 0
    %806 = vmatprep.subr.bf16.mxu0 0
    %807 = vmatpush1.bf16.msra.mxu0 0
    %808 = vmatprep.mubr.bf16.mxu0 0
    %809 = vmatmul.mubr.bf16.gmra.mrb[0].mxu0 %v774
    %v810 = vpop.f32.mrb[0].mxu0
    %v811 = vadd.f32 0.0, %v810
    %v812 = vpop.f32.mrb[0].mxu0
    %v813 = vpop.f32.mrb[0].mxu0
    %v814 = vadd.f32 0.0, %v813
    %v815 = vpop.f32.mrb[0].mxu0
    %816 = vdwg.mxu0
    %817 = vmatprep.subr.bf16.mxu0 0
    %818 = vmatpush1.bf16.msra.mxu0 %v201
    %819 = vmatprep.subr.bf16.mxu0 0
    %820 = vmatpush1.bf16.msra.mxu0 %v202
    %821 = vmatprep.subr.bf16.mxu0 0
    %822 = vmatpush1.bf16.msra.mxu0 %v203
    %823 = vmatprep.subr.bf16.mxu0 0
    %824 = vmatpush1.bf16.msra.mxu0 %v204
    %825 = vmatprep.subr.bf16.mxu0 0
    %826 = vmatpush1.bf16.msra.mxu0 %v205
    %827 = vmatprep.subr.bf16.mxu0 0
    %828 = vmatpush1.bf16.msra.mxu0 %v206
    %829 = vmatprep.subr.bf16.mxu0 0
    %830 = vmatpush1.bf16.msra.mxu0 %v207
    %831 = vmatprep.subr.bf16.mxu0 0
    %832 = vmatpush1.bf16.msra.mxu0 %v208
    %833 = vmatprep.subr.bf16.mxu0 0
    %834 = vmatpush1.bf16.msra.mxu0 0
    %835 = vmatprep.subr.bf16.mxu0 0
    %836 = vmatpush1.bf16.msra.mxu0 0
    %837 = vmatprep.subr.bf16.mxu0 0
    %838 = vmatpush1.bf16.msra.mxu0 0
    %839 = vmatprep.subr.bf16.mxu0 0
    %840 = vmatpush1.bf16.msra.mxu0 0
    %841 = vmatprep.subr.bf16.mxu0 0
    %842 = vmatpush1.bf16.msra.mxu0 0
    %843 = vmatprep.subr.bf16.mxu0 0
    %844 = vmatpush1.bf16.msra.mxu0 0
    %845 = vmatprep.subr.bf16.mxu0 0
    %846 = vmatpush1.bf16.msra.mxu0 0
    %847 = vmatprep.subr.bf16.mxu0 0
    %848 = vmatpush1.bf16.msra.mxu0 0
    %849 = vmatprep.mubr.bf16.mxu0 0
    %850 = vmatmul.mubr.bf16.gmra.mrb[0].mxu0 %v764
    %v851 = vpop.f32.mrb[0].mxu0
    %v852 = vadd.f32 %v811, %v851
    %v853 = vpop.f32.mrb[0].mxu0
    %v854 = vpop.f32.mrb[0].mxu0
    %v855 = vadd.f32 %v814, %v854
    %v856 = vpop.f32.mrb[0].mxu0
    %857 = vdwg.mxu0
    %v858 = vmax.f32 %v708, %v852
    %v859 = vmax.f32 %v709, %v855
    %s860 = scalar_lea.vmem %s0, 40
    %v861 = vld [vmem:[%s860] sm:$0xf]
    %v862 = vld [vmem:[%s860 + $0x4] sm:$0xf]
    %v865 = vunpack.c.l.b16 %v861
    %v866 = vunpack.c.l.b16 %v862
    %v867 = vpack.c.b16 %v866, %v865
    %v869 = vsel %vm48, %v867, 0
    %871 = vmatprep.subr.bf16.mxu0 0
    %872 = vmatpush1.bf16.msra.mxu0 %v44
    %873 = vmatprep.subr.bf16.mxu0 0
    %874 = vmatpush1.bf16.msra.mxu0 %v45
    %875 = vmatprep.subr.bf16.mxu0 0
    %876 = vmatpush1.bf16.msra.mxu0 0
    %877 = vmatprep.subr.bf16.mxu0 0
    %878 = vmatpush1.bf16.msra.mxu0 0
    %879 = vmatprep.subr.bf16.mxu0 0
    %880 = vmatpush1.bf16.msra.mxu0 0
    %881 = vmatprep.subr.bf16.mxu0 0
    %882 = vmatpush1.bf16.msra.mxu0 0
    %883 = vmatprep.subr.bf16.mxu0 0
    %884 = vmatpush1.bf16.msra.mxu0 0
    %885 = vmatprep.subr.bf16.mxu0 0
    %886 = vmatpush1.bf16.msra.mxu0 0
    %887 = vmatprep.subr.bf16.mxu0 0
    %888 = vmatpush1.bf16.msra.mxu0 0
    %889 = vmatprep.subr.bf16.mxu0 0
    %890 = vmatpush1.bf16.msra.mxu0 0
    %891 = vmatprep.subr.bf16.mxu0 0
    %892 = vmatpush1.bf16.msra.mxu0 0
    %893 = vmatprep.subr.bf16.mxu0 0
    %894 = vmatpush1.bf16.msra.mxu0 0
    %895 = vmatprep.subr.bf16.mxu0 0
    %896 = vmatpush1.bf16.msra.mxu0 0
    %897 = vmatprep.subr.bf16.mxu0 0
    %898 = vmatpush1.bf16.msra.mxu0 0
    %899 = vmatprep.subr.bf16.mxu0 0
    %900 = vmatpush1.bf16.msra.mxu0 0
    %901 = vmatprep.subr.bf16.mxu0 0
    %902 = vmatpush1.bf16.msra.mxu0 0
    %903 = vmatprep.mubr.bf16.mxu0 0
    %904 = vmatmul.mubr.bf16.gmra.mrb[0].mxu0 %v869
    %v905 = vpop.f32.mrb[0].mxu0
    %v906 = vadd.f32 0.0, %v905
    %v907 = vpop.f32.mrb[0].mxu0
    %v908 = vpop.f32.mrb[0].mxu0
    %v909 = vadd.f32 0.0, %v908
    %v910 = vpop.f32.mrb[0].mxu0
    %911 = vdwg.mxu0
    %v912 = vmax.f32 %v906, 0.0
    %v913 = vmax.f32 %v909, 0.0
    %v914 = vpack.c.bf16 %v913, %v912
    %s915 = scalar_lea.vmem %s1, 40
    %v916 = vld [vmem:[%s915] sm:$0xf]
    %v917 = vld [vmem:[%s915 + $0x4] sm:$0xf]
    %v920 = vunpack.c.l.b16 %v916
    %v921 = vunpack.c.l.b16 %v917
    %v922 = vpack.c.b16 %v921, %v920
    %v924 = vsel %vm120, %v922, 0
    %926 = vmatprep.subr.bf16.mxu0 0
    %927 = vmatpush1.bf16.msra.mxu0 %v126
    %928 = vmatprep.subr.bf16.mxu0 0
    %929 = vmatpush1.bf16.msra.mxu0 0
    %930 = vmatprep.subr.bf16.mxu0 0
    %931 = vmatpush1.bf16.msra.mxu0 0
    %932 = vmatprep.subr.bf16.mxu0 0
    %933 = vmatpush1.bf16.msra.mxu0 0
    %934 = vmatprep.subr.bf16.mxu0 0
    %935 = vmatpush1.bf16.msra.mxu0 0
    %936 = vmatprep.subr.bf16.mxu0 0
    %937 = vmatpush1.bf16.msra.mxu0 0
    %938 = vmatprep.subr.bf16.mxu0 0
    %939 = vmatpush1.bf16.msra.mxu0 0
    %940 = vmatprep.subr.bf16.mxu0 0
    %941 = vmatpush1.bf16.msra.mxu0 0
    %942 = vmatprep.subr.bf16.mxu0 0
    %943 = vmatpush1.bf16.msra.mxu0 0
    %944 = vmatprep.subr.bf16.mxu0 0
    %945 = vmatpush1.bf16.msra.mxu0 0
    %946 = vmatprep.subr.bf16.mxu0 0
    %947 = vmatpush1.bf16.msra.mxu0 0
    %948 = vmatprep.subr.bf16.mxu0 0
    %949 = vmatpush1.bf16.msra.mxu0 0
    %950 = vmatprep.subr.bf16.mxu0 0
    %951 = vmatpush1.bf16.msra.mxu0 0
    %952 = vmatprep.subr.bf16.mxu0 0
    %953 = vmatpush1.bf16.msra.mxu0 0
    %954 = vmatprep.subr.bf16.mxu0 0
    %955 = vmatpush1.bf16.msra.mxu0 0
    %956 = vmatprep.subr.bf16.mxu0 0
    %957 = vmatpush1.bf16.msra.mxu0 0
    %958 = vmatprep.mubr.bf16.mxu0 0
    %959 = vmatmul.mubr.bf16.gmra.mrb[0].mxu0 %v924
    %v960 = vpop.f32.mrb[0].mxu0
    %v961 = vadd.f32 0.0, %v960
    %v962 = vpop.f32.mrb[0].mxu0
    %v963 = vpop.f32.mrb[0].mxu0
    %v964 = vadd.f32 0.0, %v963
    %v965 = vpop.f32.mrb[0].mxu0
    %966 = vdwg.mxu0
    %967 = vmatprep.subr.bf16.mxu0 0
    %968 = vmatpush1.bf16.msra.mxu0 %v201
    %969 = vmatprep.subr.bf16.mxu0 0
    %970 = vmatpush1.bf16.msra.mxu0 %v202
    %971 = vmatprep.subr.bf16.mxu0 0
    %972 = vmatpush1.bf16.msra.mxu0 %v203
    %973 = vmatprep.subr.bf16.mxu0 0
    %974 = vmatpush1.bf16.msra.mxu0 %v204
    %975 = vmatprep.subr.bf16.mxu0 0
    %976 = vmatpush1.bf16.msra.mxu0 %v205
    %977 = vmatprep.subr.bf16.mxu0 0
    %978 = vmatpush1.bf16.msra.mxu0 %v206
    %979 = vmatprep.subr.bf16.mxu0 0
    %980 = vmatpush1.bf16.msra.mxu0 %v207
    %981 = vmatprep.subr.bf16.mxu0 0
    %982 = vmatpush1.bf16.msra.mxu0 %v208
    %983 = vmatprep.subr.bf16.mxu0 0
    %984 = vmatpush1.bf16.msra.mxu0 0
    %985 = vmatprep.subr.bf16.mxu0 0
    %986 = vmatpush1.bf16.msra.mxu0 0
    %987 = vmatprep.subr.bf16.mxu0 0
    %988 = vmatpush1.bf16.msra.mxu0 0
    %989 = vmatprep.subr.bf16.mxu0 0
    %990 = vmatpush1.bf16.msra.mxu0 0
    %991 = vmatprep.subr.bf16.mxu0 0
    %992 = vmatpush1.bf16.msra.mxu0 0
    %993 = vmatprep.subr.bf16.mxu0 0
    %994 = vmatpush1.bf16.msra.mxu0 0
    %995 = vmatprep.subr.bf16.mxu0 0
    %996 = vmatpush1.bf16.msra.mxu0 0
    %997 = vmatprep.subr.bf16.mxu0 0
    %998 = vmatpush1.bf16.msra.mxu0 0
    %999 = vmatprep.mubr.bf16.mxu0 0
    %1000 = vmatmul.mubr.bf16.gmra.mrb[0].mxu0 %v914
    %v1001 = vpop.f32.mrb[0].mxu0
    %v1002 = vadd.f32 %v961, %v1001
    %v1003 = vpop.f32.mrb[0].mxu0
    %v1004 = vpop.f32.mrb[0].mxu0
    %v1005 = vadd.f32 %v964, %v1004
    %v1006 = vpop.f32.mrb[0].mxu0
    %1007 = vdwg.mxu0
    %v1008 = vmax.f32 %v858, %v1002
    %v1009 = vmax.f32 %v859, %v1005
    %s1010 = scalar_lea.vmem %s0, 48
    %v1011 = vld [vmem:[%s1010] sm:$0xf]
    %v1012 = vld [vmem:[%s1010 + $0x4] sm:$0xf]
    %v1015 = vunpack.c.l.b16 %v1011
    %v1016 = vunpack.c.l.b16 %v1012
    %v1017 = vpack.c.b16 %v1016, %v1015
    %v1019 = vsel %vm48, %v1017, 0
    %1021 = vmatprep.subr.bf16.mxu0 0
    %1022 = vmatpush1.bf16.msra.mxu0 %v44
    %1023 = vmatprep.subr.bf16.mxu0 0
    %1024 = vmatpush1.bf16.msra.mxu0 %v45
    %1025 = vmatprep.subr.bf16.mxu0 0
    %1026 = vmatpush1.bf16.msra.mxu0 0
    %1027 = vmatprep.subr.bf16.mxu0 0
    %1028 = vmatpush1.bf16.msra.mxu0 0
    %1029 = vmatprep.subr.bf16.mxu0 0
    %1030 = vmatpush1.bf16.msra.mxu0 0
    %1031 = vmatprep.subr.bf16.mxu0 0
    %1032 = vmatpush1.bf16.msra.mxu0 0
    %1033 = vmatprep.subr.bf16.mxu0 0
    %1034 = vmatpush1.bf16.msra.mxu0 0
    %1035 = vmatprep.subr.bf16.mxu0 0
    %1036 = vmatpush1.bf16.msra.mxu0 0
    %1037 = vmatprep.subr.bf16.mxu0 0
    %1038 = vmatpush1.bf16.msra.mxu0 0
    %1039 = vmatprep.subr.bf16.mxu0 0
    %1040 = vmatpush1.bf16.msra.mxu0 0
    %1041 = vmatprep.subr.bf16.mxu0 0
    %1042 = vmatpush1.bf16.msra.mxu0 0
    %1043 = vmatprep.subr.bf16.mxu0 0
    %1044 = vmatpush1.bf16.msra.mxu0 0
    %1045 = vmatprep.subr.bf16.mxu0 0
    %1046 = vmatpush1.bf16.msra.mxu0 0
    %1047 = vmatprep.subr.bf16.mxu0 0
    %1048 = vmatpush1.bf16.msra.mxu0 0
    %1049 = vmatprep.subr.bf16.mxu0 0
    %1050 = vmatpush1.bf16.msra.mxu0 0
    %1051 = vmatprep.subr.bf16.mxu0 0
    %1052 = vmatpush1.bf16.msra.mxu0 0
    %1053 = vmatprep.mubr.bf16.mxu0 0
    %1054 = vmatmul.mubr.bf16.gmra.mrb[0].mxu0 %v1019
    %v1055 = vpop.f32.mrb[0].mxu0
    %v1056 = vadd.f32 0.0, %v1055
    %v1057 = vpop.f32.mrb[0].mxu0
    %v1058 = vpop.f32.mrb[0].mxu0
    %v1059 = vadd.f32 0.0, %v1058
    %v1060 = vpop.f32.mrb[0].mxu0
    %1061 = vdwg.mxu0
    %v1062 = vmax.f32 %v1056, 0.0
    %v1063 = vmax.f32 %v1059, 0.0
    %v1064 = vpack.c.bf16 %v1063, %v1062
    %s1065 = scalar_lea.vmem %s1, 48
    %v1066 = vld [vmem:[%s1065] sm:$0xf]
    %v1067 = vld [vmem:[%s1065 + $0x4] sm:$0xf]
    %v1070 = vunpack.c.l.b16 %v1066
    %v1071 = vunpack.c.l.b16 %v1067
    %v1072 = vpack.c.b16 %v1071, %v1070
    %v1074 = vsel %vm120, %v1072, 0
    %1076 = vmatprep.subr.bf16.mxu0 0
    %1077 = vmatpush1.bf16.msra.mxu0 %v126
    %1078 = vmatprep.subr.bf16.mxu0 0
    %1079 = vmatpush1.bf16.msra.mxu0 0
    %1080 = vmatprep.subr.bf16.mxu0 0
    %1081 = vmatpush1.bf16.msra.mxu0 0
    %1082 = vmatprep.subr.bf16.mxu0 0
    %1083 = vmatpush1.bf16.msra.mxu0 0
    %1084 = vmatprep.subr.bf16.mxu0 0
    %1085 = vmatpush1.bf16.msra.mxu0 0
    %1086 = vmatprep.subr.bf16.mxu0 0
    %1087 = vmatpush1.bf16.msra.mxu0 0
    %1088 = vmatprep.subr.bf16.mxu0 0
    %1089 = vmatpush1.bf16.msra.mxu0 0
    %1090 = vmatprep.subr.bf16.mxu0 0
    %1091 = vmatpush1.bf16.msra.mxu0 0
    %1092 = vmatprep.subr.bf16.mxu0 0
    %1093 = vmatpush1.bf16.msra.mxu0 0
    %1094 = vmatprep.subr.bf16.mxu0 0
    %1095 = vmatpush1.bf16.msra.mxu0 0
    %1096 = vmatprep.subr.bf16.mxu0 0
    %1097 = vmatpush1.bf16.msra.mxu0 0
    %1098 = vmatprep.subr.bf16.mxu0 0
    %1099 = vmatpush1.bf16.msra.mxu0 0
    %1100 = vmatprep.subr.bf16.mxu0 0
    %1101 = vmatpush1.bf16.msra.mxu0 0
    %1102 = vmatprep.subr.bf16.mxu0 0
    %1103 = vmatpush1.bf16.msra.mxu0 0
    %1104 = vmatprep.subr.bf16.mxu0 0
    %1105 = vmatpush1.bf16.msra.mxu0 0
    %1106 = vmatprep.subr.bf16.mxu0 0
    %1107 = vmatpush1.bf16.msra.mxu0 0
    %1108 = vmatprep.mubr.bf16.mxu0 0
    %1109 = vmatmul.mubr.bf16.gmra.mrb[0].mxu0 %v1074
    %v1110 = vpop.f32.mrb[0].mxu0
    %v1111 = vadd.f32 0.0, %v1110
    %v1112 = vpop.f32.mrb[0].mxu0
    %v1113 = vpop.f32.mrb[0].mxu0
    %v1114 = vadd.f32 0.0, %v1113
    %v1115 = vpop.f32.mrb[0].mxu0
    %1116 = vdwg.mxu0
    %1117 = vmatprep.subr.bf16.mxu0 0
    %1118 = vmatpush1.bf16.msra.mxu0 %v201
    %1119 = vmatprep.subr.bf16.mxu0 0
    %1120 = vmatpush1.bf16.msra.mxu0 %v202
    %1121 = vmatprep.subr.bf16.mxu0 0
    %1122 = vmatpush1.bf16.msra.mxu0 %v203
    %1123 = vmatprep.subr.bf16.mxu0 0
    %1124 = vmatpush1.bf16.msra.mxu0 %v204
    %1125 = vmatprep.subr.bf16.mxu0 0
    %1126 = vmatpush1.bf16.msra.mxu0 %v205
    %1127 = vmatprep.subr.bf16.mxu0 0
    %1128 = vmatpush1.bf16.msra.mxu0 %v206
    %1129 = vmatprep.subr.bf16.mxu0 0
    %1130 = vmatpush1.bf16.msra.mxu0 %v207
    %1131 = vmatprep.subr.bf16.mxu0 0
    %1132 = vmatpush1.bf16.msra.mxu0 %v208
    %1133 = vmatprep.subr.bf16.mxu0 0
    %1134 = vmatpush1.bf16.msra.mxu0 0
    %1135 = vmatprep.subr.bf16.mxu0 0
    %1136 = vmatpush1.bf16.msra.mxu0 0
    %1137 = vmatprep.subr.bf16.mxu0 0
    %1138 = vmatpush1.bf16.msra.mxu0 0
    %1139 = vmatprep.subr.bf16.mxu0 0
    %1140 = vmatpush1.bf16.msra.mxu0 0
    %1141 = vmatprep.subr.bf16.mxu0 0
    %1142 = vmatpush1.bf16.msra.mxu0 0
    %1143 = vmatprep.subr.bf16.mxu0 0
    %1144 = vmatpush1.bf16.msra.mxu0 0
    %1145 = vmatprep.subr.bf16.mxu0 0
    %1146 = vmatpush1.bf16.msra.mxu0 0
    %1147 = vmatprep.subr.bf16.mxu0 0
    %1148 = vmatpush1.bf16.msra.mxu0 0
    %1149 = vmatprep.mubr.bf16.mxu0 0
    %1150 = vmatmul.mubr.bf16.gmra.mrb[0].mxu0 %v1064
    %v1151 = vpop.f32.mrb[0].mxu0
    %v1152 = vadd.f32 %v1111, %v1151
    %v1153 = vpop.f32.mrb[0].mxu0
    %v1154 = vpop.f32.mrb[0].mxu0
    %v1155 = vadd.f32 %v1114, %v1154
    %v1156 = vpop.f32.mrb[0].mxu0
    %1157 = vdwg.mxu0
    %v1158 = vmax.f32 %v1008, %v1152
    %v1159 = vmax.f32 %v1009, %v1155
    %s1160 = scalar_lea.vmem %s0, 56
    %v1161 = vld [vmem:[%s1160] sm:$0xf]
    %v1162 = vld [vmem:[%s1160 + $0x4] sm:$0xf]
    %v1165 = vunpack.c.l.b16 %v1161
    %v1166 = vunpack.c.l.b16 %v1162
    %v1167 = vpack.c.b16 %v1166, %v1165
    %v1169 = vsel %vm48, %v1167, 0
    %1171 = vmatprep.subr.bf16.mxu0 0
    %1172 = vmatpush1.bf16.msra.mxu0 %v44
    %1173 = vmatprep.subr.bf16.mxu0 0
    %1174 = vmatpush1.bf16.msra.mxu0 %v45
    %1175 = vmatprep.subr.bf16.mxu0 0
    %1176 = vmatpush1.bf16.msra.mxu0 0
    %1177 = vmatprep.subr.bf16.mxu0 0
    %1178 = vmatpush1.bf16.msra.mxu0 0
    %1179 = vmatprep.subr.bf16.mxu0 0
    %1180 = vmatpush1.bf16.msra.mxu0 0
    %1181 = vmatprep.subr.bf16.mxu0 0
    %1182 = vmatpush1.bf16.msra.mxu0 0
    %1183 = vmatprep.subr.bf16.mxu0 0
    %1184 = vmatpush1.bf16.msra.mxu0 0
    %1185 = vmatprep.subr.bf16.mxu0 0
    %1186 = vmatpush1.bf16.msra.mxu0 0
    %1187 = vmatprep.subr.bf16.mxu0 0
    %1188 = vmatpush1.bf16.msra.mxu0 0
    %1189 = vmatprep.subr.bf16.mxu0 0
    %1190 = vmatpush1.bf16.msra.mxu0 0
    %1191 = vmatprep.subr.bf16.mxu0 0
    %1192 = vmatpush1.bf16.msra.mxu0 0
    %1193 = vmatprep.subr.bf16.mxu0 0
    %1194 = vmatpush1.bf16.msra.mxu0 0
    %1195 = vmatprep.subr.bf16.mxu0 0
    %1196 = vmatpush1.bf16.msra.mxu0 0
    %1197 = vmatprep.subr.bf16.mxu0 0
    %1198 = vmatpush1.bf16.msra.mxu0 0
    %1199 = vmatprep.subr.bf16.mxu0 0
    %1200 = vmatpush1.bf16.msra.mxu0 0
    %1201 = vmatprep.subr.bf16.mxu0 0
    %1202 = vmatpush1.bf16.msra.mxu0 0
    %1203 = vmatprep.mubr.bf16.mxu0 0
    %1204 = vmatmul.mubr.bf16.gmra.mrb[0].mxu0 %v1169
    %v1205 = vpop.f32.mrb[0].mxu0
    %v1206 = vadd.f32 0.0, %v1205
    %v1207 = vpop.f32.mrb[0].mxu0
    %v1208 = vpop.f32.mrb[0].mxu0
    %v1209 = vadd.f32 0.0, %v1208
    %v1210 = vpop.f32.mrb[0].mxu0
    %1211 = vdwg.mxu0
    %v1212 = vmax.f32 %v1206, 0.0
    %v1213 = vmax.f32 %v1209, 0.0
    %v1214 = vpack.c.bf16 %v1213, %v1212
    %s1215 = scalar_lea.vmem %s1, 56
    %v1216 = vld [vmem:[%s1215] sm:$0xf]
    %v1217 = vld [vmem:[%s1215 + $0x4] sm:$0xf]
    %v1220 = vunpack.c.l.b16 %v1216
    %v1221 = vunpack.c.l.b16 %v1217
    %v1222 = vpack.c.b16 %v1221, %v1220
    %v1224 = vsel %vm120, %v1222, 0
    %1226 = vmatprep.subr.bf16.mxu0 0
    %1227 = vmatpush1.bf16.msra.mxu0 %v126
    %1228 = vmatprep.subr.bf16.mxu0 0
    %1229 = vmatpush1.bf16.msra.mxu0 0
    %1230 = vmatprep.subr.bf16.mxu0 0
    %1231 = vmatpush1.bf16.msra.mxu0 0
    %1232 = vmatprep.subr.bf16.mxu0 0
    %1233 = vmatpush1.bf16.msra.mxu0 0
    %1234 = vmatprep.subr.bf16.mxu0 0
    %1235 = vmatpush1.bf16.msra.mxu0 0
    %1236 = vmatprep.subr.bf16.mxu0 0
    %1237 = vmatpush1.bf16.msra.mxu0 0
    %1238 = vmatprep.subr.bf16.mxu0 0
    %1239 = vmatpush1.bf16.msra.mxu0 0
    %1240 = vmatprep.subr.bf16.mxu0 0
    %1241 = vmatpush1.bf16.msra.mxu0 0
    %1242 = vmatprep.subr.bf16.mxu0 0
    %1243 = vmatpush1.bf16.msra.mxu0 0
    %1244 = vmatprep.subr.bf16.mxu0 0
    %1245 = vmatpush1.bf16.msra.mxu0 0
    %1246 = vmatprep.subr.bf16.mxu0 0
    %1247 = vmatpush1.bf16.msra.mxu0 0
    %1248 = vmatprep.subr.bf16.mxu0 0
    %1249 = vmatpush1.bf16.msra.mxu0 0
    %1250 = vmatprep.subr.bf16.mxu0 0
    %1251 = vmatpush1.bf16.msra.mxu0 0
    %1252 = vmatprep.subr.bf16.mxu0 0
    %1253 = vmatpush1.bf16.msra.mxu0 0
    %1254 = vmatprep.subr.bf16.mxu0 0
    %1255 = vmatpush1.bf16.msra.mxu0 0
    %1256 = vmatprep.subr.bf16.mxu0 0
    %1257 = vmatpush1.bf16.msra.mxu0 0
    %1258 = vmatprep.mubr.bf16.mxu0 0
    %1259 = vmatmul.mubr.bf16.gmra.mrb[0].mxu0 %v1224
    %v1260 = vpop.f32.mrb[0].mxu0
    %v1261 = vadd.f32 0.0, %v1260
    %v1262 = vpop.f32.mrb[0].mxu0
    %v1263 = vpop.f32.mrb[0].mxu0
    %v1264 = vadd.f32 0.0, %v1263
    %v1265 = vpop.f32.mrb[0].mxu0
    %1266 = vdwg.mxu0
    %1267 = vmatprep.subr.bf16.mxu0 0
    %1268 = vmatpush1.bf16.msra.mxu0 %v201
    %1269 = vmatprep.subr.bf16.mxu0 0
    %1270 = vmatpush1.bf16.msra.mxu0 %v202
    %1271 = vmatprep.subr.bf16.mxu0 0
    %1272 = vmatpush1.bf16.msra.mxu0 %v203
    %1273 = vmatprep.subr.bf16.mxu0 0
    %1274 = vmatpush1.bf16.msra.mxu0 %v204
    %1275 = vmatprep.subr.bf16.mxu0 0
    %1276 = vmatpush1.bf16.msra.mxu0 %v205
    %1277 = vmatprep.subr.bf16.mxu0 0
    %1278 = vmatpush1.bf16.msra.mxu0 %v206
    %1279 = vmatprep.subr.bf16.mxu0 0
    %1280 = vmatpush1.bf16.msra.mxu0 %v207
    %1281 = vmatprep.subr.bf16.mxu0 0
    %1282 = vmatpush1.bf16.msra.mxu0 %v208
    %1283 = vmatprep.subr.bf16.mxu0 0
    %1284 = vmatpush1.bf16.msra.mxu0 0
    %1285 = vmatprep.subr.bf16.mxu0 0
    %1286 = vmatpush1.bf16.msra.mxu0 0
    %1287 = vmatprep.subr.bf16.mxu0 0
    %1288 = vmatpush1.bf16.msra.mxu0 0
    %1289 = vmatprep.subr.bf16.mxu0 0
    %1290 = vmatpush1.bf16.msra.mxu0 0
    %1291 = vmatprep.subr.bf16.mxu0 0
    %1292 = vmatpush1.bf16.msra.mxu0 0
    %1293 = vmatprep.subr.bf16.mxu0 0
    %1294 = vmatpush1.bf16.msra.mxu0 0
    %1295 = vmatprep.subr.bf16.mxu0 0
    %1296 = vmatpush1.bf16.msra.mxu0 0
    %1297 = vmatprep.subr.bf16.mxu0 0
    %1298 = vmatpush1.bf16.msra.mxu0 0
    %1299 = vmatprep.mubr.bf16.mxu0 0
    %1300 = vmatmul.mubr.bf16.gmra.mrb[0].mxu0 %v1214
    %v1301 = vpop.f32.mrb[0].mxu0
    %v1302 = vadd.f32 %v1261, %v1301
    %v1303 = vpop.f32.mrb[0].mxu0
    %v1304 = vpop.f32.mrb[0].mxu0
    %v1305 = vadd.f32 %v1264, %v1304
    %v1306 = vpop.f32.mrb[0].mxu0
    %1307 = vdwg.mxu0
    %v1308 = vmax.f32 %v1158, %v1302
    %v1309 = vmax.f32 %v1159, %v1305
    %s1310 = scalar_lea.vmem %s0, 64
    %v1311 = vld [vmem:[%s1310] sm:$0xf]
    %v1312 = vld [vmem:[%s1310 + $0x4] sm:$0xf]
    %v1315 = vunpack.c.l.b16 %v1311
    %v1316 = vunpack.c.l.b16 %v1312
    %v1317 = vpack.c.b16 %v1316, %v1315
    %v1319 = vsel %vm48, %v1317, 0
    %1321 = vmatprep.subr.bf16.mxu0 0
    %1322 = vmatpush1.bf16.msra.mxu0 %v44
    %1323 = vmatprep.subr.bf16.mxu0 0
    %1324 = vmatpush1.bf16.msra.mxu0 %v45
    %1325 = vmatprep.subr.bf16.mxu0 0
    %1326 = vmatpush1.bf16.msra.mxu0 0
    %1327 = vmatprep.subr.bf16.mxu0 0
    %1328 = vmatpush1.bf16.msra.mxu0 0
    %1329 = vmatprep.subr.bf16.mxu0 0
    %1330 = vmatpush1.bf16.msra.mxu0 0
    %1331 = vmatprep.subr.bf16.mxu0 0
    %1332 = vmatpush1.bf16.msra.mxu0 0
    %1333 = vmatprep.subr.bf16.mxu0 0
    %1334 = vmatpush1.bf16.msra.mxu0 0
    %1335 = vmatprep.subr.bf16.mxu0 0
    %1336 = vmatpush1.bf16.msra.mxu0 0
    %1337 = vmatprep.subr.bf16.mxu0 0
    %1338 = vmatpush1.bf16.msra.mxu0 0
    %1339 = vmatprep.subr.bf16.mxu0 0
    %1340 = vmatpush1.bf16.msra.mxu0 0
    %1341 = vmatprep.subr.bf16.mxu0 0
    %1342 = vmatpush1.bf16.msra.mxu0 0
    %1343 = vmatprep.subr.bf16.mxu0 0
    %1344 = vmatpush1.bf16.msra.mxu0 0
    %1345 = vmatprep.subr.bf16.mxu0 0
    %1346 = vmatpush1.bf16.msra.mxu0 0
    %1347 = vmatprep.subr.bf16.mxu0 0
    %1348 = vmatpush1.bf16.msra.mxu0 0
    %1349 = vmatprep.subr.bf16.mxu0 0
    %1350 = vmatpush1.bf16.msra.mxu0 0
    %1351 = vmatprep.subr.bf16.mxu0 0
    %1352 = vmatpush1.bf16.msra.mxu0 0
    %1353 = vmatprep.mubr.bf16.mxu0 0
    %1354 = vmatmul.mubr.bf16.gmra.mrb[0].mxu0 %v1319
    %v1355 = vpop.f32.mrb[0].mxu0
    %v1356 = vadd.f32 0.0, %v1355
    %v1357 = vpop.f32.mrb[0].mxu0
    %v1358 = vpop.f32.mrb[0].mxu0
    %v1359 = vadd.f32 0.0, %v1358
    %v1360 = vpop.f32.mrb[0].mxu0
    %1361 = vdwg.mxu0
    %v1362 = vmax.f32 %v1356, 0.0
    %v1363 = vmax.f32 %v1359, 0.0
    %v1364 = vpack.c.bf16 %v1363, %v1362
    %s1365 = scalar_lea.vmem %s1, 64
    %v1366 = vld [vmem:[%s1365] sm:$0xf]
    %v1367 = vld [vmem:[%s1365 + $0x4] sm:$0xf]
    %v1370 = vunpack.c.l.b16 %v1366
    %v1371 = vunpack.c.l.b16 %v1367
    %v1372 = vpack.c.b16 %v1371, %v1370
    %v1374 = vsel %vm120, %v1372, 0
    %1376 = vmatprep.subr.bf16.mxu0 0
    %1377 = vmatpush1.bf16.msra.mxu0 %v126
    %1378 = vmatprep.subr.bf16.mxu0 0
    %1379 = vmatpush1.bf16.msra.mxu0 0
    %1380 = vmatprep.subr.bf16.mxu0 0
    %1381 = vmatpush1.bf16.msra.mxu0 0
    %1382 = vmatprep.subr.bf16.mxu0 0
    %1383 = vmatpush1.bf16.msra.mxu0 0
    %1384 = vmatprep.subr.bf16.mxu0 0
    %1385 = vmatpush1.bf16.msra.mxu0 0
    %1386 = vmatprep.subr.bf16.mxu0 0
    %1387 = vmatpush1.bf16.msra.mxu0 0
    %1388 = vmatprep.subr.bf16.mxu0 0
    %1389 = vmatpush1.bf16.msra.mxu0 0
    %1390 = vmatprep.subr.bf16.mxu0 0
    %1391 = vmatpush1.bf16.msra.mxu0 0
    %1392 = vmatprep.subr.bf16.mxu0 0
    %1393 = vmatpush1.bf16.msra.mxu0 0
    %1394 = vmatprep.subr.bf16.mxu0 0
    %1395 = vmatpush1.bf16.msra.mxu0 0
    %1396 = vmatprep.subr.bf16.mxu0 0
    %1397 = vmatpush1.bf16.msra.mxu0 0
    %1398 = vmatprep.subr.bf16.mxu0 0
    %1399 = vmatpush1.bf16.msra.mxu0 0
    %1400 = vmatprep.subr.bf16.mxu0 0
    %1401 = vmatpush1.bf16.msra.mxu0 0
    %1402 = vmatprep.subr.bf16.mxu0 0
    %1403 = vmatpush1.bf16.msra.mxu0 0
    %1404 = vmatprep.subr.bf16.mxu0 0
    %1405 = vmatpush1.bf16.msra.mxu0 0
    %1406 = vmatprep.subr.bf16.mxu0 0
    %1407 = vmatpush1.bf16.msra.mxu0 0
    %1408 = vmatprep.mubr.bf16.mxu0 0
    %1409 = vmatmul.mubr.bf16.gmra.mrb[0].mxu0 %v1374
    %v1410 = vpop.f32.mrb[0].mxu0
    %v1411 = vadd.f32 0.0, %v1410
    %v1412 = vpop.f32.mrb[0].mxu0
    %v1413 = vpop.f32.mrb[0].mxu0
    %v1414 = vadd.f32 0.0, %v1413
    %v1415 = vpop.f32.mrb[0].mxu0
    %1416 = vdwg.mxu0
    %1417 = vmatprep.subr.bf16.mxu0 0
    %1418 = vmatpush1.bf16.msra.mxu0 %v201
    %1419 = vmatprep.subr.bf16.mxu0 0
    %1420 = vmatpush1.bf16.msra.mxu0 %v202
    %1421 = vmatprep.subr.bf16.mxu0 0
    %1422 = vmatpush1.bf16.msra.mxu0 %v203
    %1423 = vmatprep.subr.bf16.mxu0 0
    %1424 = vmatpush1.bf16.msra.mxu0 %v204
    %1425 = vmatprep.subr.bf16.mxu0 0
    %1426 = vmatpush1.bf16.msra.mxu0 %v205
    %1427 = vmatprep.subr.bf16.mxu0 0
    %1428 = vmatpush1.bf16.msra.mxu0 %v206
    %1429 = vmatprep.subr.bf16.mxu0 0
    %1430 = vmatpush1.bf16.msra.mxu0 %v207
    %1431 = vmatprep.subr.bf16.mxu0 0
    %1432 = vmatpush1.bf16.msra.mxu0 %v208
    %1433 = vmatprep.subr.bf16.mxu0 0
    %1434 = vmatpush1.bf16.msra.mxu0 0
    %1435 = vmatprep.subr.bf16.mxu0 0
    %1436 = vmatpush1.bf16.msra.mxu0 0
    %1437 = vmatprep.subr.bf16.mxu0 0
    %1438 = vmatpush1.bf16.msra.mxu0 0
    %1439 = vmatprep.subr.bf16.mxu0 0
    %1440 = vmatpush1.bf16.msra.mxu0 0
    %1441 = vmatprep.subr.bf16.mxu0 0
    %1442 = vmatpush1.bf16.msra.mxu0 0
    %1443 = vmatprep.subr.bf16.mxu0 0
    %1444 = vmatpush1.bf16.msra.mxu0 0
    %1445 = vmatprep.subr.bf16.mxu0 0
    %1446 = vmatpush1.bf16.msra.mxu0 0
    %1447 = vmatprep.subr.bf16.mxu0 0
    %1448 = vmatpush1.bf16.msra.mxu0 0
    %1449 = vmatprep.mubr.bf16.mxu0 0
    %1450 = vmatmul.mubr.bf16.gmra.mrb[0].mxu0 %v1364
    %v1451 = vpop.f32.mrb[0].mxu0
    %v1452 = vadd.f32 %v1411, %v1451
    %v1453 = vpop.f32.mrb[0].mxu0
    %v1454 = vpop.f32.mrb[0].mxu0
    %v1455 = vadd.f32 %v1414, %v1454
    %v1456 = vpop.f32.mrb[0].mxu0
    %1457 = vdwg.mxu0
    %v1458 = vmax.f32 %v1308, %v1452
    %v1459 = vmax.f32 %v1309, %v1455
    %s1460 = scalar_lea.vmem %s0, 72
    %v1461 = vld [vmem:[%s1460] sm:$0xf]
    %v1462 = vld [vmem:[%s1460 + $0x4] sm:$0xf]
    %v1465 = vunpack.c.l.b16 %v1461
    %v1466 = vunpack.c.l.b16 %v1462
    %v1467 = vpack.c.b16 %v1466, %v1465
    %v1469 = vsel %vm48, %v1467, 0
    %1471 = vmatprep.subr.bf16.mxu0 0
    %1472 = vmatpush1.bf16.msra.mxu0 %v44
    %1473 = vmatprep.subr.bf16.mxu0 0
    %1474 = vmatpush1.bf16.msra.mxu0 %v45
    %1475 = vmatprep.subr.bf16.mxu0 0
    %1476 = vmatpush1.bf16.msra.mxu0 0
    %1477 = vmatprep.subr.bf16.mxu0 0
    %1478 = vmatpush1.bf16.msra.mxu0 0
    %1479 = vmatprep.subr.bf16.mxu0 0
    %1480 = vmatpush1.bf16.msra.mxu0 0
    %1481 = vmatprep.subr.bf16.mxu0 0
    %1482 = vmatpush1.bf16.msra.mxu0 0
    %1483 = vmatprep.subr.bf16.mxu0 0
    %1484 = vmatpush1.bf16.msra.mxu0 0
    %1485 = vmatprep.subr.bf16.mxu0 0
    %1486 = vmatpush1.bf16.msra.mxu0 0
    %1487 = vmatprep.subr.bf16.mxu0 0
    %1488 = vmatpush1.bf16.msra.mxu0 0
    %1489 = vmatprep.subr.bf16.mxu0 0
    %1490 = vmatpush1.bf16.msra.mxu0 0
    %1491 = vmatprep.subr.bf16.mxu0 0
    %1492 = vmatpush1.bf16.msra.mxu0 0
    %1493 = vmatprep.subr.bf16.mxu0 0
    %1494 = vmatpush1.bf16.msra.mxu0 0
    %1495 = vmatprep.subr.bf16.mxu0 0
    %1496 = vmatpush1.bf16.msra.mxu0 0
    %1497 = vmatprep.subr.bf16.mxu0 0
    %1498 = vmatpush1.bf16.msra.mxu0 0
    %1499 = vmatprep.subr.bf16.mxu0 0
    %1500 = vmatpush1.bf16.msra.mxu0 0
    %1501 = vmatprep.subr.bf16.mxu0 0
    %1502 = vmatpush1.bf16.msra.mxu0 0
    %1503 = vmatprep.mubr.bf16.mxu0 0
    %1504 = vmatmul.mubr.bf16.gmra.mrb[0].mxu0 %v1469
    %v1505 = vpop.f32.mrb[0].mxu0
    %v1506 = vadd.f32 0.0, %v1505
    %v1507 = vpop.f32.mrb[0].mxu0
    %v1508 = vpop.f32.mrb[0].mxu0
    %v1509 = vadd.f32 0.0, %v1508
    %v1510 = vpop.f32.mrb[0].mxu0
    %1511 = vdwg.mxu0
    %v1512 = vmax.f32 %v1506, 0.0
    %v1513 = vmax.f32 %v1509, 0.0
    %v1514 = vpack.c.bf16 %v1513, %v1512
    %s1515 = scalar_lea.vmem %s1, 72
    %v1516 = vld [vmem:[%s1515] sm:$0xf]
    %v1517 = vld [vmem:[%s1515 + $0x4] sm:$0xf]
    %v1520 = vunpack.c.l.b16 %v1516
    %v1521 = vunpack.c.l.b16 %v1517
    %v1522 = vpack.c.b16 %v1521, %v1520
    %v1524 = vsel %vm120, %v1522, 0
    %1526 = vmatprep.subr.bf16.mxu0 0
    %1527 = vmatpush1.bf16.msra.mxu0 %v126
    %1528 = vmatprep.subr.bf16.mxu0 0
    %1529 = vmatpush1.bf16.msra.mxu0 0
    %1530 = vmatprep.subr.bf16.mxu0 0
    %1531 = vmatpush1.bf16.msra.mxu0 0
    %1532 = vmatprep.subr.bf16.mxu0 0
    %1533 = vmatpush1.bf16.msra.mxu0 0
    %1534 = vmatprep.subr.bf16.mxu0 0
    %1535 = vmatpush1.bf16.msra.mxu0 0
    %1536 = vmatprep.subr.bf16.mxu0 0
    %1537 = vmatpush1.bf16.msra.mxu0 0
    %1538 = vmatprep.subr.bf16.mxu0 0
    %1539 = vmatpush1.bf16.msra.mxu0 0
    %1540 = vmatprep.subr.bf16.mxu0 0
    %1541 = vmatpush1.bf16.msra.mxu0 0
    %1542 = vmatprep.subr.bf16.mxu0 0
    %1543 = vmatpush1.bf16.msra.mxu0 0
    %1544 = vmatprep.subr.bf16.mxu0 0
    %1545 = vmatpush1.bf16.msra.mxu0 0
    %1546 = vmatprep.subr.bf16.mxu0 0
    %1547 = vmatpush1.bf16.msra.mxu0 0
    %1548 = vmatprep.subr.bf16.mxu0 0
    %1549 = vmatpush1.bf16.msra.mxu0 0
    %1550 = vmatprep.subr.bf16.mxu0 0
    %1551 = vmatpush1.bf16.msra.mxu0 0
    %1552 = vmatprep.subr.bf16.mxu0 0
    %1553 = vmatpush1.bf16.msra.mxu0 0
    %1554 = vmatprep.subr.bf16.mxu0 0
    %1555 = vmatpush1.bf16.msra.mxu0 0
    %1556 = vmatprep.subr.bf16.mxu0 0
    %1557 = vmatpush1.bf16.msra.mxu0 0
    %1558 = vmatprep.mubr.bf16.mxu0 0
    %1559 = vmatmul.mubr.bf16.gmra.mrb[0].mxu0 %v1524
    %v1560 = vpop.f32.mrb[0].mxu0
    %v1561 = vadd.f32 0.0, %v1560
    %v1562 = vpop.f32.mrb[0].mxu0
    %v1563 = vpop.f32.mrb[0].mxu0
    %v1564 = vadd.f32 0.0, %v1563
    %v1565 = vpop.f32.mrb[0].mxu0
    %1566 = vdwg.mxu0
    %1567 = vmatprep.subr.bf16.mxu0 0
    %1568 = vmatpush1.bf16.msra.mxu0 %v201
    %1569 = vmatprep.subr.bf16.mxu0 0
    %1570 = vmatpush1.bf16.msra.mxu0 %v202
    %1571 = vmatprep.subr.bf16.mxu0 0
    %1572 = vmatpush1.bf16.msra.mxu0 %v203
    %1573 = vmatprep.subr.bf16.mxu0 0
    %1574 = vmatpush1.bf16.msra.mxu0 %v204
    %1575 = vmatprep.subr.bf16.mxu0 0
    %1576 = vmatpush1.bf16.msra.mxu0 %v205
    %1577 = vmatprep.subr.bf16.mxu0 0
    %1578 = vmatpush1.bf16.msra.mxu0 %v206
    %1579 = vmatprep.subr.bf16.mxu0 0
    %1580 = vmatpush1.bf16.msra.mxu0 %v207
    %1581 = vmatprep.subr.bf16.mxu0 0
    %1582 = vmatpush1.bf16.msra.mxu0 %v208
    %1583 = vmatprep.subr.bf16.mxu0 0
    %1584 = vmatpush1.bf16.msra.mxu0 0
    %1585 = vmatprep.subr.bf16.mxu0 0
    %1586 = vmatpush1.bf16.msra.mxu0 0
    %1587 = vmatprep.subr.bf16.mxu0 0
    %1588 = vmatpush1.bf16.msra.mxu0 0
    %1589 = vmatprep.subr.bf16.mxu0 0
    %1590 = vmatpush1.bf16.msra.mxu0 0
    %1591 = vmatprep.subr.bf16.mxu0 0
    %1592 = vmatpush1.bf16.msra.mxu0 0
    %1593 = vmatprep.subr.bf16.mxu0 0
    %1594 = vmatpush1.bf16.msra.mxu0 0
    %1595 = vmatprep.subr.bf16.mxu0 0
    %1596 = vmatpush1.bf16.msra.mxu0 0
    %1597 = vmatprep.subr.bf16.mxu0 0
    %1598 = vmatpush1.bf16.msra.mxu0 0
    %1599 = vmatprep.mubr.bf16.mxu0 0
    %1600 = vmatmul.mubr.bf16.gmra.mrb[0].mxu0 %v1514
    %v1601 = vpop.f32.mrb[0].mxu0
    %v1602 = vadd.f32 %v1561, %v1601
    %v1603 = vpop.f32.mrb[0].mxu0
    %v1604 = vpop.f32.mrb[0].mxu0
    %v1605 = vadd.f32 %v1564, %v1604
    %v1606 = vpop.f32.mrb[0].mxu0
    %1607 = vdwg.mxu0
    %v1608 = vmax.f32 %v1458, %v1602
    %v1609 = vmax.f32 %v1459, %v1605
    %s1610 = scalar_lea.vmem %s0, 80
    %v1611 = vld [vmem:[%s1610] sm:$0xf]
    %v1612 = vld [vmem:[%s1610 + $0x4] sm:$0xf]
    %v1615 = vunpack.c.l.b16 %v1611
    %v1616 = vunpack.c.l.b16 %v1612
    %v1617 = vpack.c.b16 %v1616, %v1615
    %v1619 = vsel %vm48, %v1617, 0
    %1621 = vmatprep.subr.bf16.mxu0 0
    %1622 = vmatpush1.bf16.msra.mxu0 %v44
    %1623 = vmatprep.subr.bf16.mxu0 0
    %1624 = vmatpush1.bf16.msra.mxu0 %v45
    %1625 = vmatprep.subr.bf16.mxu0 0
    %1626 = vmatpush1.bf16.msra.mxu0 0
    %1627 = vmatprep.subr.bf16.mxu0 0
    %1628 = vmatpush1.bf16.msra.mxu0 0
    %1629 = vmatprep.subr.bf16.mxu0 0
    %1630 = vmatpush1.bf16.msra.mxu0 0
    %1631 = vmatprep.subr.bf16.mxu0 0
    %1632 = vmatpush1.bf16.msra.mxu0 0
    %1633 = vmatprep.subr.bf16.mxu0 0
    %1634 = vmatpush1.bf16.msra.mxu0 0
    %1635 = vmatprep.subr.bf16.mxu0 0
    %1636 = vmatpush1.bf16.msra.mxu0 0
    %1637 = vmatprep.subr.bf16.mxu0 0
    %1638 = vmatpush1.bf16.msra.mxu0 0
    %1639 = vmatprep.subr.bf16.mxu0 0
    %1640 = vmatpush1.bf16.msra.mxu0 0
    %1641 = vmatprep.subr.bf16.mxu0 0
    %1642 = vmatpush1.bf16.msra.mxu0 0
    %1643 = vmatprep.subr.bf16.mxu0 0
    %1644 = vmatpush1.bf16.msra.mxu0 0
    %1645 = vmatprep.subr.bf16.mxu0 0
    %1646 = vmatpush1.bf16.msra.mxu0 0
    %1647 = vmatprep.subr.bf16.mxu0 0
    %1648 = vmatpush1.bf16.msra.mxu0 0
    %1649 = vmatprep.subr.bf16.mxu0 0
    %1650 = vmatpush1.bf16.msra.mxu0 0
    %1651 = vmatprep.subr.bf16.mxu0 0
    %1652 = vmatpush1.bf16.msra.mxu0 0
    %1653 = vmatprep.mubr.bf16.mxu0 0
    %1654 = vmatmul.mubr.bf16.gmra.mrb[0].mxu0 %v1619
    %v1655 = vpop.f32.mrb[0].mxu0
    %v1656 = vadd.f32 0.0, %v1655
    %v1657 = vpop.f32.mrb[0].mxu0
    %v1658 = vpop.f32.mrb[0].mxu0
    %v1659 = vadd.f32 0.0, %v1658
    %v1660 = vpop.f32.mrb[0].mxu0
    %1661 = vdwg.mxu0
    %v1662 = vmax.f32 %v1656, 0.0
    %v1663 = vmax.f32 %v1659, 0.0
    %v1664 = vpack.c.bf16 %v1663, %v1662
    %s1665 = scalar_lea.vmem %s1, 80
    %v1666 = vld [vmem:[%s1665] sm:$0xf]
    %v1667 = vld [vmem:[%s1665 + $0x4] sm:$0xf]
    %v1670 = vunpack.c.l.b16 %v1666
    %v1671 = vunpack.c.l.b16 %v1667
    %v1672 = vpack.c.b16 %v1671, %v1670
    %v1674 = vsel %vm120, %v1672, 0
    %1676 = vmatprep.subr.bf16.mxu0 0
    %1677 = vmatpush1.bf16.msra.mxu0 %v126
    %1678 = vmatprep.subr.bf16.mxu0 0
    %1679 = vmatpush1.bf16.msra.mxu0 0
    %1680 = vmatprep.subr.bf16.mxu0 0
    %1681 = vmatpush1.bf16.msra.mxu0 0
    %1682 = vmatprep.subr.bf16.mxu0 0
    %1683 = vmatpush1.bf16.msra.mxu0 0
    %1684 = vmatprep.subr.bf16.mxu0 0
    %1685 = vmatpush1.bf16.msra.mxu0 0
    %1686 = vmatprep.subr.bf16.mxu0 0
    %1687 = vmatpush1.bf16.msra.mxu0 0
    %1688 = vmatprep.subr.bf16.mxu0 0
    %1689 = vmatpush1.bf16.msra.mxu0 0
    %1690 = vmatprep.subr.bf16.mxu0 0
    %1691 = vmatpush1.bf16.msra.mxu0 0
    %1692 = vmatprep.subr.bf16.mxu0 0
    %1693 = vmatpush1.bf16.msra.mxu0 0
    %1694 = vmatprep.subr.bf16.mxu0 0
    %1695 = vmatpush1.bf16.msra.mxu0 0
    %1696 = vmatprep.subr.bf16.mxu0 0
    %1697 = vmatpush1.bf16.msra.mxu0 0
    %1698 = vmatprep.subr.bf16.mxu0 0
    %1699 = vmatpush1.bf16.msra.mxu0 0
    %1700 = vmatprep.subr.bf16.mxu0 0
    %1701 = vmatpush1.bf16.msra.mxu0 0
    %1702 = vmatprep.subr.bf16.mxu0 0
    %1703 = vmatpush1.bf16.msra.mxu0 0
    %1704 = vmatprep.subr.bf16.mxu0 0
    %1705 = vmatpush1.bf16.msra.mxu0 0
    %1706 = vmatprep.subr.bf16.mxu0 0
    %1707 = vmatpush1.bf16.msra.mxu0 0
    %1708 = vmatprep.mubr.bf16.mxu0 0
    %1709 = vmatmul.mubr.bf16.gmra.mrb[0].mxu0 %v1674
    %v1710 = vpop.f32.mrb[0].mxu0
    %v1711 = vadd.f32 0.0, %v1710
    %v1712 = vpop.f32.mrb[0].mxu0
    %v1713 = vpop.f32.mrb[0].mxu0
    %v1714 = vadd.f32 0.0, %v1713
    %v1715 = vpop.f32.mrb[0].mxu0
    %1716 = vdwg.mxu0
    %1717 = vmatprep.subr.bf16.mxu0 0
    %1718 = vmatpush1.bf16.msra.mxu0 %v201
    %1719 = vmatprep.subr.bf16.mxu0 0
    %1720 = vmatpush1.bf16.msra.mxu0 %v202
    %1721 = vmatprep.subr.bf16.mxu0 0
    %1722 = vmatpush1.bf16.msra.mxu0 %v203
    %1723 = vmatprep.subr.bf16.mxu0 0
    %1724 = vmatpush1.bf16.msra.mxu0 %v204
    %1725 = vmatprep.subr.bf16.mxu0 0
    %1726 = vmatpush1.bf16.msra.mxu0 %v205
    %1727 = vmatprep.subr.bf16.mxu0 0
    %1728 = vmatpush1.bf16.msra.mxu0 %v206
    %1729 = vmatprep.subr.bf16.mxu0 0
    %1730 = vmatpush1.bf16.msra.mxu0 %v207
    %1731 = vmatprep.subr.bf16.mxu0 0
    %1732 = vmatpush1.bf16.msra.mxu0 %v208
    %1733 = vmatprep.subr.bf16.mxu0 0
    %1734 = vmatpush1.bf16.msra.mxu0 0
    %1735 = vmatprep.subr.bf16.mxu0 0
    %1736 = vmatpush1.bf16.msra.mxu0 0
    %1737 = vmatprep.subr.bf16.mxu0 0
    %1738 = vmatpush1.bf16.msra.mxu0 0
    %1739 = vmatprep.subr.bf16.mxu0 0
    %1740 = vmatpush1.bf16.msra.mxu0 0
    %1741 = vmatprep.subr.bf16.mxu0 0
    %1742 = vmatpush1.bf16.msra.mxu0 0
    %1743 = vmatprep.subr.bf16.mxu0 0
    %1744 = vmatpush1.bf16.msra.mxu0 0
    %1745 = vmatprep.subr.bf16.mxu0 0
    %1746 = vmatpush1.bf16.msra.mxu0 0
    %1747 = vmatprep.subr.bf16.mxu0 0
    %1748 = vmatpush1.bf16.msra.mxu0 0
    %1749 = vmatprep.mubr.bf16.mxu0 0
    %1750 = vmatmul.mubr.bf16.gmra.mrb[0].mxu0 %v1664
    %v1751 = vpop.f32.mrb[0].mxu0
    %v1752 = vadd.f32 %v1711, %v1751
    %v1753 = vpop.f32.mrb[0].mxu0
    %v1754 = vpop.f32.mrb[0].mxu0
    %v1755 = vadd.f32 %v1714, %v1754
    %v1756 = vpop.f32.mrb[0].mxu0
    %1757 = vdwg.mxu0
    %v1758 = vmax.f32 %v1608, %v1752
    %v1759 = vmax.f32 %v1609, %v1755
    %s1760 = scalar_lea.vmem %s0, 88
    %v1761 = vld [vmem:[%s1760] sm:$0xf]
    %v1762 = vld [vmem:[%s1760 + $0x4] sm:$0xf]
    %v1765 = vunpack.c.l.b16 %v1761
    %v1766 = vunpack.c.l.b16 %v1762
    %v1767 = vpack.c.b16 %v1766, %v1765
    %v1769 = vsel %vm48, %v1767, 0
    %1771 = vmatprep.subr.bf16.mxu0 0
    %1772 = vmatpush1.bf16.msra.mxu0 %v44
    %1773 = vmatprep.subr.bf16.mxu0 0
    %1774 = vmatpush1.bf16.msra.mxu0 %v45
    %1775 = vmatprep.subr.bf16.mxu0 0
    %1776 = vmatpush1.bf16.msra.mxu0 0
    %1777 = vmatprep.subr.bf16.mxu0 0
    %1778 = vmatpush1.bf16.msra.mxu0 0
    %1779 = vmatprep.subr.bf16.mxu0 0
    %1780 = vmatpush1.bf16.msra.mxu0 0
    %1781 = vmatprep.subr.bf16.mxu0 0
    %1782 = vmatpush1.bf16.msra.mxu0 0
    %1783 = vmatprep.subr.bf16.mxu0 0
    %1784 = vmatpush1.bf16.msra.mxu0 0
    %1785 = vmatprep.subr.bf16.mxu0 0
    %1786 = vmatpush1.bf16.msra.mxu0 0
    %1787 = vmatprep.subr.bf16.mxu0 0
    %1788 = vmatpush1.bf16.msra.mxu0 0
    %1789 = vmatprep.subr.bf16.mxu0 0
    %1790 = vmatpush1.bf16.msra.mxu0 0
    %1791 = vmatprep.subr.bf16.mxu0 0
    %1792 = vmatpush1.bf16.msra.mxu0 0
    %1793 = vmatprep.subr.bf16.mxu0 0
    %1794 = vmatpush1.bf16.msra.mxu0 0
    %1795 = vmatprep.subr.bf16.mxu0 0
    %1796 = vmatpush1.bf16.msra.mxu0 0
    %1797 = vmatprep.subr.bf16.mxu0 0
    %1798 = vmatpush1.bf16.msra.mxu0 0
    %1799 = vmatprep.subr.bf16.mxu0 0
    %1800 = vmatpush1.bf16.msra.mxu0 0
    %1801 = vmatprep.subr.bf16.mxu0 0
    %1802 = vmatpush1.bf16.msra.mxu0 0
    %1803 = vmatprep.mubr.bf16.mxu0 0
    %1804 = vmatmul.mubr.bf16.gmra.mrb[0].mxu0 %v1769
    %v1805 = vpop.f32.mrb[0].mxu0
    %v1806 = vadd.f32 0.0, %v1805
    %v1807 = vpop.f32.mrb[0].mxu0
    %v1808 = vpop.f32.mrb[0].mxu0
    %v1809 = vadd.f32 0.0, %v1808
    %v1810 = vpop.f32.mrb[0].mxu0
    %1811 = vdwg.mxu0
    %v1812 = vmax.f32 %v1806, 0.0
    %v1813 = vmax.f32 %v1809, 0.0
    %v1814 = vpack.c.bf16 %v1813, %v1812
    %s1815 = scalar_lea.vmem %s1, 88
    %v1816 = vld [vmem:[%s1815] sm:$0xf]
    %v1817 = vld [vmem:[%s1815 + $0x4] sm:$0xf]
    %v1820 = vunpack.c.l.b16 %v1816
    %v1821 = vunpack.c.l.b16 %v1817
    %v1822 = vpack.c.b16 %v1821, %v1820
    %v1824 = vsel %vm120, %v1822, 0
    %1826 = vmatprep.subr.bf16.mxu0 0
    %1827 = vmatpush1.bf16.msra.mxu0 %v126
    %1828 = vmatprep.subr.bf16.mxu0 0
    %1829 = vmatpush1.bf16.msra.mxu0 0
    %1830 = vmatprep.subr.bf16.mxu0 0
    %1831 = vmatpush1.bf16.msra.mxu0 0
    %1832 = vmatprep.subr.bf16.mxu0 0
    %1833 = vmatpush1.bf16.msra.mxu0 0
    %1834 = vmatprep.subr.bf16.mxu0 0
    %1835 = vmatpush1.bf16.msra.mxu0 0
    %1836 = vmatprep.subr.bf16.mxu0 0
    %1837 = vmatpush1.bf16.msra.mxu0 0
    %1838 = vmatprep.subr.bf16.mxu0 0
    %1839 = vmatpush1.bf16.msra.mxu0 0
    %1840 = vmatprep.subr.bf16.mxu0 0
    %1841 = vmatpush1.bf16.msra.mxu0 0
    %1842 = vmatprep.subr.bf16.mxu0 0
    %1843 = vmatpush1.bf16.msra.mxu0 0
    %1844 = vmatprep.subr.bf16.mxu0 0
    %1845 = vmatpush1.bf16.msra.mxu0 0
    %1846 = vmatprep.subr.bf16.mxu0 0
    %1847 = vmatpush1.bf16.msra.mxu0 0
    %1848 = vmatprep.subr.bf16.mxu0 0
    %1849 = vmatpush1.bf16.msra.mxu0 0
    %1850 = vmatprep.subr.bf16.mxu0 0
    %1851 = vmatpush1.bf16.msra.mxu0 0
    %1852 = vmatprep.subr.bf16.mxu0 0
    %1853 = vmatpush1.bf16.msra.mxu0 0
    %1854 = vmatprep.subr.bf16.mxu0 0
    %1855 = vmatpush1.bf16.msra.mxu0 0
    %1856 = vmatprep.subr.bf16.mxu0 0
    %1857 = vmatpush1.bf16.msra.mxu0 0
    %1858 = vmatprep.mubr.bf16.mxu0 0
    %1859 = vmatmul.mubr.bf16.gmra.mrb[0].mxu0 %v1824
    %v1860 = vpop.f32.mrb[0].mxu0
    %v1861 = vadd.f32 0.0, %v1860
    %v1862 = vpop.f32.mrb[0].mxu0
    %v1863 = vpop.f32.mrb[0].mxu0
    %v1864 = vadd.f32 0.0, %v1863
    %v1865 = vpop.f32.mrb[0].mxu0
    %1866 = vdwg.mxu0
    %1867 = vmatprep.subr.bf16.mxu0 0
    %1868 = vmatpush1.bf16.msra.mxu0 %v201
    %1869 = vmatprep.subr.bf16.mxu0 0
    %1870 = vmatpush1.bf16.msra.mxu0 %v202
    %1871 = vmatprep.subr.bf16.mxu0 0
    %1872 = vmatpush1.bf16.msra.mxu0 %v203
    %1873 = vmatprep.subr.bf16.mxu0 0
    %1874 = vmatpush1.bf16.msra.mxu0 %v204
    %1875 = vmatprep.subr.bf16.mxu0 0
    %1876 = vmatpush1.bf16.msra.mxu0 %v205
    %1877 = vmatprep.subr.bf16.mxu0 0
    %1878 = vmatpush1.bf16.msra.mxu0 %v206
    %1879 = vmatprep.subr.bf16.mxu0 0
    %1880 = vmatpush1.bf16.msra.mxu0 %v207
    %1881 = vmatprep.subr.bf16.mxu0 0
    %1882 = vmatpush1.bf16.msra.mxu0 %v208
    %1883 = vmatprep.subr.bf16.mxu0 0
    %1884 = vmatpush1.bf16.msra.mxu0 0
    %1885 = vmatprep.subr.bf16.mxu0 0
    %1886 = vmatpush1.bf16.msra.mxu0 0
    %1887 = vmatprep.subr.bf16.mxu0 0
    %1888 = vmatpush1.bf16.msra.mxu0 0
    %1889 = vmatprep.subr.bf16.mxu0 0
    %1890 = vmatpush1.bf16.msra.mxu0 0
    %1891 = vmatprep.subr.bf16.mxu0 0
    %1892 = vmatpush1.bf16.msra.mxu0 0
    %1893 = vmatprep.subr.bf16.mxu0 0
    %1894 = vmatpush1.bf16.msra.mxu0 0
    %1895 = vmatprep.subr.bf16.mxu0 0
    %1896 = vmatpush1.bf16.msra.mxu0 0
    %1897 = vmatprep.subr.bf16.mxu0 0
    %1898 = vmatpush1.bf16.msra.mxu0 0
    %1899 = vmatprep.mubr.bf16.mxu0 0
    %1900 = vmatmul.mubr.bf16.gmra.mrb[0].mxu0 %v1814
    %v1901 = vpop.f32.mrb[0].mxu0
    %v1902 = vadd.f32 %v1861, %v1901
    %v1903 = vpop.f32.mrb[0].mxu0
    %v1904 = vpop.f32.mrb[0].mxu0
    %v1905 = vadd.f32 %v1864, %v1904
    %v1906 = vpop.f32.mrb[0].mxu0
    %1907 = vdwg.mxu0
    %v1908 = vmax.f32 %v1758, %v1902
    %v1909 = vmax.f32 %v1759, %v1905
    %s1910 = scalar_lea.vmem %s0, 96
    %v1911 = vld [vmem:[%s1910] sm:$0xf]
    %v1912 = vld [vmem:[%s1910 + $0x4] sm:$0xf]
    %v1915 = vunpack.c.l.b16 %v1911
    %v1916 = vunpack.c.l.b16 %v1912
    %v1917 = vpack.c.b16 %v1916, %v1915
    %v1919 = vsel %vm48, %v1917, 0
    %1921 = vmatprep.subr.bf16.mxu0 0
    %1922 = vmatpush1.bf16.msra.mxu0 %v44
    %1923 = vmatprep.subr.bf16.mxu0 0
    %1924 = vmatpush1.bf16.msra.mxu0 %v45
    %1925 = vmatprep.subr.bf16.mxu0 0
    %1926 = vmatpush1.bf16.msra.mxu0 0
    %1927 = vmatprep.subr.bf16.mxu0 0
    %1928 = vmatpush1.bf16.msra.mxu0 0
    %1929 = vmatprep.subr.bf16.mxu0 0
    %1930 = vmatpush1.bf16.msra.mxu0 0
    %1931 = vmatprep.subr.bf16.mxu0 0
    %1932 = vmatpush1.bf16.msra.mxu0 0
    %1933 = vmatprep.subr.bf16.mxu0 0
    %1934 = vmatpush1.bf16.msra.mxu0 0
    %1935 = vmatprep.subr.bf16.mxu0 0
    %1936 = vmatpush1.bf16.msra.mxu0 0
    %1937 = vmatprep.subr.bf16.mxu0 0
    %1938 = vmatpush1.bf16.msra.mxu0 0
    %1939 = vmatprep.subr.bf16.mxu0 0
    %1940 = vmatpush1.bf16.msra.mxu0 0
    %1941 = vmatprep.subr.bf16.mxu0 0
    %1942 = vmatpush1.bf16.msra.mxu0 0
    %1943 = vmatprep.subr.bf16.mxu0 0
    %1944 = vmatpush1.bf16.msra.mxu0 0
    %1945 = vmatprep.subr.bf16.mxu0 0
    %1946 = vmatpush1.bf16.msra.mxu0 0
    %1947 = vmatprep.subr.bf16.mxu0 0
    %1948 = vmatpush1.bf16.msra.mxu0 0
    %1949 = vmatprep.subr.bf16.mxu0 0
    %1950 = vmatpush1.bf16.msra.mxu0 0
    %1951 = vmatprep.subr.bf16.mxu0 0
    %1952 = vmatpush1.bf16.msra.mxu0 0
    %1953 = vmatprep.mubr.bf16.mxu0 0
    %1954 = vmatmul.mubr.bf16.gmra.mrb[0].mxu0 %v1919
    %v1955 = vpop.f32.mrb[0].mxu0
    %v1956 = vadd.f32 0.0, %v1955
    %v1957 = vpop.f32.mrb[0].mxu0
    %v1958 = vpop.f32.mrb[0].mxu0
    %v1959 = vadd.f32 0.0, %v1958
    %v1960 = vpop.f32.mrb[0].mxu0
    %1961 = vdwg.mxu0
    %v1962 = vmax.f32 %v1956, 0.0
    %v1963 = vmax.f32 %v1959, 0.0
    %v1964 = vpack.c.bf16 %v1963, %v1962
    %s1965 = scalar_lea.vmem %s1, 96
    %v1966 = vld [vmem:[%s1965] sm:$0xf]
    %v1967 = vld [vmem:[%s1965 + $0x4] sm:$0xf]
    %v1970 = vunpack.c.l.b16 %v1966
    %v1971 = vunpack.c.l.b16 %v1967
    %v1972 = vpack.c.b16 %v1971, %v1970
    %v1974 = vsel %vm120, %v1972, 0
    %1976 = vmatprep.subr.bf16.mxu0 0
    %1977 = vmatpush1.bf16.msra.mxu0 %v126
    %1978 = vmatprep.subr.bf16.mxu0 0
    %1979 = vmatpush1.bf16.msra.mxu0 0
    %1980 = vmatprep.subr.bf16.mxu0 0
    %1981 = vmatpush1.bf16.msra.mxu0 0
    %1982 = vmatprep.subr.bf16.mxu0 0
    %1983 = vmatpush1.bf16.msra.mxu0 0
    %1984 = vmatprep.subr.bf16.mxu0 0
    %1985 = vmatpush1.bf16.msra.mxu0 0
    %1986 = vmatprep.subr.bf16.mxu0 0
    %1987 = vmatpush1.bf16.msra.mxu0 0
    %1988 = vmatprep.subr.bf16.mxu0 0
    %1989 = vmatpush1.bf16.msra.mxu0 0
    %1990 = vmatprep.subr.bf16.mxu0 0
    %1991 = vmatpush1.bf16.msra.mxu0 0
    %1992 = vmatprep.subr.bf16.mxu0 0
    %1993 = vmatpush1.bf16.msra.mxu0 0
    %1994 = vmatprep.subr.bf16.mxu0 0
    %1995 = vmatpush1.bf16.msra.mxu0 0
    %1996 = vmatprep.subr.bf16.mxu0 0
    %1997 = vmatpush1.bf16.msra.mxu0 0
    %1998 = vmatprep.subr.bf16.mxu0 0
    %1999 = vmatpush1.bf16.msra.mxu0 0
    %2000 = vmatprep.subr.bf16.mxu0 0
    %2001 = vmatpush1.bf16.msra.mxu0 0
    %2002 = vmatprep.subr.bf16.mxu0 0
    %2003 = vmatpush1.bf16.msra.mxu0 0
    %2004 = vmatprep.subr.bf16.mxu0 0
    %2005 = vmatpush1.bf16.msra.mxu0 0
    %2006 = vmatprep.subr.bf16.mxu0 0
    %2007 = vmatpush1.bf16.msra.mxu0 0
    %2008 = vmatprep.mubr.bf16.mxu0 0
    %2009 = vmatmul.mubr.bf16.gmra.mrb[0].mxu0 %v1974
    %v2010 = vpop.f32.mrb[0].mxu0
    %v2011 = vadd.f32 0.0, %v2010
    %v2012 = vpop.f32.mrb[0].mxu0
    %v2013 = vpop.f32.mrb[0].mxu0
    %v2014 = vadd.f32 0.0, %v2013
    %v2015 = vpop.f32.mrb[0].mxu0
    %2016 = vdwg.mxu0
    %2017 = vmatprep.subr.bf16.mxu0 0
    %2018 = vmatpush1.bf16.msra.mxu0 %v201
    %2019 = vmatprep.subr.bf16.mxu0 0
    %2020 = vmatpush1.bf16.msra.mxu0 %v202
    %2021 = vmatprep.subr.bf16.mxu0 0
    %2022 = vmatpush1.bf16.msra.mxu0 %v203
    %2023 = vmatprep.subr.bf16.mxu0 0
    %2024 = vmatpush1.bf16.msra.mxu0 %v204
    %2025 = vmatprep.subr.bf16.mxu0 0
    %2026 = vmatpush1.bf16.msra.mxu0 %v205
    %2027 = vmatprep.subr.bf16.mxu0 0
    %2028 = vmatpush1.bf16.msra.mxu0 %v206
    %2029 = vmatprep.subr.bf16.mxu0 0
    %2030 = vmatpush1.bf16.msra.mxu0 %v207
    %2031 = vmatprep.subr.bf16.mxu0 0
    %2032 = vmatpush1.bf16.msra.mxu0 %v208
    %2033 = vmatprep.subr.bf16.mxu0 0
    %2034 = vmatpush1.bf16.msra.mxu0 0
    %2035 = vmatprep.subr.bf16.mxu0 0
    %2036 = vmatpush1.bf16.msra.mxu0 0
    %2037 = vmatprep.subr.bf16.mxu0 0
    %2038 = vmatpush1.bf16.msra.mxu0 0
    %2039 = vmatprep.subr.bf16.mxu0 0
    %2040 = vmatpush1.bf16.msra.mxu0 0
    %2041 = vmatprep.subr.bf16.mxu0 0
    %2042 = vmatpush1.bf16.msra.mxu0 0
    %2043 = vmatprep.subr.bf16.mxu0 0
    %2044 = vmatpush1.bf16.msra.mxu0 0
    %2045 = vmatprep.subr.bf16.mxu0 0
    %2046 = vmatpush1.bf16.msra.mxu0 0
    %2047 = vmatprep.subr.bf16.mxu0 0
    %2048 = vmatpush1.bf16.msra.mxu0 0
    %2049 = vmatprep.mubr.bf16.mxu0 0
    %2050 = vmatmul.mubr.bf16.gmra.mrb[0].mxu0 %v1964
    %v2051 = vpop.f32.mrb[0].mxu0
    %v2052 = vadd.f32 %v2011, %v2051
    %v2053 = vpop.f32.mrb[0].mxu0
    %v2054 = vpop.f32.mrb[0].mxu0
    %v2055 = vadd.f32 %v2014, %v2054
    %v2056 = vpop.f32.mrb[0].mxu0
    %2057 = vdwg.mxu0
    %v2058 = vmax.f32 %v1908, %v2052
    %v2059 = vmax.f32 %v1909, %v2055
    %s2060 = scalar_lea.vmem %s0, 104
    %v2061 = vld [vmem:[%s2060] sm:$0xf]
    %v2062 = vld [vmem:[%s2060 + $0x4] sm:$0xf]
    %v2065 = vunpack.c.l.b16 %v2061
    %v2066 = vunpack.c.l.b16 %v2062
    %v2067 = vpack.c.b16 %v2066, %v2065
    %v2069 = vsel %vm48, %v2067, 0
    %2071 = vmatprep.subr.bf16.mxu0 0
    %2072 = vmatpush1.bf16.msra.mxu0 %v44
    %2073 = vmatprep.subr.bf16.mxu0 0
    %2074 = vmatpush1.bf16.msra.mxu0 %v45
    %2075 = vmatprep.subr.bf16.mxu0 0
    %2076 = vmatpush1.bf16.msra.mxu0 0
    %2077 = vmatprep.subr.bf16.mxu0 0
    %2078 = vmatpush1.bf16.msra.mxu0 0
    %2079 = vmatprep.subr.bf16.mxu0 0
    %2080 = vmatpush1.bf16.msra.mxu0 0
    %2081 = vmatprep.subr.bf16.mxu0 0
    %2082 = vmatpush1.bf16.msra.mxu0 0
    %2083 = vmatprep.subr.bf16.mxu0 0
    %2084 = vmatpush1.bf16.msra.mxu0 0
    %2085 = vmatprep.subr.bf16.mxu0 0
    %2086 = vmatpush1.bf16.msra.mxu0 0
    %2087 = vmatprep.subr.bf16.mxu0 0
    %2088 = vmatpush1.bf16.msra.mxu0 0
    %2089 = vmatprep.subr.bf16.mxu0 0
    %2090 = vmatpush1.bf16.msra.mxu0 0
    %2091 = vmatprep.subr.bf16.mxu0 0
    %2092 = vmatpush1.bf16.msra.mxu0 0
    %2093 = vmatprep.subr.bf16.mxu0 0
    %2094 = vmatpush1.bf16.msra.mxu0 0
    %2095 = vmatprep.subr.bf16.mxu0 0
    %2096 = vmatpush1.bf16.msra.mxu0 0
    %2097 = vmatprep.subr.bf16.mxu0 0
    %2098 = vmatpush1.bf16.msra.mxu0 0
    %2099 = vmatprep.subr.bf16.mxu0 0
    %2100 = vmatpush1.bf16.msra.mxu0 0
    %2101 = vmatprep.subr.bf16.mxu0 0
    %2102 = vmatpush1.bf16.msra.mxu0 0
    %2103 = vmatprep.mubr.bf16.mxu0 0
    %2104 = vmatmul.mubr.bf16.gmra.mrb[0].mxu0 %v2069
    %v2105 = vpop.f32.mrb[0].mxu0
    %v2106 = vadd.f32 0.0, %v2105
    %v2107 = vpop.f32.mrb[0].mxu0
    %v2108 = vpop.f32.mrb[0].mxu0
    %v2109 = vadd.f32 0.0, %v2108
    %v2110 = vpop.f32.mrb[0].mxu0
    %2111 = vdwg.mxu0
    %v2112 = vmax.f32 %v2106, 0.0
    %v2113 = vmax.f32 %v2109, 0.0
    %v2114 = vpack.c.bf16 %v2113, %v2112
    %s2115 = scalar_lea.vmem %s1, 104
    %v2116 = vld [vmem:[%s2115] sm:$0xf]
    %v2117 = vld [vmem:[%s2115 + $0x4] sm:$0xf]
    %v2120 = vunpack.c.l.b16 %v2116
    %v2121 = vunpack.c.l.b16 %v2117
    %v2122 = vpack.c.b16 %v2121, %v2120
    %v2124 = vsel %vm120, %v2122, 0
    %2126 = vmatprep.subr.bf16.mxu0 0
    %2127 = vmatpush1.bf16.msra.mxu0 %v126
    %2128 = vmatprep.subr.bf16.mxu0 0
    %2129 = vmatpush1.bf16.msra.mxu0 0
    %2130 = vmatprep.subr.bf16.mxu0 0
    %2131 = vmatpush1.bf16.msra.mxu0 0
    %2132 = vmatprep.subr.bf16.mxu0 0
    %2133 = vmatpush1.bf16.msra.mxu0 0
    %2134 = vmatprep.subr.bf16.mxu0 0
    %2135 = vmatpush1.bf16.msra.mxu0 0
    %2136 = vmatprep.subr.bf16.mxu0 0
    %2137 = vmatpush1.bf16.msra.mxu0 0
    %2138 = vmatprep.subr.bf16.mxu0 0
    %2139 = vmatpush1.bf16.msra.mxu0 0
    %2140 = vmatprep.subr.bf16.mxu0 0
    %2141 = vmatpush1.bf16.msra.mxu0 0
    %2142 = vmatprep.subr.bf16.mxu0 0
    %2143 = vmatpush1.bf16.msra.mxu0 0
    %2144 = vmatprep.subr.bf16.mxu0 0
    %2145 = vmatpush1.bf16.msra.mxu0 0
    %2146 = vmatprep.subr.bf16.mxu0 0
    %2147 = vmatpush1.bf16.msra.mxu0 0
    %2148 = vmatprep.subr.bf16.mxu0 0
    %2149 = vmatpush1.bf16.msra.mxu0 0
    %2150 = vmatprep.subr.bf16.mxu0 0
    %2151 = vmatpush1.bf16.msra.mxu0 0
    %2152 = vmatprep.subr.bf16.mxu0 0
    %2153 = vmatpush1.bf16.msra.mxu0 0
    %2154 = vmatprep.subr.bf16.mxu0 0
    %2155 = vmatpush1.bf16.msra.mxu0 0
    %2156 = vmatprep.subr.bf16.mxu0 0
    %2157 = vmatpush1.bf16.msra.mxu0 0
    %2158 = vmatprep.mubr.bf16.mxu0 0
    %2159 = vmatmul.mubr.bf16.gmra.mrb[0].mxu0 %v2124
    %v2160 = vpop.f32.mrb[0].mxu0
    %v2161 = vadd.f32 0.0, %v2160
    %v2162 = vpop.f32.mrb[0].mxu0
    %v2163 = vpop.f32.mrb[0].mxu0
    %v2164 = vadd.f32 0.0, %v2163
    %v2165 = vpop.f32.mrb[0].mxu0
    %2166 = vdwg.mxu0
    %2167 = vmatprep.subr.bf16.mxu0 0
    %2168 = vmatpush1.bf16.msra.mxu0 %v201
    %2169 = vmatprep.subr.bf16.mxu0 0
    %2170 = vmatpush1.bf16.msra.mxu0 %v202
    %2171 = vmatprep.subr.bf16.mxu0 0
    %2172 = vmatpush1.bf16.msra.mxu0 %v203
    %2173 = vmatprep.subr.bf16.mxu0 0
    %2174 = vmatpush1.bf16.msra.mxu0 %v204
    %2175 = vmatprep.subr.bf16.mxu0 0
    %2176 = vmatpush1.bf16.msra.mxu0 %v205
    %2177 = vmatprep.subr.bf16.mxu0 0
    %2178 = vmatpush1.bf16.msra.mxu0 %v206
    %2179 = vmatprep.subr.bf16.mxu0 0
    %2180 = vmatpush1.bf16.msra.mxu0 %v207
    %2181 = vmatprep.subr.bf16.mxu0 0
    %2182 = vmatpush1.bf16.msra.mxu0 %v208
    %2183 = vmatprep.subr.bf16.mxu0 0
    %2184 = vmatpush1.bf16.msra.mxu0 0
    %2185 = vmatprep.subr.bf16.mxu0 0
    %2186 = vmatpush1.bf16.msra.mxu0 0
    %2187 = vmatprep.subr.bf16.mxu0 0
    %2188 = vmatpush1.bf16.msra.mxu0 0
    %2189 = vmatprep.subr.bf16.mxu0 0
    %2190 = vmatpush1.bf16.msra.mxu0 0
    %2191 = vmatprep.subr.bf16.mxu0 0
    %2192 = vmatpush1.bf16.msra.mxu0 0
    %2193 = vmatprep.subr.bf16.mxu0 0
    %2194 = vmatpush1.bf16.msra.mxu0 0
    %2195 = vmatprep.subr.bf16.mxu0 0
    %2196 = vmatpush1.bf16.msra.mxu0 0
    %2197 = vmatprep.subr.bf16.mxu0 0
    %2198 = vmatpush1.bf16.msra.mxu0 0
    %2199 = vmatprep.mubr.bf16.mxu0 0
    %2200 = vmatmul.mubr.bf16.gmra.mrb[0].mxu0 %v2114
    %v2201 = vpop.f32.mrb[0].mxu0
    %v2202 = vadd.f32 %v2161, %v2201
    %v2203 = vpop.f32.mrb[0].mxu0
    %v2204 = vpop.f32.mrb[0].mxu0
    %v2205 = vadd.f32 %v2164, %v2204
    %v2206 = vpop.f32.mrb[0].mxu0
    %2207 = vdwg.mxu0
    %v2208 = vmax.f32 %v2058, %v2202
    %v2209 = vmax.f32 %v2059, %v2205
    %s2210 = scalar_lea.vmem %s0, 112
    %v2211 = vld [vmem:[%s2210] sm:$0xf]
    %v2212 = vld [vmem:[%s2210 + $0x4] sm:$0xf]
    %v2215 = vunpack.c.l.b16 %v2211
    %v2216 = vunpack.c.l.b16 %v2212
    %v2217 = vpack.c.b16 %v2216, %v2215
    %v2219 = vsel %vm48, %v2217, 0
    %2221 = vmatprep.subr.bf16.mxu0 0
    %2222 = vmatpush1.bf16.msra.mxu0 %v44
    %2223 = vmatprep.subr.bf16.mxu0 0
    %2224 = vmatpush1.bf16.msra.mxu0 %v45
    %2225 = vmatprep.subr.bf16.mxu0 0
    %2226 = vmatpush1.bf16.msra.mxu0 0
    %2227 = vmatprep.subr.bf16.mxu0 0
    %2228 = vmatpush1.bf16.msra.mxu0 0
    %2229 = vmatprep.subr.bf16.mxu0 0
    %2230 = vmatpush1.bf16.msra.mxu0 0
    %2231 = vmatprep.subr.bf16.mxu0 0
    %2232 = vmatpush1.bf16.msra.mxu0 0
    %2233 = vmatprep.subr.bf16.mxu0 0
    %2234 = vmatpush1.bf16.msra.mxu0 0
    %2235 = vmatprep.subr.bf16.mxu0 0
    %2236 = vmatpush1.bf16.msra.mxu0 0
    %2237 = vmatprep.subr.bf16.mxu0 0
    %2238 = vmatpush1.bf16.msra.mxu0 0
    %2239 = vmatprep.subr.bf16.mxu0 0
    %2240 = vmatpush1.bf16.msra.mxu0 0
    %2241 = vmatprep.subr.bf16.mxu0 0
    %2242 = vmatpush1.bf16.msra.mxu0 0
    %2243 = vmatprep.subr.bf16.mxu0 0
    %2244 = vmatpush1.bf16.msra.mxu0 0
    %2245 = vmatprep.subr.bf16.mxu0 0
    %2246 = vmatpush1.bf16.msra.mxu0 0
    %2247 = vmatprep.subr.bf16.mxu0 0
    %2248 = vmatpush1.bf16.msra.mxu0 0
    %2249 = vmatprep.subr.bf16.mxu0 0
    %2250 = vmatpush1.bf16.msra.mxu0 0
    %2251 = vmatprep.subr.bf16.mxu0 0
    %2252 = vmatpush1.bf16.msra.mxu0 0
    %2253 = vmatprep.mubr.bf16.mxu0 0
    %2254 = vmatmul.mubr.bf16.gmra.mrb[0].mxu0 %v2219
    %v2255 = vpop.f32.mrb[0].mxu0
    %v2256 = vadd.f32 0.0, %v2255
    %v2257 = vpop.f32.mrb[0].mxu0
    %v2258 = vpop.f32.mrb[0].mxu0
    %v2259 = vadd.f32 0.0, %v2258
    %v2260 = vpop.f32.mrb[0].mxu0
    %2261 = vdwg.mxu0
    %v2262 = vmax.f32 %v2256, 0.0
    %v2263 = vmax.f32 %v2259, 0.0
    %v2264 = vpack.c.bf16 %v2263, %v2262
    %s2265 = scalar_lea.vmem %s1, 112
    %v2266 = vld [vmem:[%s2265] sm:$0xf]
    %v2267 = vld [vmem:[%s2265 + $0x4] sm:$0xf]
    %v2270 = vunpack.c.l.b16 %v2266
    %v2271 = vunpack.c.l.b16 %v2267
    %v2272 = vpack.c.b16 %v2271, %v2270
    %v2274 = vsel %vm120, %v2272, 0
    %2276 = vmatprep.subr.bf16.mxu0 0
    %2277 = vmatpush1.bf16.msra.mxu0 %v126
    %2278 = vmatprep.subr.bf16.mxu0 0
    %2279 = vmatpush1.bf16.msra.mxu0 0
    %2280 = vmatprep.subr.bf16.mxu0 0
    %2281 = vmatpush1.bf16.msra.mxu0 0
    %2282 = vmatprep.subr.bf16.mxu0 0
    %2283 = vmatpush1.bf16.msra.mxu0 0
    %2284 = vmatprep.subr.bf16.mxu0 0
    %2285 = vmatpush1.bf16.msra.mxu0 0
    %2286 = vmatprep.subr.bf16.mxu0 0
    %2287 = vmatpush1.bf16.msra.mxu0 0
    %2288 = vmatprep.subr.bf16.mxu0 0
    %2289 = vmatpush1.bf16.msra.mxu0 0
    %2290 = vmatprep.subr.bf16.mxu0 0
    %2291 = vmatpush1.bf16.msra.mxu0 0
    %2292 = vmatprep.subr.bf16.mxu0 0
    %2293 = vmatpush1.bf16.msra.mxu0 0
    %2294 = vmatprep.subr.bf16.mxu0 0
    %2295 = vmatpush1.bf16.msra.mxu0 0
    %2296 = vmatprep.subr.bf16.mxu0 0
    %2297 = vmatpush1.bf16.msra.mxu0 0
    %2298 = vmatprep.subr.bf16.mxu0 0
    %2299 = vmatpush1.bf16.msra.mxu0 0
    %2300 = vmatprep.subr.bf16.mxu0 0
    %2301 = vmatpush1.bf16.msra.mxu0 0
    %2302 = vmatprep.subr.bf16.mxu0 0
    %2303 = vmatpush1.bf16.msra.mxu0 0
    %2304 = vmatprep.subr.bf16.mxu0 0
    %2305 = vmatpush1.bf16.msra.mxu0 0
    %2306 = vmatprep.subr.bf16.mxu0 0
    %2307 = vmatpush1.bf16.msra.mxu0 0
    %2308 = vmatprep.mubr.bf16.mxu0 0
    %2309 = vmatmul.mubr.bf16.gmra.mrb[0].mxu0 %v2274
    %v2310 = vpop.f32.mrb[0].mxu0
    %v2311 = vadd.f32 0.0, %v2310
    %v2312 = vpop.f32.mrb[0].mxu0
    %v2313 = vpop.f32.mrb[0].mxu0
    %v2314 = vadd.f32 0.0, %v2313
    %v2315 = vpop.f32.mrb[0].mxu0
    %2316 = vdwg.mxu0
    %2317 = vmatprep.subr.bf16.mxu0 0
    %2318 = vmatpush1.bf16.msra.mxu0 %v201
    %2319 = vmatprep.subr.bf16.mxu0 0
    %2320 = vmatpush1.bf16.msra.mxu0 %v202
    %2321 = vmatprep.subr.bf16.mxu0 0
    %2322 = vmatpush1.bf16.msra.mxu0 %v203
    %2323 = vmatprep.subr.bf16.mxu0 0
    %2324 = vmatpush1.bf16.msra.mxu0 %v204
    %2325 = vmatprep.subr.bf16.mxu0 0
    %2326 = vmatpush1.bf16.msra.mxu0 %v205
    %2327 = vmatprep.subr.bf16.mxu0 0
    %2328 = vmatpush1.bf16.msra.mxu0 %v206
    %2329 = vmatprep.subr.bf16.mxu0 0
    %2330 = vmatpush1.bf16.msra.mxu0 %v207
    %2331 = vmatprep.subr.bf16.mxu0 0
    %2332 = vmatpush1.bf16.msra.mxu0 %v208
    %2333 = vmatprep.subr.bf16.mxu0 0
    %2334 = vmatpush1.bf16.msra.mxu0 0
    %2335 = vmatprep.subr.bf16.mxu0 0
    %2336 = vmatpush1.bf16.msra.mxu0 0
    %2337 = vmatprep.subr.bf16.mxu0 0
    %2338 = vmatpush1.bf16.msra.mxu0 0
    %2339 = vmatprep.subr.bf16.mxu0 0
    %2340 = vmatpush1.bf16.msra.mxu0 0
    %2341 = vmatprep.subr.bf16.mxu0 0
    %2342 = vmatpush1.bf16.msra.mxu0 0
    %2343 = vmatprep.subr.bf16.mxu0 0
    %2344 = vmatpush1.bf16.msra.mxu0 0
    %2345 = vmatprep.subr.bf16.mxu0 0
    %2346 = vmatpush1.bf16.msra.mxu0 0
    %2347 = vmatprep.subr.bf16.mxu0 0
    %2348 = vmatpush1.bf16.msra.mxu0 0
    %2349 = vmatprep.mubr.bf16.mxu0 0
    %2350 = vmatmul.mubr.bf16.gmra.mrb[0].mxu0 %v2264
    %v2351 = vpop.f32.mrb[0].mxu0
    %v2352 = vadd.f32 %v2311, %v2351
    %v2353 = vpop.f32.mrb[0].mxu0
    %v2354 = vpop.f32.mrb[0].mxu0
    %v2355 = vadd.f32 %v2314, %v2354
    %v2356 = vpop.f32.mrb[0].mxu0
    %2357 = vdwg.mxu0
    %v2358 = vmax.f32 %v2208, %v2352
    %v2359 = vmax.f32 %v2209, %v2355
    %s2360 = scalar_lea.vmem %s0, 120
    %v2361 = vld [vmem:[%s2360] sm:$0xf]
    %v2362 = vld [vmem:[%s2360 + $0x4] sm:$0xf]
    %v2365 = vunpack.c.l.b16 %v2361
    %v2366 = vunpack.c.l.b16 %v2362
    %v2367 = vpack.c.b16 %v2366, %v2365
    %v2369 = vsel %vm48, %v2367, 0
    %2371 = vmatprep.subr.bf16.mxu0 0
    %2372 = vmatpush1.bf16.msra.mxu0 %v44
    %2373 = vmatprep.subr.bf16.mxu0 0
    %2374 = vmatpush1.bf16.msra.mxu0 %v45
    %2375 = vmatprep.subr.bf16.mxu0 0
    %2376 = vmatpush1.bf16.msra.mxu0 0
    %2377 = vmatprep.subr.bf16.mxu0 0
    %2378 = vmatpush1.bf16.msra.mxu0 0
    %2379 = vmatprep.subr.bf16.mxu0 0
    %2380 = vmatpush1.bf16.msra.mxu0 0
    %2381 = vmatprep.subr.bf16.mxu0 0
    %2382 = vmatpush1.bf16.msra.mxu0 0
    %2383 = vmatprep.subr.bf16.mxu0 0
    %2384 = vmatpush1.bf16.msra.mxu0 0
    %2385 = vmatprep.subr.bf16.mxu0 0
    %2386 = vmatpush1.bf16.msra.mxu0 0
    %2387 = vmatprep.subr.bf16.mxu0 0
    %2388 = vmatpush1.bf16.msra.mxu0 0
    %2389 = vmatprep.subr.bf16.mxu0 0
    %2390 = vmatpush1.bf16.msra.mxu0 0
    %2391 = vmatprep.subr.bf16.mxu0 0
    %2392 = vmatpush1.bf16.msra.mxu0 0
    %2393 = vmatprep.subr.bf16.mxu0 0
    %2394 = vmatpush1.bf16.msra.mxu0 0
    %2395 = vmatprep.subr.bf16.mxu0 0
    %2396 = vmatpush1.bf16.msra.mxu0 0
    %2397 = vmatprep.subr.bf16.mxu0 0
    %2398 = vmatpush1.bf16.msra.mxu0 0
    %2399 = vmatprep.subr.bf16.mxu0 0
    %2400 = vmatpush1.bf16.msra.mxu0 0
    %2401 = vmatprep.subr.bf16.mxu0 0
    %2402 = vmatpush1.bf16.msra.mxu0 0
    %2403 = vmatprep.mubr.bf16.mxu0 0
    %2404 = vmatmul.mubr.bf16.gmra.mrb[0].mxu0 %v2369
    %v2405 = vpop.f32.mrb[0].mxu0
    %v2406 = vadd.f32 0.0, %v2405
    %v2407 = vpop.f32.mrb[0].mxu0
    %v2408 = vpop.f32.mrb[0].mxu0
    %v2409 = vadd.f32 0.0, %v2408
    %v2410 = vpop.f32.mrb[0].mxu0
    %2411 = vdwg.mxu0
    %v2412 = vmax.f32 %v2406, 0.0
    %v2413 = vmax.f32 %v2409, 0.0
    %v2414 = vpack.c.bf16 %v2413, %v2412
    %s2415 = scalar_lea.vmem %s1, 120
    %v2416 = vld [vmem:[%s2415] sm:$0xf]
    %v2417 = vld [vmem:[%s2415 + $0x4] sm:$0xf]
    %v2420 = vunpack.c.l.b16 %v2416
    %v2421 = vunpack.c.l.b16 %v2417
    %v2422 = vpack.c.b16 %v2421, %v2420
    %v2424 = vsel %vm120, %v2422, 0
    %2426 = vmatprep.subr.bf16.mxu0 0
    %2427 = vmatpush1.bf16.msra.mxu0 %v126
    %2428 = vmatprep.subr.bf16.mxu0 0
    %2429 = vmatpush1.bf16.msra.mxu0 0
    %2430 = vmatprep.subr.bf16.mxu0 0
    %2431 = vmatpush1.bf16.msra.mxu0 0
    %2432 = vmatprep.subr.bf16.mxu0 0
    %2433 = vmatpush1.bf16.msra.mxu0 0
    %2434 = vmatprep.subr.bf16.mxu0 0
    %2435 = vmatpush1.bf16.msra.mxu0 0
    %2436 = vmatprep.subr.bf16.mxu0 0
    %2437 = vmatpush1.bf16.msra.mxu0 0
    %2438 = vmatprep.subr.bf16.mxu0 0
    %2439 = vmatpush1.bf16.msra.mxu0 0
    %2440 = vmatprep.subr.bf16.mxu0 0
    %2441 = vmatpush1.bf16.msra.mxu0 0
    %2442 = vmatprep.subr.bf16.mxu0 0
    %2443 = vmatpush1.bf16.msra.mxu0 0
    %2444 = vmatprep.subr.bf16.mxu0 0
    %2445 = vmatpush1.bf16.msra.mxu0 0
    %2446 = vmatprep.subr.bf16.mxu0 0
    %2447 = vmatpush1.bf16.msra.mxu0 0
    %2448 = vmatprep.subr.bf16.mxu0 0
    %2449 = vmatpush1.bf16.msra.mxu0 0
    %2450 = vmatprep.subr.bf16.mxu0 0
    %2451 = vmatpush1.bf16.msra.mxu0 0
    %2452 = vmatprep.subr.bf16.mxu0 0
    %2453 = vmatpush1.bf16.msra.mxu0 0
    %2454 = vmatprep.subr.bf16.mxu0 0
    %2455 = vmatpush1.bf16.msra.mxu0 0
    %2456 = vmatprep.subr.bf16.mxu0 0
    %2457 = vmatpush1.bf16.msra.mxu0 0
    %2458 = vmatprep.mubr.bf16.mxu0 0
    %2459 = vmatmul.mubr.bf16.gmra.mrb[0].mxu0 %v2424
    %v2460 = vpop.f32.mrb[0].mxu0
    %v2461 = vadd.f32 0.0, %v2460
    %v2462 = vpop.f32.mrb[0].mxu0
    %v2463 = vpop.f32.mrb[0].mxu0
    %v2464 = vadd.f32 0.0, %v2463
    %v2465 = vpop.f32.mrb[0].mxu0
    %2466 = vdwg.mxu0
    %2467 = vmatprep.subr.bf16.mxu0 0
    %2468 = vmatpush1.bf16.msra.mxu0 %v201
    %2469 = vmatprep.subr.bf16.mxu0 0
    %2470 = vmatpush1.bf16.msra.mxu0 %v202
    %2471 = vmatprep.subr.bf16.mxu0 0
    %2472 = vmatpush1.bf16.msra.mxu0 %v203
    %2473 = vmatprep.subr.bf16.mxu0 0
    %2474 = vmatpush1.bf16.msra.mxu0 %v204
    %2475 = vmatprep.subr.bf16.mxu0 0
    %2476 = vmatpush1.bf16.msra.mxu0 %v205
    %2477 = vmatprep.subr.bf16.mxu0 0
    %2478 = vmatpush1.bf16.msra.mxu0 %v206
    %2479 = vmatprep.subr.bf16.mxu0 0
    %2480 = vmatpush1.bf16.msra.mxu0 %v207
    %2481 = vmatprep.subr.bf16.mxu0 0
    %2482 = vmatpush1.bf16.msra.mxu0 %v208
    %2483 = vmatprep.subr.bf16.mxu0 0
    %2484 = vmatpush1.bf16.msra.mxu0 0
    %2485 = vmatprep.subr.bf16.mxu0 0
    %2486 = vmatpush1.bf16.msra.mxu0 0
    %2487 = vmatprep.subr.bf16.mxu0 0
    %2488 = vmatpush1.bf16.msra.mxu0 0
    %2489 = vmatprep.subr.bf16.mxu0 0
    %2490 = vmatpush1.bf16.msra.mxu0 0
    %2491 = vmatprep.subr.bf16.mxu0 0
    %2492 = vmatpush1.bf16.msra.mxu0 0
    %2493 = vmatprep.subr.bf16.mxu0 0
    %2494 = vmatpush1.bf16.msra.mxu0 0
    %2495 = vmatprep.subr.bf16.mxu0 0
    %2496 = vmatpush1.bf16.msra.mxu0 0
    %2497 = vmatprep.subr.bf16.mxu0 0
    %2498 = vmatpush1.bf16.msra.mxu0 0
    %2499 = vmatprep.mubr.bf16.mxu0 0
    %2500 = vmatmul.mubr.bf16.gmra.mrb[0].mxu0 %v2414
    %v2501 = vpop.f32.mrb[0].mxu0
    %v2502 = vadd.f32 %v2461, %v2501
    %v2503 = vpop.f32.mrb[0].mxu0
    %v2504 = vpop.f32.mrb[0].mxu0
    %v2505 = vadd.f32 %v2464, %v2504
    %v2506 = vpop.f32.mrb[0].mxu0
    %2507 = vdwg.mxu0
    %v2508 = vmax.f32 %v2358, %v2502
    %v2509 = vmax.f32 %v2359, %v2505
    %2512 = vrot.lane.b32.xlu0 %v2508, 96
    %v2513 = vpop.permute.xlu0 %2512
    %2514 = vrot.lane.b32.xlu0 %v2509, 96
    %v2515 = vpop.permute.xlu0 %2514
    %v2518 = vmax.f32 %v2508, %v2513
    %v2519 = vmax.f32 %v2509, %v2515
    %2520 = vrot.lane.b32.xlu0 %v2508, 64
    %v2521 = vpop.permute.xlu0 %2520
    %2522 = vrot.lane.b32.xlu0 %v2509, 64
    %v2523 = vpop.permute.xlu0 %2522
    %v2526 = vmax.f32 %v2518, %v2521
    %v2527 = vmax.f32 %v2519, %v2523
    %2528 = vrot.lane.b32.xlu0 %v2508, 32
    %v2529 = vpop.permute.xlu0 %2528
    %2530 = vrot.lane.b32.xlu0 %v2509, 32
    %v2531 = vpop.permute.xlu0 %2530
    %v2534 = vmax.f32 %v2526, %v2529
    %v2535 = vmax.f32 %v2527, %v2531
    %v2536 = vld [vmem:[%s5] sm:$0x1]
    %v2538 = vlaneseq
    %v2539 = vshrl.u32 %v2538, 7
    %v2540 = vsub.s32 0, %v2539
    %v2541 = vrot.slane %v2536, %v2540
    %v2543 = vadd.f32 %v2534, %v2541
    %v2544 = vadd.f32 %v2535, %v2541
    %v2545 = vmax.f32 %v2543, 0.0
    %v2546 = vmax.f32 %v2544, 0.0
    %2547 = vst.msk [vmem:[#allocation2] sm:$0xff] %vm48, %v2545
    %2548 = vst.msk [vmem:[#allocation2 + $0x8] sm:$0xff] %vm48, %v2546
    // Predicated region
    $region26: #{sa_module_forward.1} parent=1 // pred_check
      _
    $region27: #{sa_module_forward.1} parent=1 // pred_check_branch
      %2550 = sbr.rel (0) target = $region29
    $region28: #{sa_module_forward.1} parent=1 // pred_region
      %s2552 = ssub.s32 256, 256
      %2553 = vsyncadd [#allocation3], %s2552
      %s2554 = sshll.u32 [#allocation2], 4
      %s2555 = int_to_ptr.vmem [resolvable:$true] %s2554
      %2560 = dma.vmem_to_hbm [thread:$0]  %s2555, 256, %s6, [#allocation3], 128, 128, 8
    $region29: #{sa_module_forward.1} parent=1 // pred_fallthru
      _
    // Predicated region
    $region30: #{sa_module_forward.1} parent=1 // pred_check
      _
    $region31: #{sa_module_forward.1} parent=1 // pred_check_branch
      %2562 = sbr.rel (0) target = $region33
    $region32: #{sa_module_forward.1} parent=1 // pred_region
      %2563 = dma.done [#allocation3], 256
    $region33: #{sa_module_forward.1} parent=1 // pred_fallthru
      _
    %2564 = vsyncpa [#allocation3], 1

</llo_original>
